<compile_context>
chip_gen: v6e
topology: v6e:2x2x1
jax: 0.10.0
libtpu: 0.0.40
codegen_flags: <defaults>
</compile_context>

<pallas_src>
import functools

import jax
import jax.numpy as jnp
from jax.experimental import pallas as pl
from jax.experimental.pallas import tpu as pltpu


# ----------------------------------------------------------------------------
# Fused kernel: block-diagonal (point+hit) RNN recurrence + dense head
# ----------------------------------------------------------------------------
def tau_rnn_kernel(x0_ref, seq_ref, pt_len_ref, hit_len_ref,
                   wih_ref, whh_ref, b_ref,
                   w0x_ref, w0h_ref, b0_ref,
                   wh_ref, bh_ref, wf_t_ref, bf_t_ref,
                   out_ref, xw_ref, *, t_max, n_hidden, rnn_feats):
    H = rnn_feats
    H2 = 2 * H
    op_dtype = whh_ref.dtype          # MXU operand dtype (bf16 or f32)

    wih = wih_ref[...]                # (Fp+Fh, 2H) block-diagonal
    whh = whh_ref[...]                # (2H, 2H)    block-diagonal
    bias = b_ref[...]                 # (1, 2H) f32 (b_ih + b_hh, point|hit)

    # Hoisted input projection: T_max independent small MXU matmuls written to
    # VMEM scratch; they are off the serial dependency chain and pipeline freely.
    for t in range(t_max):
        xw_ref[t] = jnp.dot(seq_ref[t], wih,
                            preferred_element_type=jnp.float32) + bias

    # Per-lane "last valid timestep": lanes [0, H) belong to the point RNN,
    # lanes [H, 2H) to the hit RNN.
    lane = jax.lax.broadcasted_iota(jnp.int32, (1, H2), 1)
    last_t = jnp.where(lane < H, pt_len_ref[...] - 1, hit_len_ref[...] - 1)

    # Fused recurrence: ONE (B, 2H) x (2H, 2H) matmul per step over
    # max(T_p, T_h) steps (h0 == 0 so step 0 has no W_hh contribution).
    # Padded steps of the shorter RNN are harmless: h_last was already captured.
    h = jnp.tanh(xw_ref[0])
    h_last = jnp.where(last_t == 0, h, 0.0)
    for t in range(1, t_max):                       # static unroll; h/h_last in vregs
        hm = jnp.dot(h.astype(op_dtype), whh, preferred_element_type=jnp.float32)
        h = jnp.tanh(xw_ref[t] + hm)
        h_last = jnp.where(last_t == t, h, h_last)

    # Dense head.  The first Linear acts on concat([x0, h_point, h_hit]);
    # h is already packed, so it collapses to two matmuls (no lane concat).
    z = (jnp.dot(x0_ref[...], w0x_ref[...], preferred_element_type=jnp.float32)
         + jnp.dot(h_last.astype(op_dtype), w0h_ref[...],
                   preferred_element_type=jnp.float32)
         + b0_ref[...])
    for i in range(n_hidden):                       # [Linear, ReLU] x (dense_layers-1)
        z = jnp.maximum(
            jnp.dot(z.astype(op_dtype), wh_ref[i],
                    preferred_element_type=jnp.float32) + bh_ref[i],
            0.0)
    # Final Linear computed transposed (wf^T @ z^T via A @ B^T dot_general) so
    # the output block (out_feats, B_tile) is lane-dense -> unmasked stores.
    logits_t = jax.lax.dot_general(
        wf_t_ref[...], z.astype(op_dtype),
        dimension_numbers=(((1,), (1,)), ((), ())),
        preferred_element_type=jnp.float32) + bf_t_ref[...]
    out_ref[...] = jax.nn.sigmoid(logits_t)


# ----------------------------------------------------------------------------
# Wrapper
# ----------------------------------------------------------------------------
def tau_rnn_forward(x0, point_seq, point_len, hit_seq, hit_len, params,
                    *, use_bf16=False):
    f32 = jnp.float32
    op_dtype = jnp.bfloat16 if use_bf16 else jnp.float32

    B, in_feats = x0.shape
    T_p, _, Fp = point_seq.shape
    T_h, _, Fh = hit_seq.shape
    pt_wih, pt_whh, pt_b = params["point_rnn"]
    hit_wih, hit_whh, hit_b = params["hit_rnn"]
    H = pt_wih.shape[1]
    H2 = 2 * H
    T_max = max(T_p, T_h)
    F_cat = Fp + Fh

    dense = params["dense"]
    Hd = dense[0][0].shape[1]
    wf, bf = dense[-1]
    out_feats = wf.shape[1]
    n_hidden = len(dense) - 2

    # ---- batch tiling: single tile if B <= 128, else lane-aligned 128 tiles --
    if B <= 128:
        B_tile, B_pad = B, B
    else:
        B_tile, B_pad = 128, ((B + 127) // 128) * 128
    n_tiles = B_pad // B_tile

    def pad_b(a, axis, pad_value=0):
        if B_pad == B:
            return a
        pads = [(0, 0)] * a.ndim
        pads[axis] = (0, B_pad - B)
        return jnp.pad(a, pads, constant_values=pad_value)

    # ---- fused block-diagonal RNN weights (point lanes first, then hit) -----
    wih_blk = (jnp.zeros((F_cat, H2), f32)
               .at[:Fp, :H].set(pt_wih).at[Fp:, H:].set(hit_wih))
    whh_blk = (jnp.zeros((H2, H2), f32)
               .at[:H, :H].set(pt_whh).at[H:, H:].set(hit_whh))
    b_cat = jnp.concatenate([pt_b.reshape(1, H), hit_b.reshape(1, H)], axis=-1)

    # Zero-padded, feature-concatenated sequence (T_max, B_pad, Fp+Fh).
    seq_cat = jnp.zeros((T_max, B_pad, F_cat), f32)
    seq_cat = seq_cat.at[:T_p, :B, :Fp].set(point_seq)
    seq_cat = seq_cat.at[:T_h, :B, Fp:].set(hit_seq)

    # Mirror pack_padded_sequence preconditions (1 <= length <= T).
    # TODO(synk): zero-length rows are clamped to 1; PyTorch would raise instead.
    pt_len = pad_b(jnp.clip(point_len.astype(jnp.int32), 1, T_p).reshape(B, 1), 0, 1)
    hi_len = pad_b(jnp.clip(hit_len.astype(jnp.int32), 1, T_h).reshape(B, 1), 0, 1)
    x0_p = pad_b(x0, 0)

    # ---- dense head parameters ----------------------------------------------
    w0, b0 = dense[0]
    w0x = w0[:in_feats]                    # rows acting on x0
    w0h = w0[in_feats:]                    # rows acting on packed [h_point|h_hit]
    if n_hidden > 0:
        wh = jnp.stack([w for w, _ in dense[1:-1]])                 # (L, Hd, Hd)
        bh = jnp.stack([b.reshape(1, Hd) for _, b in dense[1:-1]])  # (L, 1, Hd)
    else:                                   # guard dense_layers == 1
        wh = jnp.zeros((1, Hd, Hd), f32)
        bh = jnp.zeros((1, 1, Hd), f32)
    wf_t = wf.T                             # (out_feats, Hd)
    bf_t = bf.reshape(out_feats, 1)         # (out_feats, 1)

    # MXU operand dtype (biases / accumulators / elementwise math stay f32).
    x0_p = x0_p.astype(op_dtype)
    seq_cat = seq_cat.astype(op_dtype)
    wih_blk = wih_blk.astype(op_dtype)
    whh_blk = whh_blk.astype(op_dtype)
    w0x = w0x.astype(op_dtype)
    w0h = w0h.astype(op_dtype)
    wh = wh.astype(op_dtype)
    wf_t = wf_t.astype(op_dtype)

    args = (x0_p, seq_cat, pt_len, hi_len, wih_blk, whh_blk, b_cat,
            w0x, w0h, b0.reshape(1, Hd), wh, bh, wf_t, bf_t)

    in_specs = [
        pl.BlockSpec((B_tile, in_feats), lambda i: (i, 0)),
        pl.BlockSpec((T_max, B_tile, F_cat), lambda i: (0, i, 0)),
        pl.BlockSpec((B_tile, 1), lambda i: (i, 0)),
        pl.BlockSpec((B_tile, 1), lambda i: (i, 0)),
        pl.BlockSpec(wih_blk.shape, lambda i: (0, 0)),
        pl.BlockSpec(whh_blk.shape, lambda i: (0, 0)),
        pl.BlockSpec(b_cat.shape, lambda i: (0, 0)),
        pl.BlockSpec(w0x.shape, lambda i: (0, 0)),
        pl.BlockSpec(w0h.shape, lambda i: (0, 0)),
        pl.BlockSpec((1, Hd), lambda i: (0, 0)),
        pl.BlockSpec(wh.shape, lambda i: (0, 0, 0)),
        pl.BlockSpec(bh.shape, lambda i: (0, 0, 0)),
        pl.BlockSpec(wf_t.shape, lambda i: (0, 0)),
        pl.BlockSpec(bf_t.shape, lambda i: (0, 0)),
    ]

    # VMEM budget (double-buffered per-batch-tile inputs + weights + scratch),
    # sized so the limit is safe on v7x's 64 MiB physical VMEM.
    itemsize = 2 if use_bf16 else 4
    est = (2 * (B_tile * in_feats + T_max * B_tile * F_cat) * itemsize
           + 2 * 2 * B_tile * 4
           + (F_cat * H2 + H2 * H2 + in_feats * Hd + H2 * Hd
              + max(n_hidden, 1) * (Hd * Hd + Hd) + Hd * out_feats) * itemsize
           + T_max * B_tile * H2 * 4
           + 2 * out_feats * B_tile * 4)
    vmem_limit = int(min(max(4 * est, 16 * 1024 * 1024), 48 * 1024 * 1024))

    out = pl.pallas_call(
        functools.partial(tau_rnn_kernel, t_max=T_max, n_hidden=n_hidden,
                          rnn_feats=H),
        grid=(n_tiles,),
        out_shape=jax.ShapeDtypeStruct((out_feats, B_pad), f32),
        in_specs=in_specs,
        out_specs=pl.BlockSpec((out_feats, B_tile), lambda i: (0, i)),
        scratch_shapes=[pltpu.VMEM((T_max, B_tile, H2), jnp.float32)],
        compiler_params=pltpu.CompilerParams(
            dimension_semantics=("parallel",),
            vmem_limit_bytes=vmem_limit),
    )(*args)

    # Mirror .squeeze(dim=-1): drop the feature dim only when out_feats == 1.
    if out_feats == 1:
        return out[0, :B]
    return out[:, :B].T


# ----------------------------------------------------------------------------
# Pure-JAX reference (for verification)
# ----------------------------------------------------------------------------
def ref_rnn_last(x_seq_tbf, w_ih, w_hh, bias, lengths):
    T, B, F = x_seq_tbf.shape
    H = w_ih.shape[1]

    def step(h, xt):
        h = jnp.tanh(xt @ w_ih + h @ w_hh + bias)
        return h, h

    _, hs = jax.lax.scan(step, jnp.zeros((B, H), jnp.float32), x_seq_tbf)
    idx = (lengths - 1).astype(jnp.int32)
    return hs[idx, jnp.arange(B), :]


def ref_forward(x0, point_seq, point_len, hit_seq, hit_len, params):
    x_point = ref_rnn_last(point_seq, *params["point_rnn"], point_len)
    x_hit = ref_rnn_last(hit_seq, *params["hit_rnn"], hit_len)
    z = jnp.concatenate([x0, x_point, x_hit], axis=1)
    dp = params["dense"]
    z = z @ dp[0][0] + dp[0][1]
    for w, b in dp[1:-1]:
        z = jnp.maximum(z @ w + b, 0.0)
    z = z @ dp[-1][0] + dp[-1][1]
    return jax.nn.sigmoid(z).squeeze(-1)


# ----------------------------------------------------------------------------
# Deterministic parameter init (synthetic, shapes per module __init__)
# ----------------------------------------------------------------------------
def init_params(key, in_feats, hit_feats, point_feats, rnn_feats,
                hidden_feats, out_feats, dense_layers=5):
    keys = jax.random.split(key, 32)
    k = iter(keys)

    def mat(shape, scale=0.2):
        return jax.random.normal(next(k), shape, jnp.float32) * scale

    def rnn_params(input_size):
        w_ih = mat((input_size, rnn_feats))          # W_ih^T
        w_hh = mat((rnn_feats, rnn_feats))           # W_hh^T
        bias = mat((1, rnn_feats))                   # b_ih + b_hh combined
        return (w_ih, w_hh, bias)

    dense = [(mat((in_feats + 2 * rnn_feats, hidden_feats)),
              mat((1, hidden_feats)))]
    for _ in range(dense_layers - 1):
        dense.append((mat((hidden_feats, hidden_feats)), mat((1, hidden_feats))))
    dense.append((mat((hidden_feats, out_feats)), mat((1, out_feats))))

    return {
        "point_rnn": rnn_params(point_feats),
        "hit_rnn": rnn_params(hit_feats),
        "dense": dense,
    }


if __name__ == "__main__":
    B = 16
    in_feats, hit_feats, point_feats = 16, 8, 8
    rnn_feats, hidden_feats, out_feats = 32, 32, 1
    T_point, T_hit = 8, 10

    key = jax.random.PRNGKey(0)
    k_x0, k_p, k_h, k_lp, k_lh, k_par = jax.random.split(key, 6)

    params = init_params(k_par, in_feats, hit_feats, point_feats,
                         rnn_feats, hidden_feats, out_feats, dense_layers=5)

    x0 = jax.random.normal(k_x0, (B, in_feats), jnp.float32)
    point_seq = jax.random.normal(k_p, (T_point, B, point_feats), jnp.float32)
    hit_seq = jax.random.normal(k_h, (T_hit, B, hit_feats), jnp.float32)
    point_len = jax.random.randint(k_lp, (B,), 1, T_point + 1, jnp.int32)
    hit_len = jax.random.randint(k_lh, (B,), 1, T_hit + 1, jnp.int32)

    ref = jax.block_until_ready(
        ref_forward(x0, point_seq, point_len, hit_seq, hit_len, params))

    # f32 path: exact math check.
    out_f32 = jax.block_until_ready(
        tau_rnn_forward(x0, point_seq, point_len, hit_seq, hit_len, params,
                        use_bf16=False))
    assert out_f32.shape == (B,), out_f32.shape
    assert jnp.allclose(out_f32, ref, atol=1e-3, rtol=1e-3), (out_f32, ref)

    # bf16 MXU-operand path (f32 accumulation / elementwise): looser tolerance.
    out_bf16 = jax.block_until_ready(
        tau_rnn_forward(x0, point_seq, point_len, hit_seq, hit_len, params,
                        use_bf16=True))
    assert out_bf16.shape == (B,), out_bf16.shape
    assert jnp.allclose(out_bf16, ref, atol=2.5e-2, rtol=2.5e-2), (out_bf16, ref)

    # TODO(synk): lstm=True variant (nn.LSTM) not implemented; only the default
    # tanh nn.RNN path of the reference module is reproduced.
    print("KERNEL_OK")
</pallas_src>

<mosaic_0001>
module attributes {stable_mosaic.version = 11 : i64} {
  func.func @tau_rnn_kernel(%arg0: i32, %arg1: memref<16x16xf32, #tpu.memory_space<vmem>>, %arg2: memref<10x16x16xf32, #tpu.memory_space<vmem>>, %arg3: memref<16x1xi32, #tpu.memory_space<vmem>>, %arg4: memref<16x1xi32, #tpu.memory_space<vmem>>, %arg5: memref<16x64xf32, #tpu.memory_space<vmem>>, %arg6: memref<64x64xf32, #tpu.memory_space<vmem>>, %arg7: memref<1x64xf32, #tpu.memory_space<vmem>>, %arg8: memref<16x32xf32, #tpu.memory_space<vmem>>, %arg9: memref<64x32xf32, #tpu.memory_space<vmem>>, %arg10: memref<1x32xf32, #tpu.memory_space<vmem>>, %arg11: memref<4x32x32xf32, #tpu.memory_space<vmem>>, %arg12: memref<4x1x32xf32, #tpu.memory_space<vmem>>, %arg13: memref<1x32xf32, #tpu.memory_space<vmem>>, %arg14: memref<1x1xf32, #tpu.memory_space<vmem>>, %arg15: memref<1x16xf32, #tpu.memory_space<vmem>>, %arg16: memref<10x16x64xf32, #tpu.memory_space<vmem>>) attributes {dimension_semantics = [#tpu.dimension_semantics<parallel>], iteration_bounds = array<i64: 1>, scalar_prefetch = 0 : i64, scratch_operands = 1 : i64, tpu.core_type = #tpu.core_type<tc>, window_params = [{transform_indices = @transform_0, window_bounds = array<i64: 16, 16>}, {transform_indices = @transform_1, window_bounds = array<i64: 10, 16, 16>}, {transform_indices = @transform_2, window_bounds = array<i64: 16, 1>}, {transform_indices = @transform_3, window_bounds = array<i64: 16, 1>}, {pipeline_mode = #tpu.pipeline_mode<synchronous>, transform_indices = @transform_4, window_bounds = array<i64: 16, 64>}, {pipeline_mode = #tpu.pipeline_mode<synchronous>, transform_indices = @transform_5, window_bounds = array<i64: 64, 64>}, {pipeline_mode = #tpu.pipeline_mode<synchronous>, transform_indices = @transform_6, window_bounds = array<i64: 1, 64>}, {pipeline_mode = #tpu.pipeline_mode<synchronous>, transform_indices = @transform_7, window_bounds = array<i64: 16, 32>}, {pipeline_mode = #tpu.pipeline_mode<synchronous>, transform_indices = @transform_8, window_bounds = array<i64: 64, 32>}, {pipeline_mode = #tpu.pipeline_mode<synchronous>, transform_indices = @transform_9, window_bounds = array<i64: 1, 32>}, {pipeline_mode = #tpu.pipeline_mode<synchronous>, transform_indices = @transform_10, window_bounds = array<i64: 4, 32, 32>}, {pipeline_mode = #tpu.pipeline_mode<synchronous>, transform_indices = @transform_11, window_bounds = array<i64: 4, 1, 32>}, {pipeline_mode = #tpu.pipeline_mode<synchronous>, transform_indices = @transform_12, window_bounds = array<i64: 1, 32>}, {pipeline_mode = #tpu.pipeline_mode<synchronous>, transform_indices = @transform_13, window_bounds = array<i64: 1, 1>}, {transform_indices = @transform_14, window_bounds = array<i64: 1, 16>}]} {
    %c0 = arith.constant 0 : index
    %c0_0 = arith.constant 0 : index
    %0 = vector.load %arg5[%c0, %c0_0] : memref<16x64xf32, #tpu.memory_space<vmem>>, vector<16x64xf32>
    %c0_1 = arith.constant 0 : index
    %c0_2 = arith.constant 0 : index
    %1 = vector.load %arg6[%c0_1, %c0_2] : memref<64x64xf32, #tpu.memory_space<vmem>>, vector<64x64xf32>
    %c0_3 = arith.constant 0 : index
    %c0_4 = arith.constant 0 : index
    %2 = vector.load %arg7[%c0_3, %c0_4] : memref<1x64xf32, #tpu.memory_space<vmem>>, vector<1x64xf32>
    %c0_5 = arith.constant 0 : index
    %c0_6 = arith.constant 0 : index
    %c0_7 = arith.constant 0 : index
    %3 = vector.load %arg2[%c0_5, %c0_6, %c0_7] : memref<10x16x16xf32, #tpu.memory_space<vmem>>, vector<1x16x16xf32>
    %4 = vector.shape_cast %3 : vector<1x16x16xf32> to vector<16x16xf32>
    %cst = arith.constant dense<0.000000e+00> : vector<16x64xf32>
    %5 = tpu.matmul %4, %0, %cst {dimension_numbers = #tpu.dot_dimension_numbers<[1], [0], [0], [1], [0, 0, 1, 1], [], []>} : vector<16x16xf32>, vector<16x64xf32>, vector<16x64xf32> -> vector<16x64xf32>
    %6 = vector.broadcast %2 : vector<1x64xf32> to vector<16x64xf32>
    %7 = arith.addf %5, %6 : vector<16x64xf32>
    %c0_8 = arith.constant 0 : index
    %c0_9 = arith.constant 0 : index
    %c0_10 = arith.constant 0 : index
    %8 = vector.load %arg16[%c0_8, %c0_9, %c0_10] : memref<10x16x64xf32, #tpu.memory_space<vmem>>, vector<1x16x64xf32>
    %9 = vector.shape_cast %8 : vector<1x16x64xf32> to vector<16x64xf32>
    %10 = vector.shape_cast %7 : vector<16x64xf32> to vector<1x16x64xf32>
    tpu.vector_store %arg16[%c0_8, %c0_9, %c0_10], %10 {strides = array<i32>} : memref<10x16x64xf32, #tpu.memory_space<vmem>>, vector<1x16x64xf32>,
    %c1 = arith.constant 1 : index
    %c0_11 = arith.constant 0 : index
    %c0_12 = arith.constant 0 : index
    %11 = vector.load %arg2[%c1, %c0_11, %c0_12] : memref<10x16x16xf32, #tpu.memory_space<vmem>>, vector<1x16x16xf32>
    %12 = vector.shape_cast %11 : vector<1x16x16xf32> to vector<16x16xf32>
    %cst_13 = arith.constant dense<0.000000e+00> : vector<16x64xf32>
    %13 = tpu.matmul %12, %0, %cst_13 {dimension_numbers = #tpu.dot_dimension_numbers<[1], [0], [0], [1], [0, 0, 1, 1], [], []>} : vector<16x16xf32>, vector<16x64xf32>, vector<16x64xf32> -> vector<16x64xf32>
    %14 = vector.broadcast %2 : vector<1x64xf32> to vector<16x64xf32>
    %15 = arith.addf %13, %14 : vector<16x64xf32>
    %c1_14 = arith.constant 1 : index
    %c0_15 = arith.constant 0 : index
    %c0_16 = arith.constant 0 : index
    %16 = vector.load %arg16[%c1_14, %c0_15, %c0_16] : memref<10x16x64xf32, #tpu.memory_space<vmem>>, vector<1x16x64xf32>
    %17 = vector.shape_cast %16 : vector<1x16x64xf32> to vector<16x64xf32>
    %18 = vector.shape_cast %15 : vector<16x64xf32> to vector<1x16x64xf32>
    tpu.vector_store %arg16[%c1_14, %c0_15, %c0_16], %18 {strides = array<i32>} : memref<10x16x64xf32, #tpu.memory_space<vmem>>, vector<1x16x64xf32>,
    %c2 = arith.constant 2 : index
    %c0_17 = arith.constant 0 : index
    %c0_18 = arith.constant 0 : index
    %19 = vector.load %arg2[%c2, %c0_17, %c0_18] : memref<10x16x16xf32, #tpu.memory_space<vmem>>, vector<1x16x16xf32>
    %20 = vector.shape_cast %19 : vector<1x16x16xf32> to vector<16x16xf32>
    %cst_19 = arith.constant dense<0.000000e+00> : vector<16x64xf32>
    %21 = tpu.matmul %20, %0, %cst_19 {dimension_numbers = #tpu.dot_dimension_numbers<[1], [0], [0], [1], [0, 0, 1, 1], [], []>} : vector<16x16xf32>, vector<16x64xf32>, vector<16x64xf32> -> vector<16x64xf32>
    %22 = vector.broadcast %2 : vector<1x64xf32> to vector<16x64xf32>
    %23 = arith.addf %21, %22 : vector<16x64xf32>
    %c2_20 = arith.constant 2 : index
    %c0_21 = arith.constant 0 : index
    %c0_22 = arith.constant 0 : index
    %24 = vector.load %arg16[%c2_20, %c0_21, %c0_22] : memref<10x16x64xf32, #tpu.memory_space<vmem>>, vector<1x16x64xf32>
    %25 = vector.shape_cast %24 : vector<1x16x64xf32> to vector<16x64xf32>
    %26 = vector.shape_cast %23 : vector<16x64xf32> to vector<1x16x64xf32>
    tpu.vector_store %arg16[%c2_20, %c0_21, %c0_22], %26 {strides = array<i32>} : memref<10x16x64xf32, #tpu.memory_space<vmem>>, vector<1x16x64xf32>,
    %c3 = arith.constant 3 : index
    %c0_23 = arith.constant 0 : index
    %c0_24 = arith.constant 0 : index
    %27 = vector.load %arg2[%c3, %c0_23, %c0_24] : memref<10x16x16xf32, #tpu.memory_space<vmem>>, vector<1x16x16xf32>
    %28 = vector.shape_cast %27 : vector<1x16x16xf32> to vector<16x16xf32>
    %cst_25 = arith.constant dense<0.000000e+00> : vector<16x64xf32>
    %29 = tpu.matmul %28, %0, %cst_25 {dimension_numbers = #tpu.dot_dimension_numbers<[1], [0], [0], [1], [0, 0, 1, 1], [], []>} : vector<16x16xf32>, vector<16x64xf32>, vector<16x64xf32> -> vector<16x64xf32>
    %30 = vector.broadcast %2 : vector<1x64xf32> to vector<16x64xf32>
    %31 = arith.addf %29, %30 : vector<16x64xf32>
    %c3_26 = arith.constant 3 : index
    %c0_27 = arith.constant 0 : index
    %c0_28 = arith.constant 0 : index
    %32 = vector.load %arg16[%c3_26, %c0_27, %c0_28] : memref<10x16x64xf32, #tpu.memory_space<vmem>>, vector<1x16x64xf32>
    %33 = vector.shape_cast %32 : vector<1x16x64xf32> to vector<16x64xf32>
    %34 = vector.shape_cast %31 : vector<16x64xf32> to vector<1x16x64xf32>
    tpu.vector_store %arg16[%c3_26, %c0_27, %c0_28], %34 {strides = array<i32>} : memref<10x16x64xf32, #tpu.memory_space<vmem>>, vector<1x16x64xf32>,
    %c4 = arith.constant 4 : index
    %c0_29 = arith.constant 0 : index
    %c0_30 = arith.constant 0 : index
    %35 = vector.load %arg2[%c4, %c0_29, %c0_30] : memref<10x16x16xf32, #tpu.memory_space<vmem>>, vector<1x16x16xf32>
    %36 = vector.shape_cast %35 : vector<1x16x16xf32> to vector<16x16xf32>
    %cst_31 = arith.constant dense<0.000000e+00> : vector<16x64xf32>
    %37 = tpu.matmul %36, %0, %cst_31 {dimension_numbers = #tpu.dot_dimension_numbers<[1], [0], [0], [1], [0, 0, 1, 1], [], []>} : vector<16x16xf32>, vector<16x64xf32>, vector<16x64xf32> -> vector<16x64xf32>
    %38 = vector.broadcast %2 : vector<1x64xf32> to vector<16x64xf32>
    %39 = arith.addf %37, %38 : vector<16x64xf32>
    %c4_32 = arith.constant 4 : index
    %c0_33 = arith.constant 0 : index
    %c0_34 = arith.constant 0 : index
    %40 = vector.load %arg16[%c4_32, %c0_33, %c0_34] : memref<10x16x64xf32, #tpu.memory_space<vmem>>, vector<1x16x64xf32>
    %41 = vector.shape_cast %40 : vector<1x16x64xf32> to vector<16x64xf32>
    %42 = vector.shape_cast %39 : vector<16x64xf32> to vector<1x16x64xf32>
    tpu.vector_store %arg16[%c4_32, %c0_33, %c0_34], %42 {strides = array<i32>} : memref<10x16x64xf32, #tpu.memory_space<vmem>>, vector<1x16x64xf32>,
    %c5 = arith.constant 5 : index
    %c0_35 = arith.constant 0 : index
    %c0_36 = arith.constant 0 : index
    %43 = vector.load %arg2[%c5, %c0_35, %c0_36] : memref<10x16x16xf32, #tpu.memory_space<vmem>>, vector<1x16x16xf32>
    %44 = vector.shape_cast %43 : vector<1x16x16xf32> to vector<16x16xf32>
    %cst_37 = arith.constant dense<0.000000e+00> : vector<16x64xf32>
    %45 = tpu.matmul %44, %0, %cst_37 {dimension_numbers = #tpu.dot_dimension_numbers<[1], [0], [0], [1], [0, 0, 1, 1], [], []>} : vector<16x16xf32>, vector<16x64xf32>, vector<16x64xf32> -> vector<16x64xf32>
    %46 = vector.broadcast %2 : vector<1x64xf32> to vector<16x64xf32>
    %47 = arith.addf %45, %46 : vector<16x64xf32>
    %c5_38 = arith.constant 5 : index
    %c0_39 = arith.constant 0 : index
    %c0_40 = arith.constant 0 : index
    %48 = vector.load %arg16[%c5_38, %c0_39, %c0_40] : memref<10x16x64xf32, #tpu.memory_space<vmem>>, vector<1x16x64xf32>
    %49 = vector.shape_cast %48 : vector<1x16x64xf32> to vector<16x64xf32>
    %50 = vector.shape_cast %47 : vector<16x64xf32> to vector<1x16x64xf32>
    tpu.vector_store %arg16[%c5_38, %c0_39, %c0_40], %50 {strides = array<i32>} : memref<10x16x64xf32, #tpu.memory_space<vmem>>, vector<1x16x64xf32>,
    %c6 = arith.constant 6 : index
    %c0_41 = arith.constant 0 : index
    %c0_42 = arith.constant 0 : index
    %51 = vector.load %arg2[%c6, %c0_41, %c0_42] : memref<10x16x16xf32, #tpu.memory_space<vmem>>, vector<1x16x16xf32>
    %52 = vector.shape_cast %51 : vector<1x16x16xf32> to vector<16x16xf32>
    %cst_43 = arith.constant dense<0.000000e+00> : vector<16x64xf32>
    %53 = tpu.matmul %52, %0, %cst_43 {dimension_numbers = #tpu.dot_dimension_numbers<[1], [0], [0], [1], [0, 0, 1, 1], [], []>} : vector<16x16xf32>, vector<16x64xf32>, vector<16x64xf32> -> vector<16x64xf32>
    %54 = vector.broadcast %2 : vector<1x64xf32> to vector<16x64xf32>
    %55 = arith.addf %53, %54 : vector<16x64xf32>
    %c6_44 = arith.constant 6 : index
    %c0_45 = arith.constant 0 : index
    %c0_46 = arith.constant 0 : index
    %56 = vector.load %arg16[%c6_44, %c0_45, %c0_46] : memref<10x16x64xf32, #tpu.memory_space<vmem>>, vector<1x16x64xf32>
    %57 = vector.shape_cast %56 : vector<1x16x64xf32> to vector<16x64xf32>
    %58 = vector.shape_cast %55 : vector<16x64xf32> to vector<1x16x64xf32>
    tpu.vector_store %arg16[%c6_44, %c0_45, %c0_46], %58 {strides = array<i32>} : memref<10x16x64xf32, #tpu.memory_space<vmem>>, vector<1x16x64xf32>,
    %c7 = arith.constant 7 : index
    %c0_47 = arith.constant 0 : index
    %c0_48 = arith.constant 0 : index
    %59 = vector.load %arg2[%c7, %c0_47, %c0_48] : memref<10x16x16xf32, #tpu.memory_space<vmem>>, vector<1x16x16xf32>
    %60 = vector.shape_cast %59 : vector<1x16x16xf32> to vector<16x16xf32>
    %cst_49 = arith.constant dense<0.000000e+00> : vector<16x64xf32>
    %61 = tpu.matmul %60, %0, %cst_49 {dimension_numbers = #tpu.dot_dimension_numbers<[1], [0], [0], [1], [0, 0, 1, 1], [], []>} : vector<16x16xf32>, vector<16x64xf32>, vector<16x64xf32> -> vector<16x64xf32>
    %62 = vector.broadcast %2 : vector<1x64xf32> to vector<16x64xf32>
    %63 = arith.addf %61, %62 : vector<16x64xf32>
    %c7_50 = arith.constant 7 : index
    %c0_51 = arith.constant 0 : index
    %c0_52 = arith.constant 0 : index
    %64 = vector.load %arg16[%c7_50, %c0_51, %c0_52] : memref<10x16x64xf32, #tpu.memory_space<vmem>>, vector<1x16x64xf32>
    %65 = vector.shape_cast %64 : vector<1x16x64xf32> to vector<16x64xf32>
    %66 = vector.shape_cast %63 : vector<16x64xf32> to vector<1x16x64xf32>
    tpu.vector_store %arg16[%c7_50, %c0_51, %c0_52], %66 {strides = array<i32>} : memref<10x16x64xf32, #tpu.memory_space<vmem>>, vector<1x16x64xf32>,
    %c8 = arith.constant 8 : index
    %c0_53 = arith.constant 0 : index
    %c0_54 = arith.constant 0 : index
    %67 = vector.load %arg2[%c8, %c0_53, %c0_54] : memref<10x16x16xf32, #tpu.memory_space<vmem>>, vector<1x16x16xf32>
    %68 = vector.shape_cast %67 : vector<1x16x16xf32> to vector<16x16xf32>
    %cst_55 = arith.constant dense<0.000000e+00> : vector<16x64xf32>
    %69 = tpu.matmul %68, %0, %cst_55 {dimension_numbers = #tpu.dot_dimension_numbers<[1], [0], [0], [1], [0, 0, 1, 1], [], []>} : vector<16x16xf32>, vector<16x64xf32>, vector<16x64xf32> -> vector<16x64xf32>
    %70 = vector.broadcast %2 : vector<1x64xf32> to vector<16x64xf32>
    %71 = arith.addf %69, %70 : vector<16x64xf32>
    %c8_56 = arith.constant 8 : index
    %c0_57 = arith.constant 0 : index
    %c0_58 = arith.constant 0 : index
    %72 = vector.load %arg16[%c8_56, %c0_57, %c0_58] : memref<10x16x64xf32, #tpu.memory_space<vmem>>, vector<1x16x64xf32>
    %73 = vector.shape_cast %72 : vector<1x16x64xf32> to vector<16x64xf32>
    %74 = vector.shape_cast %71 : vector<16x64xf32> to vector<1x16x64xf32>
    tpu.vector_store %arg16[%c8_56, %c0_57, %c0_58], %74 {strides = array<i32>} : memref<10x16x64xf32, #tpu.memory_space<vmem>>, vector<1x16x64xf32>,
    %c9 = arith.constant 9 : index
    %c0_59 = arith.constant 0 : index
    %c0_60 = arith.constant 0 : index
    %75 = vector.load %arg2[%c9, %c0_59, %c0_60] : memref<10x16x16xf32, #tpu.memory_space<vmem>>, vector<1x16x16xf32>
    %76 = vector.shape_cast %75 : vector<1x16x16xf32> to vector<16x16xf32>
    %cst_61 = arith.constant dense<0.000000e+00> : vector<16x64xf32>
    %77 = tpu.matmul %76, %0, %cst_61 {dimension_numbers = #tpu.dot_dimension_numbers<[1], [0], [0], [1], [0, 0, 1, 1], [], []>} : vector<16x16xf32>, vector<16x64xf32>, vector<16x64xf32> -> vector<16x64xf32>
    %78 = vector.broadcast %2 : vector<1x64xf32> to vector<16x64xf32>
    %79 = arith.addf %77, %78 : vector<16x64xf32>
    %c9_62 = arith.constant 9 : index
    %c0_63 = arith.constant 0 : index
    %c0_64 = arith.constant 0 : index
    %80 = vector.load %arg16[%c9_62, %c0_63, %c0_64] : memref<10x16x64xf32, #tpu.memory_space<vmem>>, vector<1x16x64xf32>
    %81 = vector.shape_cast %80 : vector<1x16x64xf32> to vector<16x64xf32>
    %82 = vector.shape_cast %79 : vector<16x64xf32> to vector<1x16x64xf32>
    tpu.vector_store %arg16[%c9_62, %c0_63, %c0_64], %82 {strides = array<i32>} : memref<10x16x64xf32, #tpu.memory_space<vmem>>, vector<1x16x64xf32>,
    %83 = tpu.iota {dimensions = array<i32: 1>} : vector<1x64xi32>
    %c32_i32 = arith.constant 32 : i32
    %84 = vector.broadcast %c32_i32 : i32 to vector<1x64xi32>
    %85 = arith.cmpi slt, %83, %84 : vector<1x64xi32>
    %c0_65 = arith.constant 0 : index
    %c0_66 = arith.constant 0 : index
    %86 = vector.load %arg3[%c0_65, %c0_66] : memref<16x1xi32, #tpu.memory_space<vmem>>, vector<16x1xi32>
    %c1_i32 = arith.constant 1 : i32
    %87 = vector.broadcast %c1_i32 : i32 to vector<16x1xi32>
    %88 = arith.subi %86, %87 : vector<16x1xi32>
    %c0_67 = arith.constant 0 : index
    %c0_68 = arith.constant 0 : index
    %89 = vector.load %arg4[%c0_67, %c0_68] : memref<16x1xi32, #tpu.memory_space<vmem>>, vector<16x1xi32>
    %c1_i32_69 = arith.constant 1 : i32
    %90 = vector.broadcast %c1_i32_69 : i32 to vector<16x1xi32>
    %91 = arith.subi %89, %90 : vector<16x1xi32>
    %92 = vector.shape_cast %85 : vector<1x64xi1> to vector<1x64xi1>
    %93 = vector.broadcast %92 : vector<1x64xi1> to vector<16x64xi1>
    %94 = vector.shape_cast %88 : vector<16x1xi32> to vector<16x1xi32>
    %95 = vector.broadcast %94 : vector<16x1xi32> to vector<16x64xi32>
    %96 = vector.shape_cast %91 : vector<16x1xi32> to vector<16x1xi32>
    %97 = vector.broadcast %96 : vector<16x1xi32> to vector<16x64xi32>
    %98 = arith.select %93, %95, %97 : vector<16x64xi1>, vector<16x64xi32>
    %c0_70 = arith.constant 0 : index
    %c0_71 = arith.constant 0 : index
    %c0_72 = arith.constant 0 : index
    %99 = vector.load %arg16[%c0_70, %c0_71, %c0_72] : memref<10x16x64xf32, #tpu.memory_space<vmem>>, vector<1x16x64xf32>
    %100 = vector.shape_cast %99 : vector<1x16x64xf32> to vector<16x64xf32>
    %101 = math.tanh %100 : vector<16x64xf32>
    %c0_i32 = arith.constant 0 : i32
    %102 = vector.broadcast %c0_i32 : i32 to vector<16x64xi32>
    %103 = arith.cmpi eq, %98, %102 : vector<16x64xi32>
    %cst_73 = arith.constant 0.000000e+00 : f32
    %104 = vector.broadcast %cst_73 : f32 to vector<16x64xf32>
    %105 = arith.select %103, %101, %104 : vector<16x64xi1>, vector<16x64xf32>
    %cst_74 = arith.constant dense<0.000000e+00> : vector<16x64xf32>
    %106 = tpu.matmul %101, %1, %cst_74 {dimension_numbers = #tpu.dot_dimension_numbers<[1], [0], [0], [1], [0, 0, 1, 1], [], []>} : vector<16x64xf32>, vector<64x64xf32>, vector<16x64xf32> -> vector<16x64xf32>
    %c1_75 = arith.constant 1 : index
    %c0_76 = arith.constant 0 : index
    %c0_77 = arith.constant 0 : index
    %107 = vector.load %arg16[%c1_75, %c0_76, %c0_77] : memref<10x16x64xf32, #tpu.memory_space<vmem>>, vector<1x16x64xf32>
    %108 = vector.shape_cast %107 : vector<1x16x64xf32> to vector<16x64xf32>
    %109 = arith.addf %108, %106 : vector<16x64xf32>
    %110 = math.tanh %109 : vector<16x64xf32>
    %c1_i32_78 = arith.constant 1 : i32
    %111 = vector.broadcast %c1_i32_78 : i32 to vector<16x64xi32>
    %112 = arith.cmpi eq, %98, %111 : vector<16x64xi32>
    %113 = arith.select %112, %110, %105 : vector<16x64xi1>, vector<16x64xf32>
    %cst_79 = arith.constant dense<0.000000e+00> : vector<16x64xf32>
    %114 = tpu.matmul %110, %1, %cst_79 {dimension_numbers = #tpu.dot_dimension_numbers<[1], [0], [0], [1], [0, 0, 1, 1], [], []>} : vector<16x64xf32>, vector<64x64xf32>, vector<16x64xf32> -> vector<16x64xf32>
    %c2_80 = arith.constant 2 : index
    %c0_81 = arith.constant 0 : index
    %c0_82 = arith.constant 0 : index
    %115 = vector.load %arg16[%c2_80, %c0_81, %c0_82] : memref<10x16x64xf32, #tpu.memory_space<vmem>>, vector<1x16x64xf32>
    %116 = vector.shape_cast %115 : vector<1x16x64xf32> to vector<16x64xf32>
    %117 = arith.addf %116, %114 : vector<16x64xf32>
    %118 = math.tanh %117 : vector<16x64xf32>
    %c2_i32 = arith.constant 2 : i32
    %119 = vector.broadcast %c2_i32 : i32 to vector<16x64xi32>
    %120 = arith.cmpi eq, %98, %119 : vector<16x64xi32>
    %121 = arith.select %120, %118, %113 : vector<16x64xi1>, vector<16x64xf32>
    %cst_83 = arith.constant dense<0.000000e+00> : vector<16x64xf32>
    %122 = tpu.matmul %118, %1, %cst_83 {dimension_numbers = #tpu.dot_dimension_numbers<[1], [0], [0], [1], [0, 0, 1, 1], [], []>} : vector<16x64xf32>, vector<64x64xf32>, vector<16x64xf32> -> vector<16x64xf32>
    %c3_84 = arith.constant 3 : index
    %c0_85 = arith.constant 0 : index
    %c0_86 = arith.constant 0 : index
    %123 = vector.load %arg16[%c3_84, %c0_85, %c0_86] : memref<10x16x64xf32, #tpu.memory_space<vmem>>, vector<1x16x64xf32>
    %124 = vector.shape_cast %123 : vector<1x16x64xf32> to vector<16x64xf32>
    %125 = arith.addf %124, %122 : vector<16x64xf32>
    %126 = math.tanh %125 : vector<16x64xf32>
    %c3_i32 = arith.constant 3 : i32
    %127 = vector.broadcast %c3_i32 : i32 to vector<16x64xi32>
    %128 = arith.cmpi eq, %98, %127 : vector<16x64xi32>
    %129 = arith.select %128, %126, %121 : vector<16x64xi1>, vector<16x64xf32>
    %cst_87 = arith.constant dense<0.000000e+00> : vector<16x64xf32>
    %130 = tpu.matmul %126, %1, %cst_87 {dimension_numbers = #tpu.dot_dimension_numbers<[1], [0], [0], [1], [0, 0, 1, 1], [], []>} : vector<16x64xf32>, vector<64x64xf32>, vector<16x64xf32> -> vector<16x64xf32>
    %c4_88 = arith.constant 4 : index
    %c0_89 = arith.constant 0 : index
    %c0_90 = arith.constant 0 : index
    %131 = vector.load %arg16[%c4_88, %c0_89, %c0_90] : memref<10x16x64xf32, #tpu.memory_space<vmem>>, vector<1x16x64xf32>
    %132 = vector.shape_cast %131 : vector<1x16x64xf32> to vector<16x64xf32>
    %133 = arith.addf %132, %130 : vector<16x64xf32>
    %134 = math.tanh %133 : vector<16x64xf32>
    %c4_i32 = arith.constant 4 : i32
    %135 = vector.broadcast %c4_i32 : i32 to vector<16x64xi32>
    %136 = arith.cmpi eq, %98, %135 : vector<16x64xi32>
    %137 = arith.select %136, %134, %129 : vector<16x64xi1>, vector<16x64xf32>
    %cst_91 = arith.constant dense<0.000000e+00> : vector<16x64xf32>
    %138 = tpu.matmul %134, %1, %cst_91 {dimension_numbers = #tpu.dot_dimension_numbers<[1], [0], [0], [1], [0, 0, 1, 1], [], []>} : vector<16x64xf32>, vector<64x64xf32>, vector<16x64xf32> -> vector<16x64xf32>
    %c5_92 = arith.constant 5 : index
    %c0_93 = arith.constant 0 : index
    %c0_94 = arith.constant 0 : index
    %139 = vector.load %arg16[%c5_92, %c0_93, %c0_94] : memref<10x16x64xf32, #tpu.memory_space<vmem>>, vector<1x16x64xf32>
    %140 = vector.shape_cast %139 : vector<1x16x64xf32> to vector<16x64xf32>
    %141 = arith.addf %140, %138 : vector<16x64xf32>
    %142 = math.tanh %141 : vector<16x64xf32>
    %c5_i32 = arith.constant 5 : i32
    %143 = vector.broadcast %c5_i32 : i32 to vector<16x64xi32>
    %144 = arith.cmpi eq, %98, %143 : vector<16x64xi32>
    %145 = arith.select %144, %142, %137 : vector<16x64xi1>, vector<16x64xf32>
    %cst_95 = arith.constant dense<0.000000e+00> : vector<16x64xf32>
    %146 = tpu.matmul %142, %1, %cst_95 {dimension_numbers = #tpu.dot_dimension_numbers<[1], [0], [0], [1], [0, 0, 1, 1], [], []>} : vector<16x64xf32>, vector<64x64xf32>, vector<16x64xf32> -> vector<16x64xf32>
    %c6_96 = arith.constant 6 : index
    %c0_97 = arith.constant 0 : index
    %c0_98 = arith.constant 0 : index
    %147 = vector.load %arg16[%c6_96, %c0_97, %c0_98] : memref<10x16x64xf32, #tpu.memory_space<vmem>>, vector<1x16x64xf32>
    %148 = vector.shape_cast %147 : vector<1x16x64xf32> to vector<16x64xf32>
    %149 = arith.addf %148, %146 : vector<16x64xf32>
    %150 = math.tanh %149 : vector<16x64xf32>
    %c6_i32 = arith.constant 6 : i32
    %151 = vector.broadcast %c6_i32 : i32 to vector<16x64xi32>
    %152 = arith.cmpi eq, %98, %151 : vector<16x64xi32>
    %153 = arith.select %152, %150, %145 : vector<16x64xi1>, vector<16x64xf32>
    %cst_99 = arith.constant dense<0.000000e+00> : vector<16x64xf32>
    %154 = tpu.matmul %150, %1, %cst_99 {dimension_numbers = #tpu.dot_dimension_numbers<[1], [0], [0], [1], [0, 0, 1, 1], [], []>} : vector<16x64xf32>, vector<64x64xf32>, vector<16x64xf32> -> vector<16x64xf32>
    %c7_100 = arith.constant 7 : index
    %c0_101 = arith.constant 0 : index
    %c0_102 = arith.constant 0 : index
    %155 = vector.load %arg16[%c7_100, %c0_101, %c0_102] : memref<10x16x64xf32, #tpu.memory_space<vmem>>, vector<1x16x64xf32>
    %156 = vector.shape_cast %155 : vector<1x16x64xf32> to vector<16x64xf32>
    %157 = arith.addf %156, %154 : vector<16x64xf32>
    %158 = math.tanh %157 : vector<16x64xf32>
    %c7_i32 = arith.constant 7 : i32
    %159 = vector.broadcast %c7_i32 : i32 to vector<16x64xi32>
    %160 = arith.cmpi eq, %98, %159 : vector<16x64xi32>
    %161 = arith.select %160, %158, %153 : vector<16x64xi1>, vector<16x64xf32>
    %cst_103 = arith.constant dense<0.000000e+00> : vector<16x64xf32>
    %162 = tpu.matmul %158, %1, %cst_103 {dimension_numbers = #tpu.dot_dimension_numbers<[1], [0], [0], [1], [0, 0, 1, 1], [], []>} : vector<16x64xf32>, vector<64x64xf32>, vector<16x64xf32> -> vector<16x64xf32>
    %c8_104 = arith.constant 8 : index
    %c0_105 = arith.constant 0 : index
    %c0_106 = arith.constant 0 : index
    %163 = vector.load %arg16[%c8_104, %c0_105, %c0_106] : memref<10x16x64xf32, #tpu.memory_space<vmem>>, vector<1x16x64xf32>
    %164 = vector.shape_cast %163 : vector<1x16x64xf32> to vector<16x64xf32>
    %165 = arith.addf %164, %162 : vector<16x64xf32>
    %166 = math.tanh %165 : vector<16x64xf32>
    %c8_i32 = arith.constant 8 : i32
    %167 = vector.broadcast %c8_i32 : i32 to vector<16x64xi32>
    %168 = arith.cmpi eq, %98, %167 : vector<16x64xi32>
    %169 = arith.select %168, %166, %161 : vector<16x64xi1>, vector<16x64xf32>
    %cst_107 = arith.constant dense<0.000000e+00> : vector<16x64xf32>
    %170 = tpu.matmul %166, %1, %cst_107 {dimension_numbers = #tpu.dot_dimension_numbers<[1], [0], [0], [1], [0, 0, 1, 1], [], []>} : vector<16x64xf32>, vector<64x64xf32>, vector<16x64xf32> -> vector<16x64xf32>
    %c9_108 = arith.constant 9 : index
    %c0_109 = arith.constant 0 : index
    %c0_110 = arith.constant 0 : index
    %171 = vector.load %arg16[%c9_108, %c0_109, %c0_110] : memref<10x16x64xf32, #tpu.memory_space<vmem>>, vector<1x16x64xf32>
    %172 = vector.shape_cast %171 : vector<1x16x64xf32> to vector<16x64xf32>
    %173 = arith.addf %172, %170 : vector<16x64xf32>
    %174 = math.tanh %173 : vector<16x64xf32>
    %c9_i32 = arith.constant 9 : i32
    %175 = vector.broadcast %c9_i32 : i32 to vector<16x64xi32>
    %176 = arith.cmpi eq, %98, %175 : vector<16x64xi32>
    %177 = arith.select %176, %174, %169 : vector<16x64xi1>, vector<16x64xf32>
    %c0_111 = arith.constant 0 : index
    %c0_112 = arith.constant 0 : index
    %178 = vector.load %arg1[%c0_111, %c0_112] : memref<16x16xf32, #tpu.memory_space<vmem>>, vector<16x16xf32>
    %c0_113 = arith.constant 0 : index
    %c0_114 = arith.constant 0 : index
    %179 = vector.load %arg8[%c0_113, %c0_114] : memref<16x32xf32, #tpu.memory_space<vmem>>, vector<16x32xf32>
    %cst_115 = arith.constant dense<0.000000e+00> : vector<16x32xf32>
    %180 = tpu.matmul %178, %179, %cst_115 {dimension_numbers = #tpu.dot_dimension_numbers<[1], [0], [0], [1], [0, 0, 1, 1], [], []>} : vector<16x16xf32>, vector<16x32xf32>, vector<16x32xf32> -> vector<16x32xf32>
    %c0_116 = arith.constant 0 : index
    %c0_117 = arith.constant 0 : index
    %181 = vector.load %arg9[%c0_116, %c0_117] : memref<64x32xf32, #tpu.memory_space<vmem>>, vector<64x32xf32>
    %cst_118 = arith.constant dense<0.000000e+00> : vector<16x32xf32>
    %182 = tpu.matmul %177, %181, %cst_118 {dimension_numbers = #tpu.dot_dimension_numbers<[1], [0], [0], [1], [0, 0, 1, 1], [], []>} : vector<16x64xf32>, vector<64x32xf32>, vector<16x32xf32> -> vector<16x32xf32>
    %183 = arith.addf %180, %182 : vector<16x32xf32>
    %c0_119 = arith.constant 0 : index
    %c0_120 = arith.constant 0 : index
    %184 = vector.load %arg10[%c0_119, %c0_120] : memref<1x32xf32, #tpu.memory_space<vmem>>, vector<1x32xf32>
    %185 = vector.broadcast %184 : vector<1x32xf32> to vector<16x32xf32>
    %186 = arith.addf %183, %185 : vector<16x32xf32>
    %c0_121 = arith.constant 0 : index
    %c0_122 = arith.constant 0 : index
    %c0_123 = arith.constant 0 : index
    %187 = vector.load %arg11[%c0_121, %c0_122, %c0_123] : memref<4x32x32xf32, #tpu.memory_space<vmem>>, vector<1x32x32xf32>
    %188 = vector.shape_cast %187 : vector<1x32x32xf32> to vector<32x32xf32>
    %cst_124 = arith.constant dense<0.000000e+00> : vector<16x32xf32>
    %189 = tpu.matmul %186, %188, %cst_124 {dimension_numbers = #tpu.dot_dimension_numbers<[1], [0], [0], [1], [0, 0, 1, 1], [], []>} : vector<16x32xf32>, vector<32x32xf32>, vector<16x32xf32> -> vector<16x32xf32>
    %c0_125 = arith.constant 0 : index
    %c0_126 = arith.constant 0 : index
    %c0_127 = arith.constant 0 : index
    %190 = vector.load %arg12[%c0_125, %c0_126, %c0_127] : memref<4x1x32xf32, #tpu.memory_space<vmem>>, vector<1x1x32xf32>
    %191 = vector.shape_cast %190 : vector<1x1x32xf32> to vector<1x32xf32>
    %192 = vector.broadcast %191 : vector<1x32xf32> to vector<16x32xf32>
    %193 = arith.addf %189, %192 : vector<16x32xf32>
    %cst_128 = arith.constant 0.000000e+00 : f32
    %194 = vector.broadcast %cst_128 : f32 to vector<16x32xf32>
    %195 = arith.maximumf %193, %194 : vector<16x32xf32>
    %c1_129 = arith.constant 1 : index
    %c0_130 = arith.constant 0 : index
    %c0_131 = arith.constant 0 : index
    %196 = vector.load %arg11[%c1_129, %c0_130, %c0_131] : memref<4x32x32xf32, #tpu.memory_space<vmem>>, vector<1x32x32xf32>
    %197 = vector.shape_cast %196 : vector<1x32x32xf32> to vector<32x32xf32>
    %cst_132 = arith.constant dense<0.000000e+00> : vector<16x32xf32>
    %198 = tpu.matmul %195, %197, %cst_132 {dimension_numbers = #tpu.dot_dimension_numbers<[1], [0], [0], [1], [0, 0, 1, 1], [], []>} : vector<16x32xf32>, vector<32x32xf32>, vector<16x32xf32> -> vector<16x32xf32>
    %c1_133 = arith.constant 1 : index
    %c0_134 = arith.constant 0 : index
    %c0_135 = arith.constant 0 : index
    %199 = vector.load %arg12[%c1_133, %c0_134, %c0_135] : memref<4x1x32xf32, #tpu.memory_space<vmem>>, vector<1x1x32xf32>
    %200 = vector.shape_cast %199 : vector<1x1x32xf32> to vector<1x32xf32>
    %201 = vector.broadcast %200 : vector<1x32xf32> to vector<16x32xf32>
    %202 = arith.addf %198, %201 : vector<16x32xf32>
    %cst_136 = arith.constant 0.000000e+00 : f32
    %203 = vector.broadcast %cst_136 : f32 to vector<16x32xf32>
    %204 = arith.maximumf %202, %203 : vector<16x32xf32>
    %c2_137 = arith.constant 2 : index
    %c0_138 = arith.constant 0 : index
    %c0_139 = arith.constant 0 : index
    %205 = vector.load %arg11[%c2_137, %c0_138, %c0_139] : memref<4x32x32xf32, #tpu.memory_space<vmem>>, vector<1x32x32xf32>
    %206 = vector.shape_cast %205 : vector<1x32x32xf32> to vector<32x32xf32>
    %cst_140 = arith.constant dense<0.000000e+00> : vector<16x32xf32>
    %207 = tpu.matmul %204, %206, %cst_140 {dimension_numbers = #tpu.dot_dimension_numbers<[1], [0], [0], [1], [0, 0, 1, 1], [], []>} : vector<16x32xf32>, vector<32x32xf32>, vector<16x32xf32> -> vector<16x32xf32>
    %c2_141 = arith.constant 2 : index
    %c0_142 = arith.constant 0 : index
    %c0_143 = arith.constant 0 : index
    %208 = vector.load %arg12[%c2_141, %c0_142, %c0_143] : memref<4x1x32xf32, #tpu.memory_space<vmem>>, vector<1x1x32xf32>
    %209 = vector.shape_cast %208 : vector<1x1x32xf32> to vector<1x32xf32>
    %210 = vector.broadcast %209 : vector<1x32xf32> to vector<16x32xf32>
    %211 = arith.addf %207, %210 : vector<16x32xf32>
    %cst_144 = arith.constant 0.000000e+00 : f32
    %212 = vector.broadcast %cst_144 : f32 to vector<16x32xf32>
    %213 = arith.maximumf %211, %212 : vector<16x32xf32>
    %c3_145 = arith.constant 3 : index
    %c0_146 = arith.constant 0 : index
    %c0_147 = arith.constant 0 : index
    %214 = vector.load %arg11[%c3_145, %c0_146, %c0_147] : memref<4x32x32xf32, #tpu.memory_space<vmem>>, vector<1x32x32xf32>
    %215 = vector.shape_cast %214 : vector<1x32x32xf32> to vector<32x32xf32>
    %cst_148 = arith.constant dense<0.000000e+00> : vector<16x32xf32>
    %216 = tpu.matmul %213, %215, %cst_148 {dimension_numbers = #tpu.dot_dimension_numbers<[1], [0], [0], [1], [0, 0, 1, 1], [], []>} : vector<16x32xf32>, vector<32x32xf32>, vector<16x32xf32> -> vector<16x32xf32>
    %c3_149 = arith.constant 3 : index
    %c0_150 = arith.constant 0 : index
    %c0_151 = arith.constant 0 : index
    %217 = vector.load %arg12[%c3_149, %c0_150, %c0_151] : memref<4x1x32xf32, #tpu.memory_space<vmem>>, vector<1x1x32xf32>
    %218 = vector.shape_cast %217 : vector<1x1x32xf32> to vector<1x32xf32>
    %219 = vector.broadcast %218 : vector<1x32xf32> to vector<16x32xf32>
    %220 = arith.addf %216, %219 : vector<16x32xf32>
    %cst_152 = arith.constant 0.000000e+00 : f32
    %221 = vector.broadcast %cst_152 : f32 to vector<16x32xf32>
    %222 = arith.maximumf %220, %221 : vector<16x32xf32>
    %c0_153 = arith.constant 0 : index
    %c0_154 = arith.constant 0 : index
    %223 = vector.load %arg13[%c0_153, %c0_154] : memref<1x32xf32, #tpu.memory_space<vmem>>, vector<1x32xf32>
    %cst_155 = arith.constant dense<0.000000e+00> : vector<1x16xf32>
    %224 = tpu.matmul %223, %222, %cst_155 {dimension_numbers = #tpu.dot_dimension_numbers<[1], [1], [0], [0], [0, 0, 1, 0], [], []>} : vector<1x32xf32>, vector<16x32xf32>, vector<1x16xf32> -> vector<1x16xf32>
    %c0_156 = arith.constant 0 : index
    %c0_157 = arith.constant 0 : index
    %225 = vector.load %arg14[%c0_156, %c0_157] : memref<1x1xf32, #tpu.memory_space<vmem>>, vector<1x1xf32>
    %226 = vector.broadcast %225 : vector<1x1xf32> to vector<1x16xf32>
    %227 = arith.addf %224, %226 : vector<1x16xf32>
    %228 = arith.negf %227 : vector<1x16xf32>
    %229 = math.exp %228 : vector<1x16xf32>
    %cst_158 = arith.constant 1.000000e+00 : f32
    %230 = vector.broadcast %cst_158 : f32 to vector<1x16xf32>
    %231 = arith.addf %230, %229 : vector<1x16xf32>
    %232 = arith.divf %230, %231 : vector<1x16xf32>
    %c0_159 = arith.constant 0 : index
    %c0_160 = arith.constant 0 : index
    %233 = vector.load %arg15[%c0_159, %c0_160] : memref<1x16xf32, #tpu.memory_space<vmem>>, vector<1x16xf32>
    tpu.vector_store %arg15[%c0_159, %c0_160], %232 {strides = array<i32>} : memref<1x16xf32, #tpu.memory_space<vmem>>, vector<1x16xf32>,
    return
  }
  func.func @transform_0(%arg0: i32) -> (i32, i32) {
    %c0_i32 = arith.constant 0 : i32
    %c0_i32_0 = arith.constant 0 : i32
    return %arg0, %c0_i32 : i32, i32
  }
  func.func @transform_1(%arg0: i32) -> (i32, i32, i32) {
    %c0_i32 = arith.constant 0 : i32
    %c0_i32_0 = arith.constant 0 : i32
    %c0_i32_1 = arith.constant 0 : i32
    return %c0_i32, %arg0, %c0_i32_0 : i32, i32, i32
  }
  func.func @transform_2(%arg0: i32) -> (i32, i32) {
    %c0_i32 = arith.constant 0 : i32
    %c0_i32_0 = arith.constant 0 : i32
    return %arg0, %c0_i32 : i32, i32
  }
  func.func @transform_3(%arg0: i32) -> (i32, i32) {
    %c0_i32 = arith.constant 0 : i32
    %c0_i32_0 = arith.constant 0 : i32
    return %arg0, %c0_i32 : i32, i32
  }
  func.func @transform_4(%arg0: i32) -> (i32, i32) {
    %c0_i32 = arith.constant 0 : i32
    %c0_i32_0 = arith.constant 0 : i32
    %c0_i32_1 = arith.constant 0 : i32
    return %c0_i32, %c0_i32_0 : i32, i32
  }
  func.func @transform_5(%arg0: i32) -> (i32, i32) {
    %c0_i32 = arith.constant 0 : i32
    %c0_i32_0 = arith.constant 0 : i32
    %c0_i32_1 = arith.constant 0 : i32
    return %c0_i32, %c0_i32_0 : i32, i32
  }
  func.func @transform_6(%arg0: i32) -> (i32, i32) {
    %c0_i32 = arith.constant 0 : i32
    %c0_i32_0 = arith.constant 0 : i32
    %c0_i32_1 = arith.constant 0 : i32
    return %c0_i32, %c0_i32_0 : i32, i32
  }
  func.func @transform_7(%arg0: i32) -> (i32, i32) {
    %c0_i32 = arith.constant 0 : i32
    %c0_i32_0 = arith.constant 0 : i32
    %c0_i32_1 = arith.constant 0 : i32
    return %c0_i32, %c0_i32_0 : i32, i32
  }
  func.func @transform_8(%arg0: i32) -> (i32, i32) {
    %c0_i32 = arith.constant 0 : i32
    %c0_i32_0 = arith.constant 0 : i32
    %c0_i32_1 = arith.constant 0 : i32
    return %c0_i32, %c0_i32_0 : i32, i32
  }
  func.func @transform_9(%arg0: i32) -> (i32, i32) {
    %c0_i32 = arith.constant 0 : i32
    %c0_i32_0 = arith.constant 0 : i32
    %c0_i32_1 = arith.constant 0 : i32
    return %c0_i32, %c0_i32_0 : i32, i32
  }
  func.func @transform_10(%arg0: i32) -> (i32, i32, i32) {
    %c0_i32 = arith.constant 0 : i32
    %c0_i32_0 = arith.constant 0 : i32
    %c0_i32_1 = arith.constant 0 : i32
    %c0_i32_2 = arith.constant 0 : i32
    return %c0_i32, %c0_i32_0, %c0_i32_1 : i32, i32, i32
  }
  func.func @transform_11(%arg0: i32) -> (i32, i32, i32) {
    %c0_i32 = arith.constant 0 : i32
    %c0_i32_0 = arith.constant 0 : i32
    %c0_i32_1 = arith.constant 0 : i32
    %c0_i32_2 = arith.constant 0 : i32
    return %c0_i32, %c0_i32_0, %c0_i32_1 : i32, i32, i32
  }
  func.func @transform_12(%arg0: i32) -> (i32, i32) {
    %c0_i32 = arith.constant 0 : i32
    %c0_i32_0 = arith.constant 0 : i32
    %c0_i32_1 = arith.constant 0 : i32
    return %c0_i32, %c0_i32_0 : i32, i32
  }
  func.func @transform_13(%arg0: i32) -> (i32, i32) {
    %c0_i32 = arith.constant 0 : i32
    %c0_i32_0 = arith.constant 0 : i32
    %c0_i32_1 = arith.constant 0 : i32
    return %c0_i32, %c0_i32_0 : i32, i32
  }
  func.func @transform_14(%arg0: i32) -> (i32, i32) {
    %c0_i32 = arith.constant 0 : i32
    %c0_i32_0 = arith.constant 0 : i32
    return %c0_i32, %arg0 : i32, i32
  }
}

</mosaic_0001>

<llo_original>
// kernel: tpu_custom_call.1
$region0: #{tpu_custom_call.1}
  #allocation0 [shape = 'u32[]', space=smem, size = 0x4, offset = 0x4, fixed_abs, tag = 'smem constant byte address 0x4 - core index']
  #allocation1 [shape = 'u32[144,128]{1,0:T(1,128)}', space=vmem, size = 0x12000, scoped, tag = 'internal scratch']
  #allocation2 [shape = 'f32[10,16,64]{2,1,0:T(8,128)}', space=vmem, size = 0x14000, scoped, tag = 'scratch operand']
  #allocation3 [shape = 'f32[1,1]{1,0:T(1,128)S(1)}', space=vmem, size = 0x200, scoped, tag = 'scoped memory for tpu_custom_call.1']
  %s0 = inlined_call_operand.vmem [shape: f32[16,16], index: 0, kind: input, shape index: {}]
  %s1 = inlined_call_operand.hbm [shape: f32[10,16,16], index: 1, kind: input, shape index: {}]
  %s2 = inlined_call_operand.vmem [shape: s32[16,1], index: 2, kind: input, shape index: {}]
  %s3 = inlined_call_operand.vmem [shape: s32[16,1], index: 3, kind: input, shape index: {}]
  %s4 = inlined_call_operand.hbm [shape: f32[16,64], index: 4, kind: input, shape index: {}]
  %s5 = inlined_call_operand.hbm [shape: f32[64,64], index: 5, kind: input, shape index: {}]
  %s6 = inlined_call_operand.vmem [shape: f32[1,64], index: 6, kind: input, shape index: {}]
  %s7 = inlined_call_operand.hbm [shape: f32[16,32], index: 7, kind: input, shape index: {}]
  %s8 = inlined_call_operand.vmem [shape: f32[64,32], index: 8, kind: input, shape index: {}]
  %s9 = inlined_call_operand.vmem [shape: f32[1,32], index: 9, kind: input, shape index: {}]
  %s10 = inlined_call_operand.vmem [shape: f32[4,32,32], index: 10, kind: input, shape index: {}]
  %s11 = inlined_call_operand.vmem [shape: f32[4,1,32], index: 11, kind: input, shape index: {}]
  %s12 = inlined_call_operand.vmem [shape: f32[1,32], index: 12, kind: input, shape index: {}]
  %s13 = inlined_call_operand.<no memory space> [shape: f32[1,1], index: 13, kind: input, shape index: {}]
  %s14 = inlined_call_operand.hbm [shape: f32[1,16], index: 14, kind: output, shape index: {}]
  %s15 = sld [smem:[#allocation0]]
  $region82: #{tpu_custom_call.1} parent=0
    _
  %s17 = ssub.s32 1, %s15
  %s18 = scalar_select 0, %s17, %s15
  %v19 = vstv %s13
  %20 = vst [vmem:[#allocation3] sm:$0x1] %v19
  $region1: #{tpu_custom_call.1} parent=0
    #allocation4 [shape = 'u8[81920]{0}', space=vmem, size = 0x14000, scoped, tag = 'input window, operand 1, single buffered']
    #allocation5 [shape = 's32[1]{0}', space=sflag, size = 0x4, scoped, tag = 'scoped memory for tpu_custom_call.1']
    #allocation6 [shape = 's32[1]{0}', space=sflag, size = 0x4, scoped, tag = 'scoped memory for tpu_custom_call.1']
    #allocation7 [shape = 'u8[8192]{0}', space=vmem, size = 0x2000, scoped, tag = 'input window, operand 4, single buffered']
    #allocation8 [shape = 's32[1]{0}', space=sflag, size = 0x4, scoped, tag = 'scoped memory for tpu_custom_call.1']
    #allocation9 [shape = 'u8[32768]{0}', space=vmem, size = 0x8000, scoped, tag = 'input window, operand 5, single buffered']
    #allocation10 [shape = 'u8[8192]{0}', space=vmem, size = 0x2000, scoped, tag = 'input window, operand 7, single buffered']
    #allocation11 [shape = 's32[1]{0}', space=sflag, size = 0x4, scoped, tag = 'scoped memory for tpu_custom_call.1']
    #allocation12 [shape = 'u8[512]{0}', space=vmem, size = 0x400, scoped, tag = 'output window, operand 0, single buffered']
    %21 = vsyncpa [#allocation5], 0
    %22 = vsyncpa [#allocation8], 0
    %23 = vsyncpa [#allocation11], 0
    %24 = vsyncpa [#allocation6], 0
    // Predicated region
    $region2: #{tpu_custom_call.1} parent=1 // pred_check
      _
    $region3: #{tpu_custom_call.1} parent=1 // pred_check_branch
      %26 = sbr.rel (0) target = $region5
    $region4: #{tpu_custom_call.1} parent=1 // pred_region
      _
    $region5: #{tpu_custom_call.1} parent=1 // pred_fallthru
      _
    // Predicated region
    $region6: #{tpu_custom_call.1} parent=1 // pred_check
      _
    $region7: #{tpu_custom_call.1} parent=1 // pred_check_branch
      %28 = sbr.rel (0) target = $region9
    $region8: #{tpu_custom_call.1} parent=1 // pred_region
      %s30 = ssub.s32 2560, 2560
      %31 = vsyncadd [#allocation5], %s30
      %s32 = sshll.u32 [#allocation4], 4
      %s33 = int_to_ptr.vmem [resolvable:$true] %s32
      %38 = dma.hbm_to_vmem [thread:$0]  %s1, 2560, %s33, [#allocation5], 128, 128, 8
    $region9: #{tpu_custom_call.1} parent=1 // pred_fallthru
      _
    // Predicated region
    $region10: #{tpu_custom_call.1} parent=1 // pred_check
      _
    $region11: #{tpu_custom_call.1} parent=1 // pred_check_branch
      %40 = sbr.rel (0) target = $region13
    $region12: #{tpu_custom_call.1} parent=1 // pred_region
      _
    $region13: #{tpu_custom_call.1} parent=1 // pred_fallthru
      _
    // Predicated region
    $region14: #{tpu_custom_call.1} parent=1 // pred_check
      _
    $region15: #{tpu_custom_call.1} parent=1 // pred_check_branch
      %42 = sbr.rel (0) target = $region17
    $region16: #{tpu_custom_call.1} parent=1 // pred_region
      _
    $region17: #{tpu_custom_call.1} parent=1 // pred_fallthru
      _
    // Predicated region
    $region18: #{tpu_custom_call.1} parent=1 // pred_check
      _
    $region19: #{tpu_custom_call.1} parent=1 // pred_check_branch
      %44 = sbr.rel (0) target = $region21
    $region20: #{tpu_custom_call.1} parent=1 // pred_region
      %s46 = ssub.s32 256, 256
      %47 = vsyncadd [#allocation8], %s46
      %s48 = sshll.u32 [#allocation7], 4
      %s49 = int_to_ptr.vmem [resolvable:$true] %s48
      %54 = dma.hbm_to_vmem [thread:$0]  %s4, 256, %s49, [#allocation8], 128, 128, 8
    $region21: #{tpu_custom_call.1} parent=1 // pred_fallthru
      _
    // Predicated region
    $region22: #{tpu_custom_call.1} parent=1 // pred_check
      _
    $region23: #{tpu_custom_call.1} parent=1 // pred_check_branch
      %56 = sbr.rel (0) target = $region25
    $region24: #{tpu_custom_call.1} parent=1 // pred_region
      %s58 = ssub.s32 1024, 1024
      %59 = vsyncadd [#allocation8], %s58
      %s60 = sshll.u32 [#allocation9], 4
      %s61 = int_to_ptr.vmem [resolvable:$true] %s60
      %66 = dma.hbm_to_vmem [thread:$0]  %s5, 1024, %s61, [#allocation8], 128, 128, 8
    $region25: #{tpu_custom_call.1} parent=1 // pred_fallthru
      _
    // Predicated region
    $region26: #{tpu_custom_call.1} parent=1 // pred_check
      _
    $region27: #{tpu_custom_call.1} parent=1 // pred_check_branch
      %68 = sbr.rel (0) target = $region29
    $region28: #{tpu_custom_call.1} parent=1 // pred_region
      _
    $region29: #{tpu_custom_call.1} parent=1 // pred_fallthru
      _
    // Predicated region
    $region30: #{tpu_custom_call.1} parent=1 // pred_check
      _
    $region31: #{tpu_custom_call.1} parent=1 // pred_check_branch
      %70 = sbr.rel (0) target = $region33
    $region32: #{tpu_custom_call.1} parent=1 // pred_region
      %s72 = ssub.s32 256, 256
      %73 = vsyncadd [#allocation11], %s72
      %s74 = sshll.u32 [#allocation10], 4
      %s75 = int_to_ptr.vmem [resolvable:$true] %s74
      %80 = dma.hbm_to_vmem [thread:$0]  %s7, 256, %s75, [#allocation11], 128, 128, 8
    $region33: #{tpu_custom_call.1} parent=1 // pred_fallthru
      _
    // Predicated region
    $region34: #{tpu_custom_call.1} parent=1 // pred_check
      _
    $region35: #{tpu_custom_call.1} parent=1 // pred_check_branch
      %82 = sbr.rel (0) target = $region37
    $region36: #{tpu_custom_call.1} parent=1 // pred_region
      _
    $region37: #{tpu_custom_call.1} parent=1 // pred_fallthru
      _
    // Predicated region
    $region38: #{tpu_custom_call.1} parent=1 // pred_check
      _
    $region39: #{tpu_custom_call.1} parent=1 // pred_check_branch
      %84 = sbr.rel (0) target = $region41
    $region40: #{tpu_custom_call.1} parent=1 // pred_region
      _
    $region41: #{tpu_custom_call.1} parent=1 // pred_fallthru
      _
    // Predicated region
    $region42: #{tpu_custom_call.1} parent=1 // pred_check
      _
    $region43: #{tpu_custom_call.1} parent=1 // pred_check_branch
      %86 = sbr.rel (0) target = $region45
    $region44: #{tpu_custom_call.1} parent=1 // pred_region
      _
    $region45: #{tpu_custom_call.1} parent=1 // pred_fallthru
      _
    // Predicated region
    $region46: #{tpu_custom_call.1} parent=1 // pred_check
      _
    $region47: #{tpu_custom_call.1} parent=1 // pred_check_branch
      %88 = sbr.rel (0) target = $region49
    $region48: #{tpu_custom_call.1} parent=1 // pred_region
      _
    $region49: #{tpu_custom_call.1} parent=1 // pred_fallthru
      _
    // Predicated region
    $region50: #{tpu_custom_call.1} parent=1 // pred_check
      _
    $region51: #{tpu_custom_call.1} parent=1 // pred_check_branch
      %90 = sbr.rel (0) target = $region53
    $region52: #{tpu_custom_call.1} parent=1 // pred_region
      _
    $region53: #{tpu_custom_call.1} parent=1 // pred_fallthru
      _
    // Predicated region
    $region54: #{tpu_custom_call.1} parent=1 // pred_check
      _
    $region55: #{tpu_custom_call.1} parent=1 // pred_check_branch
      %92 = sbr.rel (0) target = $region57
    $region56: #{tpu_custom_call.1} parent=1 // pred_region
      _
    $region57: #{tpu_custom_call.1} parent=1 // pred_fallthru
      _
    // Predicated region
    $region58: #{tpu_custom_call.1} parent=1 // pred_check
      _
    $region59: #{tpu_custom_call.1} parent=1 // pred_check_branch
      %94 = sbr.rel (0) target = $region61
    $region60: #{tpu_custom_call.1} parent=1 // pred_region
      %95 = dma.done [#allocation5], 2560
    $region61: #{tpu_custom_call.1} parent=1 // pred_fallthru
      _
    // Predicated region
    $region62: #{tpu_custom_call.1} parent=1 // pred_check
      _
    $region63: #{tpu_custom_call.1} parent=1 // pred_check_branch
      %97 = sbr.rel (0) target = $region65
    $region64: #{tpu_custom_call.1} parent=1 // pred_region
      %98 = dma.done [#allocation8], 256
    $region65: #{tpu_custom_call.1} parent=1 // pred_fallthru
      _
    // Predicated region
    $region66: #{tpu_custom_call.1} parent=1 // pred_check
      _
    $region67: #{tpu_custom_call.1} parent=1 // pred_check_branch
      %100 = sbr.rel (0) target = $region69
    $region68: #{tpu_custom_call.1} parent=1 // pred_region
      %101 = dma.done [#allocation8], 1024
    $region69: #{tpu_custom_call.1} parent=1 // pred_fallthru
      _
    // Predicated region
    $region70: #{tpu_custom_call.1} parent=1 // pred_check
      _
    $region71: #{tpu_custom_call.1} parent=1 // pred_check_branch
      %103 = sbr.rel (0) target = $region73
    $region72: #{tpu_custom_call.1} parent=1 // pred_region
      %104 = dma.done [#allocation11], 256
    $region73: #{tpu_custom_call.1} parent=1 // pred_fallthru
      _
    %v105 = vld [vmem:[#allocation7] sm:$0xff]
    %v106 = vld [vmem:[#allocation7 + $0x8] sm:$0xff]
    %v107 = vld [vmem:[#allocation9] sm:$0xff]
    %v108 = vld [vmem:[#allocation9 + $0x8] sm:$0xff]
    %v109 = vld [vmem:[#allocation9 + $0x10] sm:$0xff]
    %v110 = vld [vmem:[#allocation9 + $0x18] sm:$0xff]
    %v111 = vld [vmem:[#allocation9 + $0x20] sm:$0xff]
    %v112 = vld [vmem:[#allocation9 + $0x28] sm:$0xff]
    %v113 = vld [vmem:[#allocation9 + $0x30] sm:$0xff]
    %v114 = vld [vmem:[#allocation9 + $0x38] sm:$0xff]
    %v115 = vld [vmem:[%s6] sm:$0x1]
    %v116 = vld [vmem:[#allocation4] sm:$0xff]
    %v117 = vld [vmem:[#allocation4 + $0x8] sm:$0xff]
    %v119 = vlaneseq
    %v120 = vshrl.u32 %v119, 7
    %v121 = vsub.s32 0, %v120
    %v122 = vrot.slane %v115, %v121
    %vm124 = vcmask 130048
    %v126 = vsel %vm124, %v116, 0
    %v129 = vsel %vm124, %v117, 0
    %131 = vmatprep.subr.mxu0 0.0
    %132 = vmatpush1.msra.mxu0 0.0
    %133 = vmatprep.subr.mxu0 0.0
    %134 = vmatpush1.msra.mxu0 0.0
    %135 = vmatprep.subr.mxu0 0.0
    %136 = vmatpush1.msra.mxu0 0.0
    %137 = vmatprep.subr.mxu0 0.0
    %138 = vmatpush1.msra.mxu0 0.0
    %139 = vmatprep.subr.mxu0 0.0
    %140 = vmatpush1.msra.mxu0 0.0
    %141 = vmatprep.subr.mxu0 0.0
    %142 = vmatpush1.msra.mxu0 0.0
    %143 = vmatprep.subr.mxu0 0.0
    %144 = vmatpush1.msra.mxu0 0.0
    %145 = vmatprep.subr.mxu0 0.0
    %146 = vmatpush1.msra.mxu0 0.0
    %147 = vmatprep.subr.mxu0 0.0
    %148 = vmatpush1.msra.mxu0 0.0
    %149 = vmatprep.subr.mxu0 0.0
    %150 = vmatpush1.msra.mxu0 0.0
    %151 = vmatprep.subr.mxu0 0.0
    %152 = vmatpush1.msra.mxu0 0.0
    %153 = vmatprep.subr.mxu0 0.0
    %154 = vmatpush1.msra.mxu0 0.0
    %155 = vmatprep.subr.mxu0 0.0
    %156 = vmatpush1.msra.mxu0 0.0
    %157 = vmatprep.subr.mxu0 0.0
    %158 = vmatpush1.msra.mxu0 0.0
    %159 = vmatprep.subr.mxu0 0.0
    %160 = vmatpush1.msra.mxu0 %v106
    %161 = vmatprep.subr.mxu0 0.0
    %162 = vmatpush1.msra.mxu0 %v105
    %163 = vmatprep.subr.mxu0 0.0
    %164 = vmatpush2.msra.mxu0 0.0
    %165 = vmatprep.subr.mxu0 0.0
    %166 = vmatpush2.msra.mxu0 0.0
    %167 = vmatprep.subr.mxu0 0.0
    %168 = vmatpush2.msra.mxu0 0.0
    %169 = vmatprep.subr.mxu0 0.0
    %170 = vmatpush2.msra.mxu0 0.0
    %171 = vmatprep.subr.mxu0 0.0
    %172 = vmatpush2.msra.mxu0 0.0
    %173 = vmatprep.subr.mxu0 0.0
    %174 = vmatpush2.msra.mxu0 0.0
    %175 = vmatprep.subr.mxu0 0.0
    %176 = vmatpush2.msra.mxu0 0.0
    %177 = vmatprep.subr.mxu0 0.0
    %178 = vmatpush2.msra.mxu0 0.0
    %179 = vmatprep.subr.mxu0 0.0
    %180 = vmatpush2.msra.mxu0 0.0
    %181 = vmatprep.subr.mxu0 0.0
    %182 = vmatpush2.msra.mxu0 0.0
    %183 = vmatprep.subr.mxu0 0.0
    %184 = vmatpush2.msra.mxu0 0.0
    %185 = vmatprep.subr.mxu0 0.0
    %186 = vmatpush2.msra.mxu0 0.0
    %187 = vmatprep.subr.mxu0 0.0
    %188 = vmatpush2.msra.mxu0 0.0
    %189 = vmatprep.subr.mxu0 0.0
    %190 = vmatpush2.msra.mxu0 0.0
    %191 = vmatprep.subr.mxu0 0.0
    %192 = vmatpush2.msra.mxu0 0.0
    %193 = vmatprep.subr.mxu0 0.0
    %194 = vmatpush2.msra.mxu0 0.0
    %195 = vmatprep.mubr.f32.mxu0 0.0
    %196 = vmatmul.mubr.f32.gmra.mxu0 %v126
    %v197 = vpop.f32.mrf.mxu0
    %v198 = vadd.f32 %v122, %v197
    %v199 = vpop.f32.mrf.mxu0
    %200 = vmatprep.mubr.f32.mxu0 0.0
    %201 = vmatmul.mubr.f32.gmra.mxu0 %v129
    %v202 = vpop.f32.mrf.mxu0
    %v203 = vadd.f32 %v122, %v202
    %v204 = vpop.f32.mrf.mxu0
    %205 = vdwg.mxu0
    %vm206 = vcmask 523264
    %207 = vst.msk [vmem:[#allocation2] sm:$0xff] %vm206, %v198
    %208 = vst.msk [vmem:[#allocation2 + $0x8] sm:$0xff] %vm206, %v203
    %s209 = scalar_lea.vmem [#allocation4], 16
    %v210 = vld [vmem:[%s209] sm:$0xff]
    %v211 = vld [vmem:[%s209 + $0x8] sm:$0xff]
    %v213 = vsel %vm124, %v210, 0
    %v216 = vsel %vm124, %v211, 0
    %218 = vmatprep.subr.mxu0 0.0
    %219 = vmatpush1.msra.mxu0 0.0
    %220 = vmatprep.subr.mxu0 0.0
    %221 = vmatpush1.msra.mxu0 0.0
    %222 = vmatprep.subr.mxu0 0.0
    %223 = vmatpush1.msra.mxu0 0.0
    %224 = vmatprep.subr.mxu0 0.0
    %225 = vmatpush1.msra.mxu0 0.0
    %226 = vmatprep.subr.mxu0 0.0
    %227 = vmatpush1.msra.mxu0 0.0
    %228 = vmatprep.subr.mxu0 0.0
    %229 = vmatpush1.msra.mxu0 0.0
    %230 = vmatprep.subr.mxu0 0.0
    %231 = vmatpush1.msra.mxu0 0.0
    %232 = vmatprep.subr.mxu0 0.0
    %233 = vmatpush1.msra.mxu0 0.0
    %234 = vmatprep.subr.mxu0 0.0
    %235 = vmatpush1.msra.mxu0 0.0
    %236 = vmatprep.subr.mxu0 0.0
    %237 = vmatpush1.msra.mxu0 0.0
    %238 = vmatprep.subr.mxu0 0.0
    %239 = vmatpush1.msra.mxu0 0.0
    %240 = vmatprep.subr.mxu0 0.0
    %241 = vmatpush1.msra.mxu0 0.0
    %242 = vmatprep.subr.mxu0 0.0
    %243 = vmatpush1.msra.mxu0 0.0
    %244 = vmatprep.subr.mxu0 0.0
    %245 = vmatpush1.msra.mxu0 0.0
    %246 = vmatprep.subr.mxu0 0.0
    %247 = vmatpush1.msra.mxu0 %v106
    %248 = vmatprep.subr.mxu0 0.0
    %249 = vmatpush1.msra.mxu0 %v105
    %250 = vmatprep.subr.mxu0 0.0
    %251 = vmatpush2.msra.mxu0 0.0
    %252 = vmatprep.subr.mxu0 0.0
    %253 = vmatpush2.msra.mxu0 0.0
    %254 = vmatprep.subr.mxu0 0.0
    %255 = vmatpush2.msra.mxu0 0.0
    %256 = vmatprep.subr.mxu0 0.0
    %257 = vmatpush2.msra.mxu0 0.0
    %258 = vmatprep.subr.mxu0 0.0
    %259 = vmatpush2.msra.mxu0 0.0
    %260 = vmatprep.subr.mxu0 0.0
    %261 = vmatpush2.msra.mxu0 0.0
    %262 = vmatprep.subr.mxu0 0.0
    %263 = vmatpush2.msra.mxu0 0.0
    %264 = vmatprep.subr.mxu0 0.0
    %265 = vmatpush2.msra.mxu0 0.0
    %266 = vmatprep.subr.mxu0 0.0
    %267 = vmatpush2.msra.mxu0 0.0
    %268 = vmatprep.subr.mxu0 0.0
    %269 = vmatpush2.msra.mxu0 0.0
    %270 = vmatprep.subr.mxu0 0.0
    %271 = vmatpush2.msra.mxu0 0.0
    %272 = vmatprep.subr.mxu0 0.0
    %273 = vmatpush2.msra.mxu0 0.0
    %274 = vmatprep.subr.mxu0 0.0
    %275 = vmatpush2.msra.mxu0 0.0
    %276 = vmatprep.subr.mxu0 0.0
    %277 = vmatpush2.msra.mxu0 0.0
    %278 = vmatprep.subr.mxu0 0.0
    %279 = vmatpush2.msra.mxu0 0.0
    %280 = vmatprep.subr.mxu0 0.0
    %281 = vmatpush2.msra.mxu0 0.0
    %282 = vmatprep.mubr.f32.mxu0 0.0
    %283 = vmatmul.mubr.f32.gmra.mxu0 %v213
    %v284 = vpop.f32.mrf.mxu0
    %v285 = vadd.f32 %v122, %v284
    %v286 = vpop.f32.mrf.mxu0
    %287 = vmatprep.mubr.f32.mxu0 0.0
    %288 = vmatmul.mubr.f32.gmra.mxu0 %v216
    %v289 = vpop.f32.mrf.mxu0
    %v290 = vadd.f32 %v122, %v289
    %v291 = vpop.f32.mrf.mxu0
    %292 = vdwg.mxu0
    %s293 = scalar_lea.vmem [#allocation2], 16
    %294 = vst.msk [vmem:[%s293] sm:$0xff] %vm206, %v285
    %295 = vst.msk [vmem:[%s293 + $0x8] sm:$0xff] %vm206, %v290
    %s296 = scalar_lea.vmem [#allocation4], 32
    %v297 = vld [vmem:[%s296] sm:$0xff]
    %v298 = vld [vmem:[%s296 + $0x8] sm:$0xff]
    %v300 = vsel %vm124, %v297, 0
    %v303 = vsel %vm124, %v298, 0
    %305 = vmatprep.subr.mxu0 0.0
    %306 = vmatpush1.msra.mxu0 0.0
    %307 = vmatprep.subr.mxu0 0.0
    %308 = vmatpush1.msra.mxu0 0.0
    %309 = vmatprep.subr.mxu0 0.0
    %310 = vmatpush1.msra.mxu0 0.0
    %311 = vmatprep.subr.mxu0 0.0
    %312 = vmatpush1.msra.mxu0 0.0
    %313 = vmatprep.subr.mxu0 0.0
    %314 = vmatpush1.msra.mxu0 0.0
    %315 = vmatprep.subr.mxu0 0.0
    %316 = vmatpush1.msra.mxu0 0.0
    %317 = vmatprep.subr.mxu0 0.0
    %318 = vmatpush1.msra.mxu0 0.0
    %319 = vmatprep.subr.mxu0 0.0
    %320 = vmatpush1.msra.mxu0 0.0
    %321 = vmatprep.subr.mxu0 0.0
    %322 = vmatpush1.msra.mxu0 0.0
    %323 = vmatprep.subr.mxu0 0.0
    %324 = vmatpush1.msra.mxu0 0.0
    %325 = vmatprep.subr.mxu0 0.0
    %326 = vmatpush1.msra.mxu0 0.0
    %327 = vmatprep.subr.mxu0 0.0
    %328 = vmatpush1.msra.mxu0 0.0
    %329 = vmatprep.subr.mxu0 0.0
    %330 = vmatpush1.msra.mxu0 0.0
    %331 = vmatprep.subr.mxu0 0.0
    %332 = vmatpush1.msra.mxu0 0.0
    %333 = vmatprep.subr.mxu0 0.0
    %334 = vmatpush1.msra.mxu0 %v106
    %335 = vmatprep.subr.mxu0 0.0
    %336 = vmatpush1.msra.mxu0 %v105
    %337 = vmatprep.subr.mxu0 0.0
    %338 = vmatpush2.msra.mxu0 0.0
    %339 = vmatprep.subr.mxu0 0.0
    %340 = vmatpush2.msra.mxu0 0.0
    %341 = vmatprep.subr.mxu0 0.0
    %342 = vmatpush2.msra.mxu0 0.0
    %343 = vmatprep.subr.mxu0 0.0
    %344 = vmatpush2.msra.mxu0 0.0
    %345 = vmatprep.subr.mxu0 0.0
    %346 = vmatpush2.msra.mxu0 0.0
    %347 = vmatprep.subr.mxu0 0.0
    %348 = vmatpush2.msra.mxu0 0.0
    %349 = vmatprep.subr.mxu0 0.0
    %350 = vmatpush2.msra.mxu0 0.0
    %351 = vmatprep.subr.mxu0 0.0
    %352 = vmatpush2.msra.mxu0 0.0
    %353 = vmatprep.subr.mxu0 0.0
    %354 = vmatpush2.msra.mxu0 0.0
    %355 = vmatprep.subr.mxu0 0.0
    %356 = vmatpush2.msra.mxu0 0.0
    %357 = vmatprep.subr.mxu0 0.0
    %358 = vmatpush2.msra.mxu0 0.0
    %359 = vmatprep.subr.mxu0 0.0
    %360 = vmatpush2.msra.mxu0 0.0
    %361 = vmatprep.subr.mxu0 0.0
    %362 = vmatpush2.msra.mxu0 0.0
    %363 = vmatprep.subr.mxu0 0.0
    %364 = vmatpush2.msra.mxu0 0.0
    %365 = vmatprep.subr.mxu0 0.0
    %366 = vmatpush2.msra.mxu0 0.0
    %367 = vmatprep.subr.mxu0 0.0
    %368 = vmatpush2.msra.mxu0 0.0
    %369 = vmatprep.mubr.f32.mxu0 0.0
    %370 = vmatmul.mubr.f32.gmra.mxu0 %v300
    %v371 = vpop.f32.mrf.mxu0
    %v372 = vadd.f32 %v122, %v371
    %v373 = vpop.f32.mrf.mxu0
    %374 = vmatprep.mubr.f32.mxu0 0.0
    %375 = vmatmul.mubr.f32.gmra.mxu0 %v303
    %v376 = vpop.f32.mrf.mxu0
    %v377 = vadd.f32 %v122, %v376
    %v378 = vpop.f32.mrf.mxu0
    %379 = vdwg.mxu0
    %s380 = scalar_lea.vmem [#allocation2], 32
    %381 = vst.msk [vmem:[%s380] sm:$0xff] %vm206, %v372
    %382 = vst.msk [vmem:[%s380 + $0x8] sm:$0xff] %vm206, %v377
    %s383 = scalar_lea.vmem [#allocation4], 48
    %v384 = vld [vmem:[%s383] sm:$0xff]
    %v385 = vld [vmem:[%s383 + $0x8] sm:$0xff]
    %v387 = vsel %vm124, %v384, 0
    %v390 = vsel %vm124, %v385, 0
    %392 = vmatprep.subr.mxu0 0.0
    %393 = vmatpush1.msra.mxu0 0.0
    %394 = vmatprep.subr.mxu0 0.0
    %395 = vmatpush1.msra.mxu0 0.0
    %396 = vmatprep.subr.mxu0 0.0
    %397 = vmatpush1.msra.mxu0 0.0
    %398 = vmatprep.subr.mxu0 0.0
    %399 = vmatpush1.msra.mxu0 0.0
    %400 = vmatprep.subr.mxu0 0.0
    %401 = vmatpush1.msra.mxu0 0.0
    %402 = vmatprep.subr.mxu0 0.0
    %403 = vmatpush1.msra.mxu0 0.0
    %404 = vmatprep.subr.mxu0 0.0
    %405 = vmatpush1.msra.mxu0 0.0
    %406 = vmatprep.subr.mxu0 0.0
    %407 = vmatpush1.msra.mxu0 0.0
    %408 = vmatprep.subr.mxu0 0.0
    %409 = vmatpush1.msra.mxu0 0.0
    %410 = vmatprep.subr.mxu0 0.0
    %411 = vmatpush1.msra.mxu0 0.0
    %412 = vmatprep.subr.mxu0 0.0
    %413 = vmatpush1.msra.mxu0 0.0
    %414 = vmatprep.subr.mxu0 0.0
    %415 = vmatpush1.msra.mxu0 0.0
    %416 = vmatprep.subr.mxu0 0.0
    %417 = vmatpush1.msra.mxu0 0.0
    %418 = vmatprep.subr.mxu0 0.0
    %419 = vmatpush1.msra.mxu0 0.0
    %420 = vmatprep.subr.mxu0 0.0
    %421 = vmatpush1.msra.mxu0 %v106
    %422 = vmatprep.subr.mxu0 0.0
    %423 = vmatpush1.msra.mxu0 %v105
    %424 = vmatprep.subr.mxu0 0.0
    %425 = vmatpush2.msra.mxu0 0.0
    %426 = vmatprep.subr.mxu0 0.0
    %427 = vmatpush2.msra.mxu0 0.0
    %428 = vmatprep.subr.mxu0 0.0
    %429 = vmatpush2.msra.mxu0 0.0
    %430 = vmatprep.subr.mxu0 0.0
    %431 = vmatpush2.msra.mxu0 0.0
    %432 = vmatprep.subr.mxu0 0.0
    %433 = vmatpush2.msra.mxu0 0.0
    %434 = vmatprep.subr.mxu0 0.0
    %435 = vmatpush2.msra.mxu0 0.0
    %436 = vmatprep.subr.mxu0 0.0
    %437 = vmatpush2.msra.mxu0 0.0
    %438 = vmatprep.subr.mxu0 0.0
    %439 = vmatpush2.msra.mxu0 0.0
    %440 = vmatprep.subr.mxu0 0.0
    %441 = vmatpush2.msra.mxu0 0.0
    %442 = vmatprep.subr.mxu0 0.0
    %443 = vmatpush2.msra.mxu0 0.0
    %444 = vmatprep.subr.mxu0 0.0
    %445 = vmatpush2.msra.mxu0 0.0
    %446 = vmatprep.subr.mxu0 0.0
    %447 = vmatpush2.msra.mxu0 0.0
    %448 = vmatprep.subr.mxu0 0.0
    %449 = vmatpush2.msra.mxu0 0.0
    %450 = vmatprep.subr.mxu0 0.0
    %451 = vmatpush2.msra.mxu0 0.0
    %452 = vmatprep.subr.mxu0 0.0
    %453 = vmatpush2.msra.mxu0 0.0
    %454 = vmatprep.subr.mxu0 0.0
    %455 = vmatpush2.msra.mxu0 0.0
    %456 = vmatprep.mubr.f32.mxu0 0.0
    %457 = vmatmul.mubr.f32.gmra.mxu0 %v387
    %v458 = vpop.f32.mrf.mxu0
    %v459 = vadd.f32 %v122, %v458
    %v460 = vpop.f32.mrf.mxu0
    %461 = vmatprep.mubr.f32.mxu0 0.0
    %462 = vmatmul.mubr.f32.gmra.mxu0 %v390
    %v463 = vpop.f32.mrf.mxu0
    %v464 = vadd.f32 %v122, %v463
    %v465 = vpop.f32.mrf.mxu0
    %466 = vdwg.mxu0
    %s467 = scalar_lea.vmem [#allocation2], 48
    %468 = vst.msk [vmem:[%s467] sm:$0xff] %vm206, %v459
    %469 = vst.msk [vmem:[%s467 + $0x8] sm:$0xff] %vm206, %v464
    %s470 = scalar_lea.vmem [#allocation4], 64
    %v471 = vld [vmem:[%s470] sm:$0xff]
    %v472 = vld [vmem:[%s470 + $0x8] sm:$0xff]
    %v474 = vsel %vm124, %v471, 0
    %v477 = vsel %vm124, %v472, 0
    %479 = vmatprep.subr.mxu0 0.0
    %480 = vmatpush1.msra.mxu0 0.0
    %481 = vmatprep.subr.mxu0 0.0
    %482 = vmatpush1.msra.mxu0 0.0
    %483 = vmatprep.subr.mxu0 0.0
    %484 = vmatpush1.msra.mxu0 0.0
    %485 = vmatprep.subr.mxu0 0.0
    %486 = vmatpush1.msra.mxu0 0.0
    %487 = vmatprep.subr.mxu0 0.0
    %488 = vmatpush1.msra.mxu0 0.0
    %489 = vmatprep.subr.mxu0 0.0
    %490 = vmatpush1.msra.mxu0 0.0
    %491 = vmatprep.subr.mxu0 0.0
    %492 = vmatpush1.msra.mxu0 0.0
    %493 = vmatprep.subr.mxu0 0.0
    %494 = vmatpush1.msra.mxu0 0.0
    %495 = vmatprep.subr.mxu0 0.0
    %496 = vmatpush1.msra.mxu0 0.0
    %497 = vmatprep.subr.mxu0 0.0
    %498 = vmatpush1.msra.mxu0 0.0
    %499 = vmatprep.subr.mxu0 0.0
    %500 = vmatpush1.msra.mxu0 0.0
    %501 = vmatprep.subr.mxu0 0.0
    %502 = vmatpush1.msra.mxu0 0.0
    %503 = vmatprep.subr.mxu0 0.0
    %504 = vmatpush1.msra.mxu0 0.0
    %505 = vmatprep.subr.mxu0 0.0
    %506 = vmatpush1.msra.mxu0 0.0
    %507 = vmatprep.subr.mxu0 0.0
    %508 = vmatpush1.msra.mxu0 %v106
    %509 = vmatprep.subr.mxu0 0.0
    %510 = vmatpush1.msra.mxu0 %v105
    %511 = vmatprep.subr.mxu0 0.0
    %512 = vmatpush2.msra.mxu0 0.0
    %513 = vmatprep.subr.mxu0 0.0
    %514 = vmatpush2.msra.mxu0 0.0
    %515 = vmatprep.subr.mxu0 0.0
    %516 = vmatpush2.msra.mxu0 0.0
    %517 = vmatprep.subr.mxu0 0.0
    %518 = vmatpush2.msra.mxu0 0.0
    %519 = vmatprep.subr.mxu0 0.0
    %520 = vmatpush2.msra.mxu0 0.0
    %521 = vmatprep.subr.mxu0 0.0
    %522 = vmatpush2.msra.mxu0 0.0
    %523 = vmatprep.subr.mxu0 0.0
    %524 = vmatpush2.msra.mxu0 0.0
    %525 = vmatprep.subr.mxu0 0.0
    %526 = vmatpush2.msra.mxu0 0.0
    %527 = vmatprep.subr.mxu0 0.0
    %528 = vmatpush2.msra.mxu0 0.0
    %529 = vmatprep.subr.mxu0 0.0
    %530 = vmatpush2.msra.mxu0 0.0
    %531 = vmatprep.subr.mxu0 0.0
    %532 = vmatpush2.msra.mxu0 0.0
    %533 = vmatprep.subr.mxu0 0.0
    %534 = vmatpush2.msra.mxu0 0.0
    %535 = vmatprep.subr.mxu0 0.0
    %536 = vmatpush2.msra.mxu0 0.0
    %537 = vmatprep.subr.mxu0 0.0
    %538 = vmatpush2.msra.mxu0 0.0
    %539 = vmatprep.subr.mxu0 0.0
    %540 = vmatpush2.msra.mxu0 0.0
    %541 = vmatprep.subr.mxu0 0.0
    %542 = vmatpush2.msra.mxu0 0.0
    %543 = vmatprep.mubr.f32.mxu0 0.0
    %544 = vmatmul.mubr.f32.gmra.mxu0 %v474
    %v545 = vpop.f32.mrf.mxu0
    %v546 = vadd.f32 %v122, %v545
    %v547 = vpop.f32.mrf.mxu0
    %548 = vmatprep.mubr.f32.mxu0 0.0
    %549 = vmatmul.mubr.f32.gmra.mxu0 %v477
    %v550 = vpop.f32.mrf.mxu0
    %v551 = vadd.f32 %v122, %v550
    %v552 = vpop.f32.mrf.mxu0
    %553 = vdwg.mxu0
    %s554 = scalar_lea.vmem [#allocation2], 64
    %555 = vst.msk [vmem:[%s554] sm:$0xff] %vm206, %v546
    %556 = vst.msk [vmem:[%s554 + $0x8] sm:$0xff] %vm206, %v551
    %s557 = scalar_lea.vmem [#allocation4], 80
    %v558 = vld [vmem:[%s557] sm:$0xff]
    %v559 = vld [vmem:[%s557 + $0x8] sm:$0xff]
    %v561 = vsel %vm124, %v558, 0
    %v564 = vsel %vm124, %v559, 0
    %566 = vmatprep.subr.mxu0 0.0
    %567 = vmatpush1.msra.mxu0 0.0
    %568 = vmatprep.subr.mxu0 0.0
    %569 = vmatpush1.msra.mxu0 0.0
    %570 = vmatprep.subr.mxu0 0.0
    %571 = vmatpush1.msra.mxu0 0.0
    %572 = vmatprep.subr.mxu0 0.0
    %573 = vmatpush1.msra.mxu0 0.0
    %574 = vmatprep.subr.mxu0 0.0
    %575 = vmatpush1.msra.mxu0 0.0
    %576 = vmatprep.subr.mxu0 0.0
    %577 = vmatpush1.msra.mxu0 0.0
    %578 = vmatprep.subr.mxu0 0.0
    %579 = vmatpush1.msra.mxu0 0.0
    %580 = vmatprep.subr.mxu0 0.0
    %581 = vmatpush1.msra.mxu0 0.0
    %582 = vmatprep.subr.mxu0 0.0
    %583 = vmatpush1.msra.mxu0 0.0
    %584 = vmatprep.subr.mxu0 0.0
    %585 = vmatpush1.msra.mxu0 0.0
    %586 = vmatprep.subr.mxu0 0.0
    %587 = vmatpush1.msra.mxu0 0.0
    %588 = vmatprep.subr.mxu0 0.0
    %589 = vmatpush1.msra.mxu0 0.0
    %590 = vmatprep.subr.mxu0 0.0
    %591 = vmatpush1.msra.mxu0 0.0
    %592 = vmatprep.subr.mxu0 0.0
    %593 = vmatpush1.msra.mxu0 0.0
    %594 = vmatprep.subr.mxu0 0.0
    %595 = vmatpush1.msra.mxu0 %v106
    %596 = vmatprep.subr.mxu0 0.0
    %597 = vmatpush1.msra.mxu0 %v105
    %598 = vmatprep.subr.mxu0 0.0
    %599 = vmatpush2.msra.mxu0 0.0
    %600 = vmatprep.subr.mxu0 0.0
    %601 = vmatpush2.msra.mxu0 0.0
    %602 = vmatprep.subr.mxu0 0.0
    %603 = vmatpush2.msra.mxu0 0.0
    %604 = vmatprep.subr.mxu0 0.0
    %605 = vmatpush2.msra.mxu0 0.0
    %606 = vmatprep.subr.mxu0 0.0
    %607 = vmatpush2.msra.mxu0 0.0
    %608 = vmatprep.subr.mxu0 0.0
    %609 = vmatpush2.msra.mxu0 0.0
    %610 = vmatprep.subr.mxu0 0.0
    %611 = vmatpush2.msra.mxu0 0.0
    %612 = vmatprep.subr.mxu0 0.0
    %613 = vmatpush2.msra.mxu0 0.0
    %614 = vmatprep.subr.mxu0 0.0
    %615 = vmatpush2.msra.mxu0 0.0
    %616 = vmatprep.subr.mxu0 0.0
    %617 = vmatpush2.msra.mxu0 0.0
    %618 = vmatprep.subr.mxu0 0.0
    %619 = vmatpush2.msra.mxu0 0.0
    %620 = vmatprep.subr.mxu0 0.0
    %621 = vmatpush2.msra.mxu0 0.0
    %622 = vmatprep.subr.mxu0 0.0
    %623 = vmatpush2.msra.mxu0 0.0
    %624 = vmatprep.subr.mxu0 0.0
    %625 = vmatpush2.msra.mxu0 0.0
    %626 = vmatprep.subr.mxu0 0.0
    %627 = vmatpush2.msra.mxu0 0.0
    %628 = vmatprep.subr.mxu0 0.0
    %629 = vmatpush2.msra.mxu0 0.0
    %630 = vmatprep.mubr.f32.mxu0 0.0
    %631 = vmatmul.mubr.f32.gmra.mxu0 %v561
    %v632 = vpop.f32.mrf.mxu0
    %v633 = vadd.f32 %v122, %v632
    %v634 = vpop.f32.mrf.mxu0
    %635 = vmatprep.mubr.f32.mxu0 0.0
    %636 = vmatmul.mubr.f32.gmra.mxu0 %v564
    %v637 = vpop.f32.mrf.mxu0
    %v638 = vadd.f32 %v122, %v637
    %v639 = vpop.f32.mrf.mxu0
    %640 = vdwg.mxu0
    %s641 = scalar_lea.vmem [#allocation2], 80
    %642 = vst.msk [vmem:[%s641] sm:$0xff] %vm206, %v633
    %643 = vst.msk [vmem:[%s641 + $0x8] sm:$0xff] %vm206, %v638
    %s644 = scalar_lea.vmem [#allocation4], 96
    %v645 = vld [vmem:[%s644] sm:$0xff]
    %v646 = vld [vmem:[%s644 + $0x8] sm:$0xff]
    %v648 = vsel %vm124, %v645, 0
    %v651 = vsel %vm124, %v646, 0
    %653 = vmatprep.subr.mxu0 0.0
    %654 = vmatpush1.msra.mxu0 0.0
    %655 = vmatprep.subr.mxu0 0.0
    %656 = vmatpush1.msra.mxu0 0.0
    %657 = vmatprep.subr.mxu0 0.0
    %658 = vmatpush1.msra.mxu0 0.0
    %659 = vmatprep.subr.mxu0 0.0
    %660 = vmatpush1.msra.mxu0 0.0
    %661 = vmatprep.subr.mxu0 0.0
    %662 = vmatpush1.msra.mxu0 0.0
    %663 = vmatprep.subr.mxu0 0.0
    %664 = vmatpush1.msra.mxu0 0.0
    %665 = vmatprep.subr.mxu0 0.0
    %666 = vmatpush1.msra.mxu0 0.0
    %667 = vmatprep.subr.mxu0 0.0
    %668 = vmatpush1.msra.mxu0 0.0
    %669 = vmatprep.subr.mxu0 0.0
    %670 = vmatpush1.msra.mxu0 0.0
    %671 = vmatprep.subr.mxu0 0.0
    %672 = vmatpush1.msra.mxu0 0.0
    %673 = vmatprep.subr.mxu0 0.0
    %674 = vmatpush1.msra.mxu0 0.0
    %675 = vmatprep.subr.mxu0 0.0
    %676 = vmatpush1.msra.mxu0 0.0
    %677 = vmatprep.subr.mxu0 0.0
    %678 = vmatpush1.msra.mxu0 0.0
    %679 = vmatprep.subr.mxu0 0.0
    %680 = vmatpush1.msra.mxu0 0.0
    %681 = vmatprep.subr.mxu0 0.0
    %682 = vmatpush1.msra.mxu0 %v106
    %683 = vmatprep.subr.mxu0 0.0
    %684 = vmatpush1.msra.mxu0 %v105
    %685 = vmatprep.subr.mxu0 0.0
    %686 = vmatpush2.msra.mxu0 0.0
    %687 = vmatprep.subr.mxu0 0.0
    %688 = vmatpush2.msra.mxu0 0.0
    %689 = vmatprep.subr.mxu0 0.0
    %690 = vmatpush2.msra.mxu0 0.0
    %691 = vmatprep.subr.mxu0 0.0
    %692 = vmatpush2.msra.mxu0 0.0
    %693 = vmatprep.subr.mxu0 0.0
    %694 = vmatpush2.msra.mxu0 0.0
    %695 = vmatprep.subr.mxu0 0.0
    %696 = vmatpush2.msra.mxu0 0.0
    %697 = vmatprep.subr.mxu0 0.0
    %698 = vmatpush2.msra.mxu0 0.0
    %699 = vmatprep.subr.mxu0 0.0
    %700 = vmatpush2.msra.mxu0 0.0
    %701 = vmatprep.subr.mxu0 0.0
    %702 = vmatpush2.msra.mxu0 0.0
    %703 = vmatprep.subr.mxu0 0.0
    %704 = vmatpush2.msra.mxu0 0.0
    %705 = vmatprep.subr.mxu0 0.0
    %706 = vmatpush2.msra.mxu0 0.0
    %707 = vmatprep.subr.mxu0 0.0
    %708 = vmatpush2.msra.mxu0 0.0
    %709 = vmatprep.subr.mxu0 0.0
    %710 = vmatpush2.msra.mxu0 0.0
    %711 = vmatprep.subr.mxu0 0.0
    %712 = vmatpush2.msra.mxu0 0.0
    %713 = vmatprep.subr.mxu0 0.0
    %714 = vmatpush2.msra.mxu0 0.0
    %715 = vmatprep.subr.mxu0 0.0
    %716 = vmatpush2.msra.mxu0 0.0
    %717 = vmatprep.mubr.f32.mxu0 0.0
    %718 = vmatmul.mubr.f32.gmra.mxu0 %v648
    %v719 = vpop.f32.mrf.mxu0
    %v720 = vadd.f32 %v122, %v719
    %v721 = vpop.f32.mrf.mxu0
    %722 = vmatprep.mubr.f32.mxu0 0.0
    %723 = vmatmul.mubr.f32.gmra.mxu0 %v651
    %v724 = vpop.f32.mrf.mxu0
    %v725 = vadd.f32 %v122, %v724
    %v726 = vpop.f32.mrf.mxu0
    %727 = vdwg.mxu0
    %s728 = scalar_lea.vmem [#allocation2], 96
    %729 = vst.msk [vmem:[%s728] sm:$0xff] %vm206, %v720
    %730 = vst.msk [vmem:[%s728 + $0x8] sm:$0xff] %vm206, %v725
    %s731 = scalar_lea.vmem [#allocation4], 112
    %v732 = vld [vmem:[%s731] sm:$0xff]
    %v733 = vld [vmem:[%s731 + $0x8] sm:$0xff]
    %v735 = vsel %vm124, %v732, 0
    %v738 = vsel %vm124, %v733, 0
    %740 = vmatprep.subr.mxu0 0.0
    %741 = vmatpush1.msra.mxu0 0.0
    %742 = vmatprep.subr.mxu0 0.0
    %743 = vmatpush1.msra.mxu0 0.0
    %744 = vmatprep.subr.mxu0 0.0
    %745 = vmatpush1.msra.mxu0 0.0
    %746 = vmatprep.subr.mxu0 0.0
    %747 = vmatpush1.msra.mxu0 0.0
    %748 = vmatprep.subr.mxu0 0.0
    %749 = vmatpush1.msra.mxu0 0.0
    %750 = vmatprep.subr.mxu0 0.0
    %751 = vmatpush1.msra.mxu0 0.0
    %752 = vmatprep.subr.mxu0 0.0
    %753 = vmatpush1.msra.mxu0 0.0
    %754 = vmatprep.subr.mxu0 0.0
    %755 = vmatpush1.msra.mxu0 0.0
    %756 = vmatprep.subr.mxu0 0.0
    %757 = vmatpush1.msra.mxu0 0.0
    %758 = vmatprep.subr.mxu0 0.0
    %759 = vmatpush1.msra.mxu0 0.0
    %760 = vmatprep.subr.mxu0 0.0
    %761 = vmatpush1.msra.mxu0 0.0
    %762 = vmatprep.subr.mxu0 0.0
    %763 = vmatpush1.msra.mxu0 0.0
    %764 = vmatprep.subr.mxu0 0.0
    %765 = vmatpush1.msra.mxu0 0.0
    %766 = vmatprep.subr.mxu0 0.0
    %767 = vmatpush1.msra.mxu0 0.0
    %768 = vmatprep.subr.mxu0 0.0
    %769 = vmatpush1.msra.mxu0 %v106
    %770 = vmatprep.subr.mxu0 0.0
    %771 = vmatpush1.msra.mxu0 %v105
    %772 = vmatprep.subr.mxu0 0.0
    %773 = vmatpush2.msra.mxu0 0.0
    %774 = vmatprep.subr.mxu0 0.0
    %775 = vmatpush2.msra.mxu0 0.0
    %776 = vmatprep.subr.mxu0 0.0
    %777 = vmatpush2.msra.mxu0 0.0
    %778 = vmatprep.subr.mxu0 0.0
    %779 = vmatpush2.msra.mxu0 0.0
    %780 = vmatprep.subr.mxu0 0.0
    %781 = vmatpush2.msra.mxu0 0.0
    %782 = vmatprep.subr.mxu0 0.0
    %783 = vmatpush2.msra.mxu0 0.0
    %784 = vmatprep.subr.mxu0 0.0
    %785 = vmatpush2.msra.mxu0 0.0
    %786 = vmatprep.subr.mxu0 0.0
    %787 = vmatpush2.msra.mxu0 0.0
    %788 = vmatprep.subr.mxu0 0.0
    %789 = vmatpush2.msra.mxu0 0.0
    %790 = vmatprep.subr.mxu0 0.0
    %791 = vmatpush2.msra.mxu0 0.0
    %792 = vmatprep.subr.mxu0 0.0
    %793 = vmatpush2.msra.mxu0 0.0
    %794 = vmatprep.subr.mxu0 0.0
    %795 = vmatpush2.msra.mxu0 0.0
    %796 = vmatprep.subr.mxu0 0.0
    %797 = vmatpush2.msra.mxu0 0.0
    %798 = vmatprep.subr.mxu0 0.0
    %799 = vmatpush2.msra.mxu0 0.0
    %800 = vmatprep.subr.mxu0 0.0
    %801 = vmatpush2.msra.mxu0 0.0
    %802 = vmatprep.subr.mxu0 0.0
    %803 = vmatpush2.msra.mxu0 0.0
    %804 = vmatprep.mubr.f32.mxu0 0.0
    %805 = vmatmul.mubr.f32.gmra.mxu0 %v735
    %v806 = vpop.f32.mrf.mxu0
    %v807 = vadd.f32 %v122, %v806
    %v808 = vpop.f32.mrf.mxu0
    %809 = vmatprep.mubr.f32.mxu0 0.0
    %810 = vmatmul.mubr.f32.gmra.mxu0 %v738
    %v811 = vpop.f32.mrf.mxu0
    %v812 = vadd.f32 %v122, %v811
    %v813 = vpop.f32.mrf.mxu0
    %814 = vdwg.mxu0
    %s815 = scalar_lea.vmem [#allocation2], 112
    %816 = vst.msk [vmem:[%s815] sm:$0xff] %vm206, %v807
    %817 = vst.msk [vmem:[%s815 + $0x8] sm:$0xff] %vm206, %v812
    %s818 = scalar_lea.vmem [#allocation4], 128
    %v819 = vld [vmem:[%s818] sm:$0xff]
    %v820 = vld [vmem:[%s818 + $0x8] sm:$0xff]
    %v822 = vsel %vm124, %v819, 0
    %v825 = vsel %vm124, %v820, 0
    %827 = vmatprep.subr.mxu0 0.0
    %828 = vmatpush1.msra.mxu0 0.0
    %829 = vmatprep.subr.mxu0 0.0
    %830 = vmatpush1.msra.mxu0 0.0
    %831 = vmatprep.subr.mxu0 0.0
    %832 = vmatpush1.msra.mxu0 0.0
    %833 = vmatprep.subr.mxu0 0.0
    %834 = vmatpush1.msra.mxu0 0.0
    %835 = vmatprep.subr.mxu0 0.0
    %836 = vmatpush1.msra.mxu0 0.0
    %837 = vmatprep.subr.mxu0 0.0
    %838 = vmatpush1.msra.mxu0 0.0
    %839 = vmatprep.subr.mxu0 0.0
    %840 = vmatpush1.msra.mxu0 0.0
    %841 = vmatprep.subr.mxu0 0.0
    %842 = vmatpush1.msra.mxu0 0.0
    %843 = vmatprep.subr.mxu0 0.0
    %844 = vmatpush1.msra.mxu0 0.0
    %845 = vmatprep.subr.mxu0 0.0
    %846 = vmatpush1.msra.mxu0 0.0
    %847 = vmatprep.subr.mxu0 0.0
    %848 = vmatpush1.msra.mxu0 0.0
    %849 = vmatprep.subr.mxu0 0.0
    %850 = vmatpush1.msra.mxu0 0.0
    %851 = vmatprep.subr.mxu0 0.0
    %852 = vmatpush1.msra.mxu0 0.0
    %853 = vmatprep.subr.mxu0 0.0
    %854 = vmatpush1.msra.mxu0 0.0
    %855 = vmatprep.subr.mxu0 0.0
    %856 = vmatpush1.msra.mxu0 %v106
    %857 = vmatprep.subr.mxu0 0.0
    %858 = vmatpush1.msra.mxu0 %v105
    %859 = vmatprep.subr.mxu0 0.0
    %860 = vmatpush2.msra.mxu0 0.0
    %861 = vmatprep.subr.mxu0 0.0
    %862 = vmatpush2.msra.mxu0 0.0
    %863 = vmatprep.subr.mxu0 0.0
    %864 = vmatpush2.msra.mxu0 0.0
    %865 = vmatprep.subr.mxu0 0.0
    %866 = vmatpush2.msra.mxu0 0.0
    %867 = vmatprep.subr.mxu0 0.0
    %868 = vmatpush2.msra.mxu0 0.0
    %869 = vmatprep.subr.mxu0 0.0
    %870 = vmatpush2.msra.mxu0 0.0
    %871 = vmatprep.subr.mxu0 0.0
    %872 = vmatpush2.msra.mxu0 0.0
    %873 = vmatprep.subr.mxu0 0.0
    %874 = vmatpush2.msra.mxu0 0.0
    %875 = vmatprep.subr.mxu0 0.0
    %876 = vmatpush2.msra.mxu0 0.0
    %877 = vmatprep.subr.mxu0 0.0
    %878 = vmatpush2.msra.mxu0 0.0
    %879 = vmatprep.subr.mxu0 0.0
    %880 = vmatpush2.msra.mxu0 0.0
    %881 = vmatprep.subr.mxu0 0.0
    %882 = vmatpush2.msra.mxu0 0.0
    %883 = vmatprep.subr.mxu0 0.0
    %884 = vmatpush2.msra.mxu0 0.0
    %885 = vmatprep.subr.mxu0 0.0
    %886 = vmatpush2.msra.mxu0 0.0
    %887 = vmatprep.subr.mxu0 0.0
    %888 = vmatpush2.msra.mxu0 0.0
    %889 = vmatprep.subr.mxu0 0.0
    %890 = vmatpush2.msra.mxu0 0.0
    %891 = vmatprep.mubr.f32.mxu0 0.0
    %892 = vmatmul.mubr.f32.gmra.mxu0 %v822
    %v893 = vpop.f32.mrf.mxu0
    %v894 = vadd.f32 %v122, %v893
    %v895 = vpop.f32.mrf.mxu0
    %896 = vmatprep.mubr.f32.mxu0 0.0
    %897 = vmatmul.mubr.f32.gmra.mxu0 %v825
    %v898 = vpop.f32.mrf.mxu0
    %v899 = vadd.f32 %v122, %v898
    %v900 = vpop.f32.mrf.mxu0
    %901 = vdwg.mxu0
    %s902 = scalar_lea.vmem [#allocation2], 128
    %903 = vst.msk [vmem:[%s902] sm:$0xff] %vm206, %v894
    %904 = vst.msk [vmem:[%s902 + $0x8] sm:$0xff] %vm206, %v899
    %s905 = scalar_lea.vmem [#allocation4], 144
    %v906 = vld [vmem:[%s905] sm:$0xff]
    %v907 = vld [vmem:[%s905 + $0x8] sm:$0xff]
    %v909 = vsel %vm124, %v906, 0
    %v912 = vsel %vm124, %v907, 0
    %914 = vmatprep.subr.mxu0 0.0
    %915 = vmatpush1.msra.mxu0 0.0
    %916 = vmatprep.subr.mxu0 0.0
    %917 = vmatpush1.msra.mxu0 0.0
    %918 = vmatprep.subr.mxu0 0.0
    %919 = vmatpush1.msra.mxu0 0.0
    %920 = vmatprep.subr.mxu0 0.0
    %921 = vmatpush1.msra.mxu0 0.0
    %922 = vmatprep.subr.mxu0 0.0
    %923 = vmatpush1.msra.mxu0 0.0
    %924 = vmatprep.subr.mxu0 0.0
    %925 = vmatpush1.msra.mxu0 0.0
    %926 = vmatprep.subr.mxu0 0.0
    %927 = vmatpush1.msra.mxu0 0.0
    %928 = vmatprep.subr.mxu0 0.0
    %929 = vmatpush1.msra.mxu0 0.0
    %930 = vmatprep.subr.mxu0 0.0
    %931 = vmatpush1.msra.mxu0 0.0
    %932 = vmatprep.subr.mxu0 0.0
    %933 = vmatpush1.msra.mxu0 0.0
    %934 = vmatprep.subr.mxu0 0.0
    %935 = vmatpush1.msra.mxu0 0.0
    %936 = vmatprep.subr.mxu0 0.0
    %937 = vmatpush1.msra.mxu0 0.0
    %938 = vmatprep.subr.mxu0 0.0
    %939 = vmatpush1.msra.mxu0 0.0
    %940 = vmatprep.subr.mxu0 0.0
    %941 = vmatpush1.msra.mxu0 0.0
    %942 = vmatprep.subr.mxu0 0.0
    %943 = vmatpush1.msra.mxu0 %v106
    %944 = vmatprep.subr.mxu0 0.0
    %945 = vmatpush1.msra.mxu0 %v105
    %946 = vmatprep.subr.mxu0 0.0
    %947 = vmatpush2.msra.mxu0 0.0
    %948 = vmatprep.subr.mxu0 0.0
    %949 = vmatpush2.msra.mxu0 0.0
    %950 = vmatprep.subr.mxu0 0.0
    %951 = vmatpush2.msra.mxu0 0.0
    %952 = vmatprep.subr.mxu0 0.0
    %953 = vmatpush2.msra.mxu0 0.0
    %954 = vmatprep.subr.mxu0 0.0
    %955 = vmatpush2.msra.mxu0 0.0
    %956 = vmatprep.subr.mxu0 0.0
    %957 = vmatpush2.msra.mxu0 0.0
    %958 = vmatprep.subr.mxu0 0.0
    %959 = vmatpush2.msra.mxu0 0.0
    %960 = vmatprep.subr.mxu0 0.0
    %961 = vmatpush2.msra.mxu0 0.0
    %962 = vmatprep.subr.mxu0 0.0
    %963 = vmatpush2.msra.mxu0 0.0
    %964 = vmatprep.subr.mxu0 0.0
    %965 = vmatpush2.msra.mxu0 0.0
    %966 = vmatprep.subr.mxu0 0.0
    %967 = vmatpush2.msra.mxu0 0.0
    %968 = vmatprep.subr.mxu0 0.0
    %969 = vmatpush2.msra.mxu0 0.0
    %970 = vmatprep.subr.mxu0 0.0
    %971 = vmatpush2.msra.mxu0 0.0
    %972 = vmatprep.subr.mxu0 0.0
    %973 = vmatpush2.msra.mxu0 0.0
    %974 = vmatprep.subr.mxu0 0.0
    %975 = vmatpush2.msra.mxu0 0.0
    %976 = vmatprep.subr.mxu0 0.0
    %977 = vmatpush2.msra.mxu0 0.0
    %978 = vmatprep.mubr.f32.mxu0 0.0
    %979 = vmatmul.mubr.f32.gmra.mxu0 %v909
    %v980 = vpop.f32.mrf.mxu0
    %v981 = vadd.f32 %v122, %v980
    %v982 = vpop.f32.mrf.mxu0
    %983 = vmatprep.mubr.f32.mxu0 0.0
    %984 = vmatmul.mubr.f32.gmra.mxu0 %v912
    %v985 = vpop.f32.mrf.mxu0
    %v986 = vadd.f32 %v122, %v985
    %v987 = vpop.f32.mrf.mxu0
    %988 = vdwg.mxu0
    %s989 = scalar_lea.vmem [#allocation2], 144
    %990 = vst.msk [vmem:[%s989] sm:$0xff] %vm206, %v981
    %991 = vst.msk [vmem:[%s989 + $0x8] sm:$0xff] %vm206, %v986
    %v992 = vlaneseq
    %v993 = vand.u32 %v992, 127
    %vm994 = vcmp.lt.s32.totalorder %v993, 32
    %v995 = vld [vmem:[%s2] sm:$0xff]
    %v996 = vld [vmem:[%s2 + $0x8] sm:$0xff]
    %v997 = vsub.s32 %v995, 1
    %v998 = vsub.s32 %v996, 1
    %v999 = vld [vmem:[%s3] sm:$0xff]
    %v1000 = vld [vmem:[%s3 + $0x8] sm:$0xff]
    %v1001 = vsub.s32 %v999, 1
    %v1002 = vsub.s32 %v1000, 1
    %v1003 = vsel %vm994, 1, 0
    %vm1004 = vcmp.eq.s32.totalorder %v1003, 1
    %1005 = vset.pattern.permute.xlu0 0
    %1006 = vperm.xlu0 %1005, %v997
    %v1007 = vpop.permute.xlu0 %1006
    %1008 = vset.pattern.permute.xlu0 0
    %1009 = vperm.xlu0 %1008, %v998
    %v1010 = vpop.permute.xlu0 %1009
    %1011 = vset.pattern.permute.xlu0 0
    %1012 = vperm.xlu0 %1011, %v1001
    %v1013 = vpop.permute.xlu0 %1012
    %1014 = vset.pattern.permute.xlu0 0
    %1015 = vperm.xlu0 %1014, %v1002
    %v1016 = vpop.permute.xlu0 %1015
    %v1017 = vsel %vm1004, %v1007, %v1013
    %v1018 = vsel %vm1004, %v1010, %v1016
    %v1019 = vld [vmem:[#allocation2] sm:$0xff]
    %v1020 = vld [vmem:[#allocation2 + $0x8] sm:$0xff]
    %v1021 = vtanh.pop %v1019
    %v1022 = vtanh.pop %v1020
    %vm1023 = vcmp.eq.s32.totalorder %v1017, 0
    %vm1024 = vcmp.eq.s32.totalorder %v1018, 0
    %v1025 = vsel %vm1023, %v1021, 0.0
    %v1026 = vsel %vm1024, %v1022, 0.0
    %v1028 = vsel %vm206, %v1021, 0
    %v1031 = vsel %vm206, %v1022, 0
    %1033 = vmatprep.subr.mxu0 0.0
    %1034 = vmatpush1.msra.mxu0 0.0
    %1035 = vmatprep.subr.mxu0 0.0
    %1036 = vmatpush1.msra.mxu0 0.0
    %1037 = vmatprep.subr.mxu0 0.0
    %1038 = vmatpush1.msra.mxu0 0.0
    %1039 = vmatprep.subr.mxu0 0.0
    %1040 = vmatpush1.msra.mxu0 0.0
    %1041 = vmatprep.subr.mxu0 0.0
    %1042 = vmatpush1.msra.mxu0 0.0
    %1043 = vmatprep.subr.mxu0 0.0
    %1044 = vmatpush1.msra.mxu0 0.0
    %1045 = vmatprep.subr.mxu0 0.0
    %1046 = vmatpush1.msra.mxu0 0.0
    %1047 = vmatprep.subr.mxu0 0.0
    %1048 = vmatpush1.msra.mxu0 0.0
    %1049 = vmatprep.subr.mxu0 0.0
    %1050 = vmatpush1.msra.mxu0 %v114
    %1051 = vmatprep.subr.mxu0 0.0
    %1052 = vmatpush1.msra.mxu0 %v113
    %1053 = vmatprep.subr.mxu0 0.0
    %1054 = vmatpush1.msra.mxu0 %v112
    %1055 = vmatprep.subr.mxu0 0.0
    %1056 = vmatpush1.msra.mxu0 %v111
    %1057 = vmatprep.subr.mxu0 0.0
    %1058 = vmatpush1.msra.mxu0 %v110
    %1059 = vmatprep.subr.mxu0 0.0
    %1060 = vmatpush1.msra.mxu0 %v109
    %1061 = vmatprep.subr.mxu0 0.0
    %1062 = vmatpush1.msra.mxu0 %v108
    %1063 = vmatprep.subr.mxu0 0.0
    %1064 = vmatpush1.msra.mxu0 %v107
    %1065 = vmatprep.subr.mxu0 0.0
    %1066 = vmatpush2.msra.mxu0 0.0
    %1067 = vmatprep.subr.mxu0 0.0
    %1068 = vmatpush2.msra.mxu0 0.0
    %1069 = vmatprep.subr.mxu0 0.0
    %1070 = vmatpush2.msra.mxu0 0.0
    %1071 = vmatprep.subr.mxu0 0.0
    %1072 = vmatpush2.msra.mxu0 0.0
    %1073 = vmatprep.subr.mxu0 0.0
    %1074 = vmatpush2.msra.mxu0 0.0
    %1075 = vmatprep.subr.mxu0 0.0
    %1076 = vmatpush2.msra.mxu0 0.0
    %1077 = vmatprep.subr.mxu0 0.0
    %1078 = vmatpush2.msra.mxu0 0.0
    %1079 = vmatprep.subr.mxu0 0.0
    %1080 = vmatpush2.msra.mxu0 0.0
    %1081 = vmatprep.subr.mxu0 0.0
    %1082 = vmatpush2.msra.mxu0 0.0
    %1083 = vmatprep.subr.mxu0 0.0
    %1084 = vmatpush2.msra.mxu0 0.0
    %1085 = vmatprep.subr.mxu0 0.0
    %1086 = vmatpush2.msra.mxu0 0.0
    %1087 = vmatprep.subr.mxu0 0.0
    %1088 = vmatpush2.msra.mxu0 0.0
    %1089 = vmatprep.subr.mxu0 0.0
    %1090 = vmatpush2.msra.mxu0 0.0
    %1091 = vmatprep.subr.mxu0 0.0
    %1092 = vmatpush2.msra.mxu0 0.0
    %1093 = vmatprep.subr.mxu0 0.0
    %1094 = vmatpush2.msra.mxu0 0.0
    %1095 = vmatprep.subr.mxu0 0.0
    %1096 = vmatpush2.msra.mxu0 0.0
    %1097 = vmatprep.mubr.f32.mxu0 0.0
    %1098 = vmatmul.mubr.f32.gmra.mxu0 %v1028
    %v1099 = vpop.f32.mrf.mxu0
    %v1100 = vadd.f32 0.0, %v1099
    %v1101 = vpop.f32.mrf.mxu0
    %1102 = vmatprep.mubr.f32.mxu0 0.0
    %1103 = vmatmul.mubr.f32.gmra.mxu0 %v1031
    %v1104 = vpop.f32.mrf.mxu0
    %v1105 = vadd.f32 0.0, %v1104
    %v1106 = vpop.f32.mrf.mxu0
    %1107 = vdwg.mxu0
    %v1108 = vld [vmem:[%s293] sm:$0xff]
    %v1109 = vld [vmem:[%s293 + $0x8] sm:$0xff]
    %v1110 = vadd.f32 %v1108, %v1100
    %v1111 = vadd.f32 %v1109, %v1105
    %v1112 = vtanh.pop %v1110
    %v1113 = vtanh.pop %v1111
    %vm1114 = vcmp.eq.s32.totalorder %v1017, 1
    %vm1115 = vcmp.eq.s32.totalorder %v1018, 1
    %v1116 = vsel %vm1114, %v1112, %v1025
    %v1117 = vsel %vm1115, %v1113, %v1026
    %v1119 = vsel %vm206, %v1112, 0
    %v1122 = vsel %vm206, %v1113, 0
    %1124 = vmatprep.subr.mxu0 0.0
    %1125 = vmatpush1.msra.mxu0 0.0
    %1126 = vmatprep.subr.mxu0 0.0
    %1127 = vmatpush1.msra.mxu0 0.0
    %1128 = vmatprep.subr.mxu0 0.0
    %1129 = vmatpush1.msra.mxu0 0.0
    %1130 = vmatprep.subr.mxu0 0.0
    %1131 = vmatpush1.msra.mxu0 0.0
    %1132 = vmatprep.subr.mxu0 0.0
    %1133 = vmatpush1.msra.mxu0 0.0
    %1134 = vmatprep.subr.mxu0 0.0
    %1135 = vmatpush1.msra.mxu0 0.0
    %1136 = vmatprep.subr.mxu0 0.0
    %1137 = vmatpush1.msra.mxu0 0.0
    %1138 = vmatprep.subr.mxu0 0.0
    %1139 = vmatpush1.msra.mxu0 0.0
    %1140 = vmatprep.subr.mxu0 0.0
    %1141 = vmatpush1.msra.mxu0 %v114
    %1142 = vmatprep.subr.mxu0 0.0
    %1143 = vmatpush1.msra.mxu0 %v113
    %1144 = vmatprep.subr.mxu0 0.0
    %1145 = vmatpush1.msra.mxu0 %v112
    %1146 = vmatprep.subr.mxu0 0.0
    %1147 = vmatpush1.msra.mxu0 %v111
    %1148 = vmatprep.subr.mxu0 0.0
    %1149 = vmatpush1.msra.mxu0 %v110
    %1150 = vmatprep.subr.mxu0 0.0
    %1151 = vmatpush1.msra.mxu0 %v109
    %1152 = vmatprep.subr.mxu0 0.0
    %1153 = vmatpush1.msra.mxu0 %v108
    %1154 = vmatprep.subr.mxu0 0.0
    %1155 = vmatpush1.msra.mxu0 %v107
    %1156 = vmatprep.subr.mxu0 0.0
    %1157 = vmatpush2.msra.mxu0 0.0
    %1158 = vmatprep.subr.mxu0 0.0
    %1159 = vmatpush2.msra.mxu0 0.0
    %1160 = vmatprep.subr.mxu0 0.0
    %1161 = vmatpush2.msra.mxu0 0.0
    %1162 = vmatprep.subr.mxu0 0.0
    %1163 = vmatpush2.msra.mxu0 0.0
    %1164 = vmatprep.subr.mxu0 0.0
    %1165 = vmatpush2.msra.mxu0 0.0
    %1166 = vmatprep.subr.mxu0 0.0
    %1167 = vmatpush2.msra.mxu0 0.0
    %1168 = vmatprep.subr.mxu0 0.0
    %1169 = vmatpush2.msra.mxu0 0.0
    %1170 = vmatprep.subr.mxu0 0.0
    %1171 = vmatpush2.msra.mxu0 0.0
    %1172 = vmatprep.subr.mxu0 0.0
    %1173 = vmatpush2.msra.mxu0 0.0
    %1174 = vmatprep.subr.mxu0 0.0
    %1175 = vmatpush2.msra.mxu0 0.0
    %1176 = vmatprep.subr.mxu0 0.0
    %1177 = vmatpush2.msra.mxu0 0.0
    %1178 = vmatprep.subr.mxu0 0.0
    %1179 = vmatpush2.msra.mxu0 0.0
    %1180 = vmatprep.subr.mxu0 0.0
    %1181 = vmatpush2.msra.mxu0 0.0
    %1182 = vmatprep.subr.mxu0 0.0
    %1183 = vmatpush2.msra.mxu0 0.0
    %1184 = vmatprep.subr.mxu0 0.0
    %1185 = vmatpush2.msra.mxu0 0.0
    %1186 = vmatprep.subr.mxu0 0.0
    %1187 = vmatpush2.msra.mxu0 0.0
    %1188 = vmatprep.mubr.f32.mxu0 0.0
    %1189 = vmatmul.mubr.f32.gmra.mxu0 %v1119
    %v1190 = vpop.f32.mrf.mxu0
    %v1191 = vadd.f32 0.0, %v1190
    %v1192 = vpop.f32.mrf.mxu0
    %1193 = vmatprep.mubr.f32.mxu0 0.0
    %1194 = vmatmul.mubr.f32.gmra.mxu0 %v1122
    %v1195 = vpop.f32.mrf.mxu0
    %v1196 = vadd.f32 0.0, %v1195
    %v1197 = vpop.f32.mrf.mxu0
    %1198 = vdwg.mxu0
    %v1199 = vld [vmem:[%s380] sm:$0xff]
    %v1200 = vld [vmem:[%s380 + $0x8] sm:$0xff]
    %v1201 = vadd.f32 %v1199, %v1191
    %v1202 = vadd.f32 %v1200, %v1196
    %v1203 = vtanh.pop %v1201
    %v1204 = vtanh.pop %v1202
    %vm1205 = vcmp.eq.s32.totalorder %v1017, 2
    %vm1206 = vcmp.eq.s32.totalorder %v1018, 2
    %v1207 = vsel %vm1205, %v1203, %v1116
    %v1208 = vsel %vm1206, %v1204, %v1117
    %v1210 = vsel %vm206, %v1203, 0
    %v1213 = vsel %vm206, %v1204, 0
    %1215 = vmatprep.subr.mxu0 0.0
    %1216 = vmatpush1.msra.mxu0 0.0
    %1217 = vmatprep.subr.mxu0 0.0
    %1218 = vmatpush1.msra.mxu0 0.0
    %1219 = vmatprep.subr.mxu0 0.0
    %1220 = vmatpush1.msra.mxu0 0.0
    %1221 = vmatprep.subr.mxu0 0.0
    %1222 = vmatpush1.msra.mxu0 0.0
    %1223 = vmatprep.subr.mxu0 0.0
    %1224 = vmatpush1.msra.mxu0 0.0
    %1225 = vmatprep.subr.mxu0 0.0
    %1226 = vmatpush1.msra.mxu0 0.0
    %1227 = vmatprep.subr.mxu0 0.0
    %1228 = vmatpush1.msra.mxu0 0.0
    %1229 = vmatprep.subr.mxu0 0.0
    %1230 = vmatpush1.msra.mxu0 0.0
    %1231 = vmatprep.subr.mxu0 0.0
    %1232 = vmatpush1.msra.mxu0 %v114
    %1233 = vmatprep.subr.mxu0 0.0
    %1234 = vmatpush1.msra.mxu0 %v113
    %1235 = vmatprep.subr.mxu0 0.0
    %1236 = vmatpush1.msra.mxu0 %v112
    %1237 = vmatprep.subr.mxu0 0.0
    %1238 = vmatpush1.msra.mxu0 %v111
    %1239 = vmatprep.subr.mxu0 0.0
    %1240 = vmatpush1.msra.mxu0 %v110
    %1241 = vmatprep.subr.mxu0 0.0
    %1242 = vmatpush1.msra.mxu0 %v109
    %1243 = vmatprep.subr.mxu0 0.0
    %1244 = vmatpush1.msra.mxu0 %v108
    %1245 = vmatprep.subr.mxu0 0.0
    %1246 = vmatpush1.msra.mxu0 %v107
    %1247 = vmatprep.subr.mxu0 0.0
    %1248 = vmatpush2.msra.mxu0 0.0
    %1249 = vmatprep.subr.mxu0 0.0
    %1250 = vmatpush2.msra.mxu0 0.0
    %1251 = vmatprep.subr.mxu0 0.0
    %1252 = vmatpush2.msra.mxu0 0.0
    %1253 = vmatprep.subr.mxu0 0.0
    %1254 = vmatpush2.msra.mxu0 0.0
    %1255 = vmatprep.subr.mxu0 0.0
    %1256 = vmatpush2.msra.mxu0 0.0
    %1257 = vmatprep.subr.mxu0 0.0
    %1258 = vmatpush2.msra.mxu0 0.0
    %1259 = vmatprep.subr.mxu0 0.0
    %1260 = vmatpush2.msra.mxu0 0.0
    %1261 = vmatprep.subr.mxu0 0.0
    %1262 = vmatpush2.msra.mxu0 0.0
    %1263 = vmatprep.subr.mxu0 0.0
    %1264 = vmatpush2.msra.mxu0 0.0
    %1265 = vmatprep.subr.mxu0 0.0
    %1266 = vmatpush2.msra.mxu0 0.0
    %1267 = vmatprep.subr.mxu0 0.0
    %1268 = vmatpush2.msra.mxu0 0.0
    %1269 = vmatprep.subr.mxu0 0.0
    %1270 = vmatpush2.msra.mxu0 0.0
    %1271 = vmatprep.subr.mxu0 0.0
    %1272 = vmatpush2.msra.mxu0 0.0
    %1273 = vmatprep.subr.mxu0 0.0
    %1274 = vmatpush2.msra.mxu0 0.0
    %1275 = vmatprep.subr.mxu0 0.0
    %1276 = vmatpush2.msra.mxu0 0.0
    %1277 = vmatprep.subr.mxu0 0.0
    %1278 = vmatpush2.msra.mxu0 0.0
    %1279 = vmatprep.mubr.f32.mxu0 0.0
    %1280 = vmatmul.mubr.f32.gmra.mxu0 %v1210
    %v1281 = vpop.f32.mrf.mxu0
    %v1282 = vadd.f32 0.0, %v1281
    %v1283 = vpop.f32.mrf.mxu0
    %1284 = vmatprep.mubr.f32.mxu0 0.0
    %1285 = vmatmul.mubr.f32.gmra.mxu0 %v1213
    %v1286 = vpop.f32.mrf.mxu0
    %v1287 = vadd.f32 0.0, %v1286
    %v1288 = vpop.f32.mrf.mxu0
    %1289 = vdwg.mxu0
    %v1290 = vld [vmem:[%s467] sm:$0xff]
    %v1291 = vld [vmem:[%s467 + $0x8] sm:$0xff]
    %v1292 = vadd.f32 %v1290, %v1282
    %v1293 = vadd.f32 %v1291, %v1287
    %v1294 = vtanh.pop %v1292
    %v1295 = vtanh.pop %v1293
    %vm1296 = vcmp.eq.s32.totalorder %v1017, 3
    %vm1297 = vcmp.eq.s32.totalorder %v1018, 3
    %v1298 = vsel %vm1296, %v1294, %v1207
    %v1299 = vsel %vm1297, %v1295, %v1208
    %v1301 = vsel %vm206, %v1294, 0
    %v1304 = vsel %vm206, %v1295, 0
    %1306 = vmatprep.subr.mxu0 0.0
    %1307 = vmatpush1.msra.mxu0 0.0
    %1308 = vmatprep.subr.mxu0 0.0
    %1309 = vmatpush1.msra.mxu0 0.0
    %1310 = vmatprep.subr.mxu0 0.0
    %1311 = vmatpush1.msra.mxu0 0.0
    %1312 = vmatprep.subr.mxu0 0.0
    %1313 = vmatpush1.msra.mxu0 0.0
    %1314 = vmatprep.subr.mxu0 0.0
    %1315 = vmatpush1.msra.mxu0 0.0
    %1316 = vmatprep.subr.mxu0 0.0
    %1317 = vmatpush1.msra.mxu0 0.0
    %1318 = vmatprep.subr.mxu0 0.0
    %1319 = vmatpush1.msra.mxu0 0.0
    %1320 = vmatprep.subr.mxu0 0.0
    %1321 = vmatpush1.msra.mxu0 0.0
    %1322 = vmatprep.subr.mxu0 0.0
    %1323 = vmatpush1.msra.mxu0 %v114
    %1324 = vmatprep.subr.mxu0 0.0
    %1325 = vmatpush1.msra.mxu0 %v113
    %1326 = vmatprep.subr.mxu0 0.0
    %1327 = vmatpush1.msra.mxu0 %v112
    %1328 = vmatprep.subr.mxu0 0.0
    %1329 = vmatpush1.msra.mxu0 %v111
    %1330 = vmatprep.subr.mxu0 0.0
    %1331 = vmatpush1.msra.mxu0 %v110
    %1332 = vmatprep.subr.mxu0 0.0
    %1333 = vmatpush1.msra.mxu0 %v109
    %1334 = vmatprep.subr.mxu0 0.0
    %1335 = vmatpush1.msra.mxu0 %v108
    %1336 = vmatprep.subr.mxu0 0.0
    %1337 = vmatpush1.msra.mxu0 %v107
    %1338 = vmatprep.subr.mxu0 0.0
    %1339 = vmatpush2.msra.mxu0 0.0
    %1340 = vmatprep.subr.mxu0 0.0
    %1341 = vmatpush2.msra.mxu0 0.0
    %1342 = vmatprep.subr.mxu0 0.0
    %1343 = vmatpush2.msra.mxu0 0.0
    %1344 = vmatprep.subr.mxu0 0.0
    %1345 = vmatpush2.msra.mxu0 0.0
    %1346 = vmatprep.subr.mxu0 0.0
    %1347 = vmatpush2.msra.mxu0 0.0
    %1348 = vmatprep.subr.mxu0 0.0
    %1349 = vmatpush2.msra.mxu0 0.0
    %1350 = vmatprep.subr.mxu0 0.0
    %1351 = vmatpush2.msra.mxu0 0.0
    %1352 = vmatprep.subr.mxu0 0.0
    %1353 = vmatpush2.msra.mxu0 0.0
    %1354 = vmatprep.subr.mxu0 0.0
    %1355 = vmatpush2.msra.mxu0 0.0
    %1356 = vmatprep.subr.mxu0 0.0
    %1357 = vmatpush2.msra.mxu0 0.0
    %1358 = vmatprep.subr.mxu0 0.0
    %1359 = vmatpush2.msra.mxu0 0.0
    %1360 = vmatprep.subr.mxu0 0.0
    %1361 = vmatpush2.msra.mxu0 0.0
    %1362 = vmatprep.subr.mxu0 0.0
    %1363 = vmatpush2.msra.mxu0 0.0
    %1364 = vmatprep.subr.mxu0 0.0
    %1365 = vmatpush2.msra.mxu0 0.0
    %1366 = vmatprep.subr.mxu0 0.0
    %1367 = vmatpush2.msra.mxu0 0.0
    %1368 = vmatprep.subr.mxu0 0.0
    %1369 = vmatpush2.msra.mxu0 0.0
    %1370 = vmatprep.mubr.f32.mxu0 0.0
    %1371 = vmatmul.mubr.f32.gmra.mxu0 %v1301
    %v1372 = vpop.f32.mrf.mxu0
    %v1373 = vadd.f32 0.0, %v1372
    %v1374 = vpop.f32.mrf.mxu0
    %1375 = vmatprep.mubr.f32.mxu0 0.0
    %1376 = vmatmul.mubr.f32.gmra.mxu0 %v1304
    %v1377 = vpop.f32.mrf.mxu0
    %v1378 = vadd.f32 0.0, %v1377
    %v1379 = vpop.f32.mrf.mxu0
    %1380 = vdwg.mxu0
    %v1381 = vld [vmem:[%s554] sm:$0xff]
    %v1382 = vld [vmem:[%s554 + $0x8] sm:$0xff]
    %v1383 = vadd.f32 %v1381, %v1373
    %v1384 = vadd.f32 %v1382, %v1378
    %v1385 = vtanh.pop %v1383
    %v1386 = vtanh.pop %v1384
    %vm1387 = vcmp.eq.s32.totalorder %v1017, 4
    %vm1388 = vcmp.eq.s32.totalorder %v1018, 4
    %v1389 = vsel %vm1387, %v1385, %v1298
    %v1390 = vsel %vm1388, %v1386, %v1299
    %v1392 = vsel %vm206, %v1385, 0
    %v1395 = vsel %vm206, %v1386, 0
    %1397 = vmatprep.subr.mxu0 0.0
    %1398 = vmatpush1.msra.mxu0 0.0
    %1399 = vmatprep.subr.mxu0 0.0
    %1400 = vmatpush1.msra.mxu0 0.0
    %1401 = vmatprep.subr.mxu0 0.0
    %1402 = vmatpush1.msra.mxu0 0.0
    %1403 = vmatprep.subr.mxu0 0.0
    %1404 = vmatpush1.msra.mxu0 0.0
    %1405 = vmatprep.subr.mxu0 0.0
    %1406 = vmatpush1.msra.mxu0 0.0
    %1407 = vmatprep.subr.mxu0 0.0
    %1408 = vmatpush1.msra.mxu0 0.0
    %1409 = vmatprep.subr.mxu0 0.0
    %1410 = vmatpush1.msra.mxu0 0.0
    %1411 = vmatprep.subr.mxu0 0.0
    %1412 = vmatpush1.msra.mxu0 0.0
    %1413 = vmatprep.subr.mxu0 0.0
    %1414 = vmatpush1.msra.mxu0 %v114
    %1415 = vmatprep.subr.mxu0 0.0
    %1416 = vmatpush1.msra.mxu0 %v113
    %1417 = vmatprep.subr.mxu0 0.0
    %1418 = vmatpush1.msra.mxu0 %v112
    %1419 = vmatprep.subr.mxu0 0.0
    %1420 = vmatpush1.msra.mxu0 %v111
    %1421 = vmatprep.subr.mxu0 0.0
    %1422 = vmatpush1.msra.mxu0 %v110
    %1423 = vmatprep.subr.mxu0 0.0
    %1424 = vmatpush1.msra.mxu0 %v109
    %1425 = vmatprep.subr.mxu0 0.0
    %1426 = vmatpush1.msra.mxu0 %v108
    %1427 = vmatprep.subr.mxu0 0.0
    %1428 = vmatpush1.msra.mxu0 %v107
    %1429 = vmatprep.subr.mxu0 0.0
    %1430 = vmatpush2.msra.mxu0 0.0
    %1431 = vmatprep.subr.mxu0 0.0
    %1432 = vmatpush2.msra.mxu0 0.0
    %1433 = vmatprep.subr.mxu0 0.0
    %1434 = vmatpush2.msra.mxu0 0.0
    %1435 = vmatprep.subr.mxu0 0.0
    %1436 = vmatpush2.msra.mxu0 0.0
    %1437 = vmatprep.subr.mxu0 0.0
    %1438 = vmatpush2.msra.mxu0 0.0
    %1439 = vmatprep.subr.mxu0 0.0
    %1440 = vmatpush2.msra.mxu0 0.0
    %1441 = vmatprep.subr.mxu0 0.0
    %1442 = vmatpush2.msra.mxu0 0.0
    %1443 = vmatprep.subr.mxu0 0.0
    %1444 = vmatpush2.msra.mxu0 0.0
    %1445 = vmatprep.subr.mxu0 0.0
    %1446 = vmatpush2.msra.mxu0 0.0
    %1447 = vmatprep.subr.mxu0 0.0
    %1448 = vmatpush2.msra.mxu0 0.0
    %1449 = vmatprep.subr.mxu0 0.0
    %1450 = vmatpush2.msra.mxu0 0.0
    %1451 = vmatprep.subr.mxu0 0.0
    %1452 = vmatpush2.msra.mxu0 0.0
    %1453 = vmatprep.subr.mxu0 0.0
    %1454 = vmatpush2.msra.mxu0 0.0
    %1455 = vmatprep.subr.mxu0 0.0
    %1456 = vmatpush2.msra.mxu0 0.0
    %1457 = vmatprep.subr.mxu0 0.0
    %1458 = vmatpush2.msra.mxu0 0.0
    %1459 = vmatprep.subr.mxu0 0.0
    %1460 = vmatpush2.msra.mxu0 0.0
    %1461 = vmatprep.mubr.f32.mxu0 0.0
    %1462 = vmatmul.mubr.f32.gmra.mxu0 %v1392
    %v1463 = vpop.f32.mrf.mxu0
    %v1464 = vadd.f32 0.0, %v1463
    %v1465 = vpop.f32.mrf.mxu0
    %1466 = vmatprep.mubr.f32.mxu0 0.0
    %1467 = vmatmul.mubr.f32.gmra.mxu0 %v1395
    %v1468 = vpop.f32.mrf.mxu0
    %v1469 = vadd.f32 0.0, %v1468
    %v1470 = vpop.f32.mrf.mxu0
    %1471 = vdwg.mxu0
    %v1472 = vld [vmem:[%s641] sm:$0xff]
    %v1473 = vld [vmem:[%s641 + $0x8] sm:$0xff]
    %v1474 = vadd.f32 %v1472, %v1464
    %v1475 = vadd.f32 %v1473, %v1469
    %v1476 = vtanh.pop %v1474
    %v1477 = vtanh.pop %v1475
    %vm1478 = vcmp.eq.s32.totalorder %v1017, 5
    %vm1479 = vcmp.eq.s32.totalorder %v1018, 5
    %v1480 = vsel %vm1478, %v1476, %v1389
    %v1481 = vsel %vm1479, %v1477, %v1390
    %v1483 = vsel %vm206, %v1476, 0
    %v1486 = vsel %vm206, %v1477, 0
    %1488 = vmatprep.subr.mxu0 0.0
    %1489 = vmatpush1.msra.mxu0 0.0
    %1490 = vmatprep.subr.mxu0 0.0
    %1491 = vmatpush1.msra.mxu0 0.0
    %1492 = vmatprep.subr.mxu0 0.0
    %1493 = vmatpush1.msra.mxu0 0.0
    %1494 = vmatprep.subr.mxu0 0.0
    %1495 = vmatpush1.msra.mxu0 0.0
    %1496 = vmatprep.subr.mxu0 0.0
    %1497 = vmatpush1.msra.mxu0 0.0
    %1498 = vmatprep.subr.mxu0 0.0
    %1499 = vmatpush1.msra.mxu0 0.0
    %1500 = vmatprep.subr.mxu0 0.0
    %1501 = vmatpush1.msra.mxu0 0.0
    %1502 = vmatprep.subr.mxu0 0.0
    %1503 = vmatpush1.msra.mxu0 0.0
    %1504 = vmatprep.subr.mxu0 0.0
    %1505 = vmatpush1.msra.mxu0 %v114
    %1506 = vmatprep.subr.mxu0 0.0
    %1507 = vmatpush1.msra.mxu0 %v113
    %1508 = vmatprep.subr.mxu0 0.0
    %1509 = vmatpush1.msra.mxu0 %v112
    %1510 = vmatprep.subr.mxu0 0.0
    %1511 = vmatpush1.msra.mxu0 %v111
    %1512 = vmatprep.subr.mxu0 0.0
    %1513 = vmatpush1.msra.mxu0 %v110
    %1514 = vmatprep.subr.mxu0 0.0
    %1515 = vmatpush1.msra.mxu0 %v109
    %1516 = vmatprep.subr.mxu0 0.0
    %1517 = vmatpush1.msra.mxu0 %v108
    %1518 = vmatprep.subr.mxu0 0.0
    %1519 = vmatpush1.msra.mxu0 %v107
    %1520 = vmatprep.subr.mxu0 0.0
    %1521 = vmatpush2.msra.mxu0 0.0
    %1522 = vmatprep.subr.mxu0 0.0
    %1523 = vmatpush2.msra.mxu0 0.0
    %1524 = vmatprep.subr.mxu0 0.0
    %1525 = vmatpush2.msra.mxu0 0.0
    %1526 = vmatprep.subr.mxu0 0.0
    %1527 = vmatpush2.msra.mxu0 0.0
    %1528 = vmatprep.subr.mxu0 0.0
    %1529 = vmatpush2.msra.mxu0 0.0
    %1530 = vmatprep.subr.mxu0 0.0
    %1531 = vmatpush2.msra.mxu0 0.0
    %1532 = vmatprep.subr.mxu0 0.0
    %1533 = vmatpush2.msra.mxu0 0.0
    %1534 = vmatprep.subr.mxu0 0.0
    %1535 = vmatpush2.msra.mxu0 0.0
    %1536 = vmatprep.subr.mxu0 0.0
    %1537 = vmatpush2.msra.mxu0 0.0
    %1538 = vmatprep.subr.mxu0 0.0
    %1539 = vmatpush2.msra.mxu0 0.0
    %1540 = vmatprep.subr.mxu0 0.0
    %1541 = vmatpush2.msra.mxu0 0.0
    %1542 = vmatprep.subr.mxu0 0.0
    %1543 = vmatpush2.msra.mxu0 0.0
    %1544 = vmatprep.subr.mxu0 0.0
    %1545 = vmatpush2.msra.mxu0 0.0
    %1546 = vmatprep.subr.mxu0 0.0
    %1547 = vmatpush2.msra.mxu0 0.0
    %1548 = vmatprep.subr.mxu0 0.0
    %1549 = vmatpush2.msra.mxu0 0.0
    %1550 = vmatprep.subr.mxu0 0.0
    %1551 = vmatpush2.msra.mxu0 0.0
    %1552 = vmatprep.mubr.f32.mxu0 0.0
    %1553 = vmatmul.mubr.f32.gmra.mxu0 %v1483
    %v1554 = vpop.f32.mrf.mxu0
    %v1555 = vadd.f32 0.0, %v1554
    %v1556 = vpop.f32.mrf.mxu0
    %1557 = vmatprep.mubr.f32.mxu0 0.0
    %1558 = vmatmul.mubr.f32.gmra.mxu0 %v1486
    %v1559 = vpop.f32.mrf.mxu0
    %v1560 = vadd.f32 0.0, %v1559
    %v1561 = vpop.f32.mrf.mxu0
    %1562 = vdwg.mxu0
    %v1563 = vld [vmem:[%s728] sm:$0xff]
    %v1564 = vld [vmem:[%s728 + $0x8] sm:$0xff]
    %v1565 = vadd.f32 %v1563, %v1555
    %v1566 = vadd.f32 %v1564, %v1560
    %v1567 = vtanh.pop %v1565
    %v1568 = vtanh.pop %v1566
    %vm1569 = vcmp.eq.s32.totalorder %v1017, 6
    %vm1570 = vcmp.eq.s32.totalorder %v1018, 6
    %v1571 = vsel %vm1569, %v1567, %v1480
    %v1572 = vsel %vm1570, %v1568, %v1481
    %v1574 = vsel %vm206, %v1567, 0
    %v1577 = vsel %vm206, %v1568, 0
    %1579 = vmatprep.subr.mxu0 0.0
    %1580 = vmatpush1.msra.mxu0 0.0
    %1581 = vmatprep.subr.mxu0 0.0
    %1582 = vmatpush1.msra.mxu0 0.0
    %1583 = vmatprep.subr.mxu0 0.0
    %1584 = vmatpush1.msra.mxu0 0.0
    %1585 = vmatprep.subr.mxu0 0.0
    %1586 = vmatpush1.msra.mxu0 0.0
    %1587 = vmatprep.subr.mxu0 0.0
    %1588 = vmatpush1.msra.mxu0 0.0
    %1589 = vmatprep.subr.mxu0 0.0
    %1590 = vmatpush1.msra.mxu0 0.0
    %1591 = vmatprep.subr.mxu0 0.0
    %1592 = vmatpush1.msra.mxu0 0.0
    %1593 = vmatprep.subr.mxu0 0.0
    %1594 = vmatpush1.msra.mxu0 0.0
    %1595 = vmatprep.subr.mxu0 0.0
    %1596 = vmatpush1.msra.mxu0 %v114
    %1597 = vmatprep.subr.mxu0 0.0
    %1598 = vmatpush1.msra.mxu0 %v113
    %1599 = vmatprep.subr.mxu0 0.0
    %1600 = vmatpush1.msra.mxu0 %v112
    %1601 = vmatprep.subr.mxu0 0.0
    %1602 = vmatpush1.msra.mxu0 %v111
    %1603 = vmatprep.subr.mxu0 0.0
    %1604 = vmatpush1.msra.mxu0 %v110
    %1605 = vmatprep.subr.mxu0 0.0
    %1606 = vmatpush1.msra.mxu0 %v109
    %1607 = vmatprep.subr.mxu0 0.0
    %1608 = vmatpush1.msra.mxu0 %v108
    %1609 = vmatprep.subr.mxu0 0.0
    %1610 = vmatpush1.msra.mxu0 %v107
    %1611 = vmatprep.subr.mxu0 0.0
    %1612 = vmatpush2.msra.mxu0 0.0
    %1613 = vmatprep.subr.mxu0 0.0
    %1614 = vmatpush2.msra.mxu0 0.0
    %1615 = vmatprep.subr.mxu0 0.0
    %1616 = vmatpush2.msra.mxu0 0.0
    %1617 = vmatprep.subr.mxu0 0.0
    %1618 = vmatpush2.msra.mxu0 0.0
    %1619 = vmatprep.subr.mxu0 0.0
    %1620 = vmatpush2.msra.mxu0 0.0
    %1621 = vmatprep.subr.mxu0 0.0
    %1622 = vmatpush2.msra.mxu0 0.0
    %1623 = vmatprep.subr.mxu0 0.0
    %1624 = vmatpush2.msra.mxu0 0.0
    %1625 = vmatprep.subr.mxu0 0.0
    %1626 = vmatpush2.msra.mxu0 0.0
    %1627 = vmatprep.subr.mxu0 0.0
    %1628 = vmatpush2.msra.mxu0 0.0
    %1629 = vmatprep.subr.mxu0 0.0
    %1630 = vmatpush2.msra.mxu0 0.0
    %1631 = vmatprep.subr.mxu0 0.0
    %1632 = vmatpush2.msra.mxu0 0.0
    %1633 = vmatprep.subr.mxu0 0.0
    %1634 = vmatpush2.msra.mxu0 0.0
    %1635 = vmatprep.subr.mxu0 0.0
    %1636 = vmatpush2.msra.mxu0 0.0
    %1637 = vmatprep.subr.mxu0 0.0
    %1638 = vmatpush2.msra.mxu0 0.0
    %1639 = vmatprep.subr.mxu0 0.0
    %1640 = vmatpush2.msra.mxu0 0.0
    %1641 = vmatprep.subr.mxu0 0.0
    %1642 = vmatpush2.msra.mxu0 0.0
    %1643 = vmatprep.mubr.f32.mxu0 0.0
    %1644 = vmatmul.mubr.f32.gmra.mxu0 %v1574
    %v1645 = vpop.f32.mrf.mxu0
    %v1646 = vadd.f32 0.0, %v1645
    %v1647 = vpop.f32.mrf.mxu0
    %1648 = vmatprep.mubr.f32.mxu0 0.0
    %1649 = vmatmul.mubr.f32.gmra.mxu0 %v1577
    %v1650 = vpop.f32.mrf.mxu0
    %v1651 = vadd.f32 0.0, %v1650
    %v1652 = vpop.f32.mrf.mxu0
    %1653 = vdwg.mxu0
    %v1654 = vld [vmem:[%s815] sm:$0xff]
    %v1655 = vld [vmem:[%s815 + $0x8] sm:$0xff]
    %v1656 = vadd.f32 %v1654, %v1646
    %v1657 = vadd.f32 %v1655, %v1651
    %v1658 = vtanh.pop %v1656
    %v1659 = vtanh.pop %v1657
    %vm1660 = vcmp.eq.s32.totalorder %v1017, 7
    %vm1661 = vcmp.eq.s32.totalorder %v1018, 7
    %v1662 = vsel %vm1660, %v1658, %v1571
    %v1663 = vsel %vm1661, %v1659, %v1572
    %v1665 = vsel %vm206, %v1658, 0
    %v1668 = vsel %vm206, %v1659, 0
    %1670 = vmatprep.subr.mxu0 0.0
    %1671 = vmatpush1.msra.mxu0 0.0
    %1672 = vmatprep.subr.mxu0 0.0
    %1673 = vmatpush1.msra.mxu0 0.0
    %1674 = vmatprep.subr.mxu0 0.0
    %1675 = vmatpush1.msra.mxu0 0.0
    %1676 = vmatprep.subr.mxu0 0.0
    %1677 = vmatpush1.msra.mxu0 0.0
    %1678 = vmatprep.subr.mxu0 0.0
    %1679 = vmatpush1.msra.mxu0 0.0
    %1680 = vmatprep.subr.mxu0 0.0
    %1681 = vmatpush1.msra.mxu0 0.0
    %1682 = vmatprep.subr.mxu0 0.0
    %1683 = vmatpush1.msra.mxu0 0.0
    %1684 = vmatprep.subr.mxu0 0.0
    %1685 = vmatpush1.msra.mxu0 0.0
    %1686 = vmatprep.subr.mxu0 0.0
    %1687 = vmatpush1.msra.mxu0 %v114
    %1688 = vmatprep.subr.mxu0 0.0
    %1689 = vmatpush1.msra.mxu0 %v113
    %1690 = vmatprep.subr.mxu0 0.0
    %1691 = vmatpush1.msra.mxu0 %v112
    %1692 = vmatprep.subr.mxu0 0.0
    %1693 = vmatpush1.msra.mxu0 %v111
    %1694 = vmatprep.subr.mxu0 0.0
    %1695 = vmatpush1.msra.mxu0 %v110
    %1696 = vmatprep.subr.mxu0 0.0
    %1697 = vmatpush1.msra.mxu0 %v109
    %1698 = vmatprep.subr.mxu0 0.0
    %1699 = vmatpush1.msra.mxu0 %v108
    %1700 = vmatprep.subr.mxu0 0.0
    %1701 = vmatpush1.msra.mxu0 %v107
    %1702 = vmatprep.subr.mxu0 0.0
    %1703 = vmatpush2.msra.mxu0 0.0
    %1704 = vmatprep.subr.mxu0 0.0
    %1705 = vmatpush2.msra.mxu0 0.0
    %1706 = vmatprep.subr.mxu0 0.0
    %1707 = vmatpush2.msra.mxu0 0.0
    %1708 = vmatprep.subr.mxu0 0.0
    %1709 = vmatpush2.msra.mxu0 0.0
    %1710 = vmatprep.subr.mxu0 0.0
    %1711 = vmatpush2.msra.mxu0 0.0
    %1712 = vmatprep.subr.mxu0 0.0
    %1713 = vmatpush2.msra.mxu0 0.0
    %1714 = vmatprep.subr.mxu0 0.0
    %1715 = vmatpush2.msra.mxu0 0.0
    %1716 = vmatprep.subr.mxu0 0.0
    %1717 = vmatpush2.msra.mxu0 0.0
    %1718 = vmatprep.subr.mxu0 0.0
    %1719 = vmatpush2.msra.mxu0 0.0
    %1720 = vmatprep.subr.mxu0 0.0
    %1721 = vmatpush2.msra.mxu0 0.0
    %1722 = vmatprep.subr.mxu0 0.0
    %1723 = vmatpush2.msra.mxu0 0.0
    %1724 = vmatprep.subr.mxu0 0.0
    %1725 = vmatpush2.msra.mxu0 0.0
    %1726 = vmatprep.subr.mxu0 0.0
    %1727 = vmatpush2.msra.mxu0 0.0
    %1728 = vmatprep.subr.mxu0 0.0
    %1729 = vmatpush2.msra.mxu0 0.0
    %1730 = vmatprep.subr.mxu0 0.0
    %1731 = vmatpush2.msra.mxu0 0.0
    %1732 = vmatprep.subr.mxu0 0.0
    %1733 = vmatpush2.msra.mxu0 0.0
    %1734 = vmatprep.mubr.f32.mxu0 0.0
    %1735 = vmatmul.mubr.f32.gmra.mxu0 %v1665
    %v1736 = vpop.f32.mrf.mxu0
    %v1737 = vadd.f32 0.0, %v1736
    %v1738 = vpop.f32.mrf.mxu0
    %1739 = vmatprep.mubr.f32.mxu0 0.0
    %1740 = vmatmul.mubr.f32.gmra.mxu0 %v1668
    %v1741 = vpop.f32.mrf.mxu0
    %v1742 = vadd.f32 0.0, %v1741
    %v1743 = vpop.f32.mrf.mxu0
    %1744 = vdwg.mxu0
    %v1745 = vld [vmem:[%s902] sm:$0xff]
    %v1746 = vld [vmem:[%s902 + $0x8] sm:$0xff]
    %v1747 = vadd.f32 %v1745, %v1737
    %v1748 = vadd.f32 %v1746, %v1742
    %v1749 = vtanh.pop %v1747
    %v1750 = vtanh.pop %v1748
    %vm1751 = vcmp.eq.s32.totalorder %v1017, 8
    %vm1752 = vcmp.eq.s32.totalorder %v1018, 8
    %v1753 = vsel %vm1751, %v1749, %v1662
    %v1754 = vsel %vm1752, %v1750, %v1663
    %v1756 = vsel %vm206, %v1749, 0
    %v1759 = vsel %vm206, %v1750, 0
    %1761 = vmatprep.subr.mxu0 0.0
    %1762 = vmatpush1.msra.mxu0 0.0
    %1763 = vmatprep.subr.mxu0 0.0
    %1764 = vmatpush1.msra.mxu0 0.0
    %1765 = vmatprep.subr.mxu0 0.0
    %1766 = vmatpush1.msra.mxu0 0.0
    %1767 = vmatprep.subr.mxu0 0.0
    %1768 = vmatpush1.msra.mxu0 0.0
    %1769 = vmatprep.subr.mxu0 0.0
    %1770 = vmatpush1.msra.mxu0 0.0
    %1771 = vmatprep.subr.mxu0 0.0
    %1772 = vmatpush1.msra.mxu0 0.0
    %1773 = vmatprep.subr.mxu0 0.0
    %1774 = vmatpush1.msra.mxu0 0.0
    %1775 = vmatprep.subr.mxu0 0.0
    %1776 = vmatpush1.msra.mxu0 0.0
    %1777 = vmatprep.subr.mxu0 0.0
    %1778 = vmatpush1.msra.mxu0 %v114
    %1779 = vmatprep.subr.mxu0 0.0
    %1780 = vmatpush1.msra.mxu0 %v113
    %1781 = vmatprep.subr.mxu0 0.0
    %1782 = vmatpush1.msra.mxu0 %v112
    %1783 = vmatprep.subr.mxu0 0.0
    %1784 = vmatpush1.msra.mxu0 %v111
    %1785 = vmatprep.subr.mxu0 0.0
    %1786 = vmatpush1.msra.mxu0 %v110
    %1787 = vmatprep.subr.mxu0 0.0
    %1788 = vmatpush1.msra.mxu0 %v109
    %1789 = vmatprep.subr.mxu0 0.0
    %1790 = vmatpush1.msra.mxu0 %v108
    %1791 = vmatprep.subr.mxu0 0.0
    %1792 = vmatpush1.msra.mxu0 %v107
    %1793 = vmatprep.subr.mxu0 0.0
    %1794 = vmatpush2.msra.mxu0 0.0
    %1795 = vmatprep.subr.mxu0 0.0
    %1796 = vmatpush2.msra.mxu0 0.0
    %1797 = vmatprep.subr.mxu0 0.0
    %1798 = vmatpush2.msra.mxu0 0.0
    %1799 = vmatprep.subr.mxu0 0.0
    %1800 = vmatpush2.msra.mxu0 0.0
    %1801 = vmatprep.subr.mxu0 0.0
    %1802 = vmatpush2.msra.mxu0 0.0
    %1803 = vmatprep.subr.mxu0 0.0
    %1804 = vmatpush2.msra.mxu0 0.0
    %1805 = vmatprep.subr.mxu0 0.0
    %1806 = vmatpush2.msra.mxu0 0.0
    %1807 = vmatprep.subr.mxu0 0.0
    %1808 = vmatpush2.msra.mxu0 0.0
    %1809 = vmatprep.subr.mxu0 0.0
    %1810 = vmatpush2.msra.mxu0 0.0
    %1811 = vmatprep.subr.mxu0 0.0
    %1812 = vmatpush2.msra.mxu0 0.0
    %1813 = vmatprep.subr.mxu0 0.0
    %1814 = vmatpush2.msra.mxu0 0.0
    %1815 = vmatprep.subr.mxu0 0.0
    %1816 = vmatpush2.msra.mxu0 0.0
    %1817 = vmatprep.subr.mxu0 0.0
    %1818 = vmatpush2.msra.mxu0 0.0
    %1819 = vmatprep.subr.mxu0 0.0
    %1820 = vmatpush2.msra.mxu0 0.0
    %1821 = vmatprep.subr.mxu0 0.0
    %1822 = vmatpush2.msra.mxu0 0.0
    %1823 = vmatprep.subr.mxu0 0.0
    %1824 = vmatpush2.msra.mxu0 0.0
    %1825 = vmatprep.mubr.f32.mxu0 0.0
    %1826 = vmatmul.mubr.f32.gmra.mxu0 %v1756
    %v1827 = vpop.f32.mrf.mxu0
    %v1828 = vadd.f32 0.0, %v1827
    %v1829 = vpop.f32.mrf.mxu0
    %1830 = vmatprep.mubr.f32.mxu0 0.0
    %1831 = vmatmul.mubr.f32.gmra.mxu0 %v1759
    %v1832 = vpop.f32.mrf.mxu0
    %v1833 = vadd.f32 0.0, %v1832
    %v1834 = vpop.f32.mrf.mxu0
    %1835 = vdwg.mxu0
    %v1836 = vld [vmem:[%s989] sm:$0xff]
    %v1837 = vld [vmem:[%s989 + $0x8] sm:$0xff]
    %v1838 = vadd.f32 %v1836, %v1828
    %v1839 = vadd.f32 %v1837, %v1833
    %v1840 = vtanh.pop %v1838
    %v1841 = vtanh.pop %v1839
    %vm1842 = vcmp.eq.s32.totalorder %v1017, 9
    %vm1843 = vcmp.eq.s32.totalorder %v1018, 9
    %v1844 = vsel %vm1842, %v1840, %v1753
    %v1845 = vsel %vm1843, %v1841, %v1754
    %v1846 = vld [vmem:[%s0] sm:$0xff]
    %v1847 = vld [vmem:[%s0 + $0x8] sm:$0xff]
    %v1848 = vld [vmem:[#allocation10] sm:$0xff]
    %v1849 = vld [vmem:[#allocation10 + $0x8] sm:$0xff]
    %v1850 = vld [vmem:[%s8] sm:$0xff]
    %v1851 = vld [vmem:[%s8 + $0x8] sm:$0xff]
    %v1852 = vld [vmem:[%s8 + $0x10] sm:$0xff]
    %v1853 = vld [vmem:[%s8 + $0x18] sm:$0xff]
    %v1854 = vld [vmem:[%s8 + $0x20] sm:$0xff]
    %v1855 = vld [vmem:[%s8 + $0x28] sm:$0xff]
    %v1856 = vld [vmem:[%s8 + $0x30] sm:$0xff]
    %v1857 = vld [vmem:[%s8 + $0x38] sm:$0xff]
    %v1859 = vsel %vm206, %v1844, 0
    %v1862 = vsel %vm206, %v1845, 0
    %1864 = vmatprep.subr.mxu0 0.0
    %1865 = vmatpush1.msra.mxu0 0.0
    %1866 = vmatprep.subr.mxu0 0.0
    %1867 = vmatpush1.msra.mxu0 0.0
    %1868 = vmatprep.subr.mxu0 0.0
    %1869 = vmatpush1.msra.mxu0 0.0
    %1870 = vmatprep.subr.mxu0 0.0
    %1871 = vmatpush1.msra.mxu0 0.0
    %1872 = vmatprep.subr.mxu0 0.0
    %1873 = vmatpush1.msra.mxu0 0.0
    %1874 = vmatprep.subr.mxu0 0.0
    %1875 = vmatpush1.msra.mxu0 0.0
    %1876 = vmatprep.subr.mxu0 0.0
    %1877 = vmatpush1.msra.mxu0 0.0
    %1878 = vmatprep.subr.mxu0 0.0
    %1879 = vmatpush1.msra.mxu0 0.0
    %1880 = vmatprep.subr.mxu0 0.0
    %1881 = vmatpush1.msra.mxu0 %v1857
    %1882 = vmatprep.subr.mxu0 0.0
    %1883 = vmatpush1.msra.mxu0 %v1856
    %1884 = vmatprep.subr.mxu0 0.0
    %1885 = vmatpush1.msra.mxu0 %v1855
    %1886 = vmatprep.subr.mxu0 0.0
    %1887 = vmatpush1.msra.mxu0 %v1854
    %1888 = vmatprep.subr.mxu0 0.0
    %1889 = vmatpush1.msra.mxu0 %v1853
    %1890 = vmatprep.subr.mxu0 0.0
    %1891 = vmatpush1.msra.mxu0 %v1852
    %1892 = vmatprep.subr.mxu0 0.0
    %1893 = vmatpush1.msra.mxu0 %v1851
    %1894 = vmatprep.subr.mxu0 0.0
    %1895 = vmatpush1.msra.mxu0 %v1850
    %1896 = vmatprep.subr.mxu0 0.0
    %1897 = vmatpush2.msra.mxu0 0.0
    %1898 = vmatprep.subr.mxu0 0.0
    %1899 = vmatpush2.msra.mxu0 0.0
    %1900 = vmatprep.subr.mxu0 0.0
    %1901 = vmatpush2.msra.mxu0 0.0
    %1902 = vmatprep.subr.mxu0 0.0
    %1903 = vmatpush2.msra.mxu0 0.0
    %1904 = vmatprep.subr.mxu0 0.0
    %1905 = vmatpush2.msra.mxu0 0.0
    %1906 = vmatprep.subr.mxu0 0.0
    %1907 = vmatpush2.msra.mxu0 0.0
    %1908 = vmatprep.subr.mxu0 0.0
    %1909 = vmatpush2.msra.mxu0 0.0
    %1910 = vmatprep.subr.mxu0 0.0
    %1911 = vmatpush2.msra.mxu0 0.0
    %1912 = vmatprep.subr.mxu0 0.0
    %1913 = vmatpush2.msra.mxu0 0.0
    %1914 = vmatprep.subr.mxu0 0.0
    %1915 = vmatpush2.msra.mxu0 0.0
    %1916 = vmatprep.subr.mxu0 0.0
    %1917 = vmatpush2.msra.mxu0 0.0
    %1918 = vmatprep.subr.mxu0 0.0
    %1919 = vmatpush2.msra.mxu0 0.0
    %1920 = vmatprep.subr.mxu0 0.0
    %1921 = vmatpush2.msra.mxu0 0.0
    %1922 = vmatprep.subr.mxu0 0.0
    %1923 = vmatpush2.msra.mxu0 0.0
    %1924 = vmatprep.subr.mxu0 0.0
    %1925 = vmatpush2.msra.mxu0 0.0
    %1926 = vmatprep.subr.mxu0 0.0
    %1927 = vmatpush2.msra.mxu0 0.0
    %1928 = vmatprep.mubr.f32.mxu0 0.0
    %1929 = vmatmul.mubr.f32.gmra.mxu0 %v1859
    %v1930 = vpop.f32.mrf.mxu0
    %v1931 = vadd.f32 0.0, %v1930
    %v1932 = vpop.f32.mrf.mxu0
    %1933 = vmatprep.mubr.f32.mxu0 0.0
    %1934 = vmatmul.mubr.f32.gmra.mxu0 %v1862
    %v1935 = vpop.f32.mrf.mxu0
    %v1936 = vadd.f32 0.0, %v1935
    %v1937 = vpop.f32.mrf.mxu0
    %1938 = vdwg.mxu0
    %v1940 = vsel %vm124, %v1846, 0
    %v1943 = vsel %vm124, %v1847, 0
    %1945 = vmatprep.subr.mxu0 0.0
    %1946 = vmatpush1.msra.mxu0 0.0
    %1947 = vmatprep.subr.mxu0 0.0
    %1948 = vmatpush1.msra.mxu0 0.0
    %1949 = vmatprep.subr.mxu0 0.0
    %1950 = vmatpush1.msra.mxu0 0.0
    %1951 = vmatprep.subr.mxu0 0.0
    %1952 = vmatpush1.msra.mxu0 0.0
    %1953 = vmatprep.subr.mxu0 0.0
    %1954 = vmatpush1.msra.mxu0 0.0
    %1955 = vmatprep.subr.mxu0 0.0
    %1956 = vmatpush1.msra.mxu0 0.0
    %1957 = vmatprep.subr.mxu0 0.0
    %1958 = vmatpush1.msra.mxu0 0.0
    %1959 = vmatprep.subr.mxu0 0.0
    %1960 = vmatpush1.msra.mxu0 0.0
    %1961 = vmatprep.subr.mxu0 0.0
    %1962 = vmatpush1.msra.mxu0 0.0
    %1963 = vmatprep.subr.mxu0 0.0
    %1964 = vmatpush1.msra.mxu0 0.0
    %1965 = vmatprep.subr.mxu0 0.0
    %1966 = vmatpush1.msra.mxu0 0.0
    %1967 = vmatprep.subr.mxu0 0.0
    %1968 = vmatpush1.msra.mxu0 0.0
    %1969 = vmatprep.subr.mxu0 0.0
    %1970 = vmatpush1.msra.mxu0 0.0
    %1971 = vmatprep.subr.mxu0 0.0
    %1972 = vmatpush1.msra.mxu0 0.0
    %1973 = vmatprep.subr.mxu0 0.0
    %1974 = vmatpush1.msra.mxu0 %v1849
    %1975 = vmatprep.subr.mxu0 0.0
    %1976 = vmatpush1.msra.mxu0 %v1848
    %1977 = vmatprep.subr.mxu0 0.0
    %1978 = vmatpush2.msra.mxu0 0.0
    %1979 = vmatprep.subr.mxu0 0.0
    %1980 = vmatpush2.msra.mxu0 0.0
    %1981 = vmatprep.subr.mxu0 0.0
    %1982 = vmatpush2.msra.mxu0 0.0
    %1983 = vmatprep.subr.mxu0 0.0
    %1984 = vmatpush2.msra.mxu0 0.0
    %1985 = vmatprep.subr.mxu0 0.0
    %1986 = vmatpush2.msra.mxu0 0.0
    %1987 = vmatprep.subr.mxu0 0.0
    %1988 = vmatpush2.msra.mxu0 0.0
    %1989 = vmatprep.subr.mxu0 0.0
    %1990 = vmatpush2.msra.mxu0 0.0
    %1991 = vmatprep.subr.mxu0 0.0
    %1992 = vmatpush2.msra.mxu0 0.0
    %1993 = vmatprep.subr.mxu0 0.0
    %1994 = vmatpush2.msra.mxu0 0.0
    %1995 = vmatprep.subr.mxu0 0.0
    %1996 = vmatpush2.msra.mxu0 0.0
    %1997 = vmatprep.subr.mxu0 0.0
    %1998 = vmatpush2.msra.mxu0 0.0
    %1999 = vmatprep.subr.mxu0 0.0
    %2000 = vmatpush2.msra.mxu0 0.0
    %2001 = vmatprep.subr.mxu0 0.0
    %2002 = vmatpush2.msra.mxu0 0.0
    %2003 = vmatprep.subr.mxu0 0.0
    %2004 = vmatpush2.msra.mxu0 0.0
    %2005 = vmatprep.subr.mxu0 0.0
    %2006 = vmatpush2.msra.mxu0 0.0
    %2007 = vmatprep.subr.mxu0 0.0
    %2008 = vmatpush2.msra.mxu0 0.0
    %2009 = vmatprep.mubr.f32.mxu0 0.0
    %2010 = vmatmul.mubr.f32.gmra.mxu0 %v1940
    %v2011 = vpop.f32.mrf.mxu0
    %v2012 = vadd.f32 %v1931, %v2011
    %v2013 = vpop.f32.mrf.mxu0
    %2014 = vmatprep.mubr.f32.mxu0 0.0
    %2015 = vmatmul.mubr.f32.gmra.mxu0 %v1943
    %v2016 = vpop.f32.mrf.mxu0
    %v2017 = vadd.f32 %v1936, %v2016
    %v2018 = vpop.f32.mrf.mxu0
    %2019 = vdwg.mxu0
    %v2020 = vld [vmem:[%s9] sm:$0x1]
    %v2022 = vlaneseq
    %v2023 = vshrl.u32 %v2022, 7
    %v2024 = vsub.s32 0, %v2023
    %v2025 = vrot.slane %v2020, %v2024
    %v2027 = vadd.f32 %v2012, %v2025
    %v2028 = vadd.f32 %v2017, %v2025
    %v2029 = vld [vmem:[%s10] sm:$0xff]
    %v2030 = vld [vmem:[%s10 + $0x8] sm:$0xff]
    %v2031 = vld [vmem:[%s10 + $0x10] sm:$0xff]
    %v2032 = vld [vmem:[%s10 + $0x18] sm:$0xff]
    %v2033 = vld [vmem:[%s11] sm:$0x1]
    %v2035 = vlaneseq
    %v2036 = vshrl.u32 %v2035, 7
    %v2037 = vsub.s32 0, %v2036
    %v2038 = vrot.slane %v2033, %v2037
    %vm2040 = vcmask 261120
    %v2042 = vsel %vm2040, %v2027, 0
    %v2045 = vsel %vm2040, %v2028, 0
    %2047 = vmatprep.subr.mxu0 0.0
    %2048 = vmatpush1.msra.mxu0 0.0
    %2049 = vmatprep.subr.mxu0 0.0
    %2050 = vmatpush1.msra.mxu0 0.0
    %2051 = vmatprep.subr.mxu0 0.0
    %2052 = vmatpush1.msra.mxu0 0.0
    %2053 = vmatprep.subr.mxu0 0.0
    %2054 = vmatpush1.msra.mxu0 0.0
    %2055 = vmatprep.subr.mxu0 0.0
    %2056 = vmatpush1.msra.mxu0 0.0
    %2057 = vmatprep.subr.mxu0 0.0
    %2058 = vmatpush1.msra.mxu0 0.0
    %2059 = vmatprep.subr.mxu0 0.0
    %2060 = vmatpush1.msra.mxu0 0.0
    %2061 = vmatprep.subr.mxu0 0.0
    %2062 = vmatpush1.msra.mxu0 0.0
    %2063 = vmatprep.subr.mxu0 0.0
    %2064 = vmatpush1.msra.mxu0 0.0
    %2065 = vmatprep.subr.mxu0 0.0
    %2066 = vmatpush1.msra.mxu0 0.0
    %2067 = vmatprep.subr.mxu0 0.0
    %2068 = vmatpush1.msra.mxu0 0.0
    %2069 = vmatprep.subr.mxu0 0.0
    %2070 = vmatpush1.msra.mxu0 0.0
    %2071 = vmatprep.subr.mxu0 0.0
    %2072 = vmatpush1.msra.mxu0 %v2032
    %2073 = vmatprep.subr.mxu0 0.0
    %2074 = vmatpush1.msra.mxu0 %v2031
    %2075 = vmatprep.subr.mxu0 0.0
    %2076 = vmatpush1.msra.mxu0 %v2030
    %2077 = vmatprep.subr.mxu0 0.0
    %2078 = vmatpush1.msra.mxu0 %v2029
    %2079 = vmatprep.subr.mxu0 0.0
    %2080 = vmatpush2.msra.mxu0 0.0
    %2081 = vmatprep.subr.mxu0 0.0
    %2082 = vmatpush2.msra.mxu0 0.0
    %2083 = vmatprep.subr.mxu0 0.0
    %2084 = vmatpush2.msra.mxu0 0.0
    %2085 = vmatprep.subr.mxu0 0.0
    %2086 = vmatpush2.msra.mxu0 0.0
    %2087 = vmatprep.subr.mxu0 0.0
    %2088 = vmatpush2.msra.mxu0 0.0
    %2089 = vmatprep.subr.mxu0 0.0
    %2090 = vmatpush2.msra.mxu0 0.0
    %2091 = vmatprep.subr.mxu0 0.0
    %2092 = vmatpush2.msra.mxu0 0.0
    %2093 = vmatprep.subr.mxu0 0.0
    %2094 = vmatpush2.msra.mxu0 0.0
    %2095 = vmatprep.subr.mxu0 0.0
    %2096 = vmatpush2.msra.mxu0 0.0
    %2097 = vmatprep.subr.mxu0 0.0
    %2098 = vmatpush2.msra.mxu0 0.0
    %2099 = vmatprep.subr.mxu0 0.0
    %2100 = vmatpush2.msra.mxu0 0.0
    %2101 = vmatprep.subr.mxu0 0.0
    %2102 = vmatpush2.msra.mxu0 0.0
    %2103 = vmatprep.subr.mxu0 0.0
    %2104 = vmatpush2.msra.mxu0 0.0
    %2105 = vmatprep.subr.mxu0 0.0
    %2106 = vmatpush2.msra.mxu0 0.0
    %2107 = vmatprep.subr.mxu0 0.0
    %2108 = vmatpush2.msra.mxu0 0.0
    %2109 = vmatprep.subr.mxu0 0.0
    %2110 = vmatpush2.msra.mxu0 0.0
    %2111 = vmatprep.mubr.f32.mxu0 0.0
    %2112 = vmatmul.mubr.f32.gmra.mxu0 %v2042
    %v2113 = vpop.f32.mrf.mxu0
    %v2114 = vadd.f32 %v2038, %v2113
    %v2115 = vpop.f32.mrf.mxu0
    %2116 = vmatprep.mubr.f32.mxu0 0.0
    %2117 = vmatmul.mubr.f32.gmra.mxu0 %v2045
    %v2118 = vpop.f32.mrf.mxu0
    %v2119 = vadd.f32 %v2038, %v2118
    %v2120 = vpop.f32.mrf.mxu0
    %2121 = vdwg.mxu0
    %v2122 = vmax.f32 %v2114, 0.0
    %v2123 = vmax.f32 %v2119, 0.0
    %s2124 = scalar_lea.vmem %s10, 32
    %v2125 = vld [vmem:[%s2124] sm:$0xff]
    %v2126 = vld [vmem:[%s2124 + $0x8] sm:$0xff]
    %v2127 = vld [vmem:[%s2124 + $0x10] sm:$0xff]
    %v2128 = vld [vmem:[%s2124 + $0x18] sm:$0xff]
    %s2129 = scalar_lea.vmem %s11, 1
    %v2130 = vld [vmem:[%s2129] sm:$0x1]
    %v2132 = vlaneseq
    %v2133 = vshrl.u32 %v2132, 7
    %v2134 = vsub.s32 0, %v2133
    %v2135 = vrot.slane %v2130, %v2134
    %v2138 = vsel %vm2040, %v2122, 0
    %v2141 = vsel %vm2040, %v2123, 0
    %2143 = vmatprep.subr.mxu0 0.0
    %2144 = vmatpush1.msra.mxu0 0.0
    %2145 = vmatprep.subr.mxu0 0.0
    %2146 = vmatpush1.msra.mxu0 0.0
    %2147 = vmatprep.subr.mxu0 0.0
    %2148 = vmatpush1.msra.mxu0 0.0
    %2149 = vmatprep.subr.mxu0 0.0
    %2150 = vmatpush1.msra.mxu0 0.0
    %2151 = vmatprep.subr.mxu0 0.0
    %2152 = vmatpush1.msra.mxu0 0.0
    %2153 = vmatprep.subr.mxu0 0.0
    %2154 = vmatpush1.msra.mxu0 0.0
    %2155 = vmatprep.subr.mxu0 0.0
    %2156 = vmatpush1.msra.mxu0 0.0
    %2157 = vmatprep.subr.mxu0 0.0
    %2158 = vmatpush1.msra.mxu0 0.0
    %2159 = vmatprep.subr.mxu0 0.0
    %2160 = vmatpush1.msra.mxu0 0.0
    %2161 = vmatprep.subr.mxu0 0.0
    %2162 = vmatpush1.msra.mxu0 0.0
    %2163 = vmatprep.subr.mxu0 0.0
    %2164 = vmatpush1.msra.mxu0 0.0
    %2165 = vmatprep.subr.mxu0 0.0
    %2166 = vmatpush1.msra.mxu0 0.0
    %2167 = vmatprep.subr.mxu0 0.0
    %2168 = vmatpush1.msra.mxu0 %v2128
    %2169 = vmatprep.subr.mxu0 0.0
    %2170 = vmatpush1.msra.mxu0 %v2127
    %2171 = vmatprep.subr.mxu0 0.0
    %2172 = vmatpush1.msra.mxu0 %v2126
    %2173 = vmatprep.subr.mxu0 0.0
    %2174 = vmatpush1.msra.mxu0 %v2125
    %2175 = vmatprep.subr.mxu0 0.0
    %2176 = vmatpush2.msra.mxu0 0.0
    %2177 = vmatprep.subr.mxu0 0.0
    %2178 = vmatpush2.msra.mxu0 0.0
    %2179 = vmatprep.subr.mxu0 0.0
    %2180 = vmatpush2.msra.mxu0 0.0
    %2181 = vmatprep.subr.mxu0 0.0
    %2182 = vmatpush2.msra.mxu0 0.0
    %2183 = vmatprep.subr.mxu0 0.0
    %2184 = vmatpush2.msra.mxu0 0.0
    %2185 = vmatprep.subr.mxu0 0.0
    %2186 = vmatpush2.msra.mxu0 0.0
    %2187 = vmatprep.subr.mxu0 0.0
    %2188 = vmatpush2.msra.mxu0 0.0
    %2189 = vmatprep.subr.mxu0 0.0
    %2190 = vmatpush2.msra.mxu0 0.0
    %2191 = vmatprep.subr.mxu0 0.0
    %2192 = vmatpush2.msra.mxu0 0.0
    %2193 = vmatprep.subr.mxu0 0.0
    %2194 = vmatpush2.msra.mxu0 0.0
    %2195 = vmatprep.subr.mxu0 0.0
    %2196 = vmatpush2.msra.mxu0 0.0
    %2197 = vmatprep.subr.mxu0 0.0
    %2198 = vmatpush2.msra.mxu0 0.0
    %2199 = vmatprep.subr.mxu0 0.0
    %2200 = vmatpush2.msra.mxu0 0.0
    %2201 = vmatprep.subr.mxu0 0.0
    %2202 = vmatpush2.msra.mxu0 0.0
    %2203 = vmatprep.subr.mxu0 0.0
    %2204 = vmatpush2.msra.mxu0 0.0
    %2205 = vmatprep.subr.mxu0 0.0
    %2206 = vmatpush2.msra.mxu0 0.0
    %2207 = vmatprep.mubr.f32.mxu0 0.0
    %2208 = vmatmul.mubr.f32.gmra.mxu0 %v2138
    %v2209 = vpop.f32.mrf.mxu0
    %v2210 = vadd.f32 %v2135, %v2209
    %v2211 = vpop.f32.mrf.mxu0
    %2212 = vmatprep.mubr.f32.mxu0 0.0
    %2213 = vmatmul.mubr.f32.gmra.mxu0 %v2141
    %v2214 = vpop.f32.mrf.mxu0
    %v2215 = vadd.f32 %v2135, %v2214
    %v2216 = vpop.f32.mrf.mxu0
    %2217 = vdwg.mxu0
    %v2218 = vmax.f32 %v2210, 0.0
    %v2219 = vmax.f32 %v2215, 0.0
    %s2220 = scalar_lea.vmem %s10, 64
    %v2221 = vld [vmem:[%s2220] sm:$0xff]
    %v2222 = vld [vmem:[%s2220 + $0x8] sm:$0xff]
    %v2223 = vld [vmem:[%s2220 + $0x10] sm:$0xff]
    %v2224 = vld [vmem:[%s2220 + $0x18] sm:$0xff]
    %s2225 = scalar_lea.vmem %s11, 2
    %v2226 = vld [vmem:[%s2225] sm:$0x1]
    %v2228 = vlaneseq
    %v2229 = vshrl.u32 %v2228, 7
    %v2230 = vsub.s32 0, %v2229
    %v2231 = vrot.slane %v2226, %v2230
    %v2234 = vsel %vm2040, %v2218, 0
    %v2237 = vsel %vm2040, %v2219, 0
    %2239 = vmatprep.subr.mxu0 0.0
    %2240 = vmatpush1.msra.mxu0 0.0
    %2241 = vmatprep.subr.mxu0 0.0
    %2242 = vmatpush1.msra.mxu0 0.0
    %2243 = vmatprep.subr.mxu0 0.0
    %2244 = vmatpush1.msra.mxu0 0.0
    %2245 = vmatprep.subr.mxu0 0.0
    %2246 = vmatpush1.msra.mxu0 0.0
    %2247 = vmatprep.subr.mxu0 0.0
    %2248 = vmatpush1.msra.mxu0 0.0
    %2249 = vmatprep.subr.mxu0 0.0
    %2250 = vmatpush1.msra.mxu0 0.0
    %2251 = vmatprep.subr.mxu0 0.0
    %2252 = vmatpush1.msra.mxu0 0.0
    %2253 = vmatprep.subr.mxu0 0.0
    %2254 = vmatpush1.msra.mxu0 0.0
    %2255 = vmatprep.subr.mxu0 0.0
    %2256 = vmatpush1.msra.mxu0 0.0
    %2257 = vmatprep.subr.mxu0 0.0
    %2258 = vmatpush1.msra.mxu0 0.0
    %2259 = vmatprep.subr.mxu0 0.0
    %2260 = vmatpush1.msra.mxu0 0.0
    %2261 = vmatprep.subr.mxu0 0.0
    %2262 = vmatpush1.msra.mxu0 0.0
    %2263 = vmatprep.subr.mxu0 0.0
    %2264 = vmatpush1.msra.mxu0 %v2224
    %2265 = vmatprep.subr.mxu0 0.0
    %2266 = vmatpush1.msra.mxu0 %v2223
    %2267 = vmatprep.subr.mxu0 0.0
    %2268 = vmatpush1.msra.mxu0 %v2222
    %2269 = vmatprep.subr.mxu0 0.0
    %2270 = vmatpush1.msra.mxu0 %v2221
    %2271 = vmatprep.subr.mxu0 0.0
    %2272 = vmatpush2.msra.mxu0 0.0
    %2273 = vmatprep.subr.mxu0 0.0
    %2274 = vmatpush2.msra.mxu0 0.0
    %2275 = vmatprep.subr.mxu0 0.0
    %2276 = vmatpush2.msra.mxu0 0.0
    %2277 = vmatprep.subr.mxu0 0.0
    %2278 = vmatpush2.msra.mxu0 0.0
    %2279 = vmatprep.subr.mxu0 0.0
    %2280 = vmatpush2.msra.mxu0 0.0
    %2281 = vmatprep.subr.mxu0 0.0
    %2282 = vmatpush2.msra.mxu0 0.0
    %2283 = vmatprep.subr.mxu0 0.0
    %2284 = vmatpush2.msra.mxu0 0.0
    %2285 = vmatprep.subr.mxu0 0.0
    %2286 = vmatpush2.msra.mxu0 0.0
    %2287 = vmatprep.subr.mxu0 0.0
    %2288 = vmatpush2.msra.mxu0 0.0
    %2289 = vmatprep.subr.mxu0 0.0
    %2290 = vmatpush2.msra.mxu0 0.0
    %2291 = vmatprep.subr.mxu0 0.0
    %2292 = vmatpush2.msra.mxu0 0.0
    %2293 = vmatprep.subr.mxu0 0.0
    %2294 = vmatpush2.msra.mxu0 0.0
    %2295 = vmatprep.subr.mxu0 0.0
    %2296 = vmatpush2.msra.mxu0 0.0
    %2297 = vmatprep.subr.mxu0 0.0
    %2298 = vmatpush2.msra.mxu0 0.0
    %2299 = vmatprep.subr.mxu0 0.0
    %2300 = vmatpush2.msra.mxu0 0.0
    %2301 = vmatprep.subr.mxu0 0.0
    %2302 = vmatpush2.msra.mxu0 0.0
    %2303 = vmatprep.mubr.f32.mxu0 0.0
    %2304 = vmatmul.mubr.f32.gmra.mxu0 %v2234
    %v2305 = vpop.f32.mrf.mxu0
    %v2306 = vadd.f32 %v2231, %v2305
    %v2307 = vpop.f32.mrf.mxu0
    %2308 = vmatprep.mubr.f32.mxu0 0.0
    %2309 = vmatmul.mubr.f32.gmra.mxu0 %v2237
    %v2310 = vpop.f32.mrf.mxu0
    %v2311 = vadd.f32 %v2231, %v2310
    %v2312 = vpop.f32.mrf.mxu0
    %2313 = vdwg.mxu0
    %v2314 = vmax.f32 %v2306, 0.0
    %v2315 = vmax.f32 %v2311, 0.0
    %s2316 = scalar_lea.vmem %s10, 96
    %v2317 = vld [vmem:[%s2316] sm:$0xff]
    %v2318 = vld [vmem:[%s2316 + $0x8] sm:$0xff]
    %v2319 = vld [vmem:[%s2316 + $0x10] sm:$0xff]
    %v2320 = vld [vmem:[%s2316 + $0x18] sm:$0xff]
    %s2321 = scalar_lea.vmem %s11, 3
    %v2322 = vld [vmem:[%s2321] sm:$0x1]
    %v2324 = vlaneseq
    %v2325 = vshrl.u32 %v2324, 7
    %v2326 = vsub.s32 0, %v2325
    %v2327 = vrot.slane %v2322, %v2326
    %v2330 = vsel %vm2040, %v2314, 0
    %v2333 = vsel %vm2040, %v2315, 0
    %2335 = vmatprep.subr.mxu0 0.0
    %2336 = vmatpush1.msra.mxu0 0.0
    %2337 = vmatprep.subr.mxu0 0.0
    %2338 = vmatpush1.msra.mxu0 0.0
    %2339 = vmatprep.subr.mxu0 0.0
    %2340 = vmatpush1.msra.mxu0 0.0
    %2341 = vmatprep.subr.mxu0 0.0
    %2342 = vmatpush1.msra.mxu0 0.0
    %2343 = vmatprep.subr.mxu0 0.0
    %2344 = vmatpush1.msra.mxu0 0.0
    %2345 = vmatprep.subr.mxu0 0.0
    %2346 = vmatpush1.msra.mxu0 0.0
    %2347 = vmatprep.subr.mxu0 0.0
    %2348 = vmatpush1.msra.mxu0 0.0
    %2349 = vmatprep.subr.mxu0 0.0
    %2350 = vmatpush1.msra.mxu0 0.0
    %2351 = vmatprep.subr.mxu0 0.0
    %2352 = vmatpush1.msra.mxu0 0.0
    %2353 = vmatprep.subr.mxu0 0.0
    %2354 = vmatpush1.msra.mxu0 0.0
    %2355 = vmatprep.subr.mxu0 0.0
    %2356 = vmatpush1.msra.mxu0 0.0
    %2357 = vmatprep.subr.mxu0 0.0
    %2358 = vmatpush1.msra.mxu0 0.0
    %2359 = vmatprep.subr.mxu0 0.0
    %2360 = vmatpush1.msra.mxu0 %v2320
    %2361 = vmatprep.subr.mxu0 0.0
    %2362 = vmatpush1.msra.mxu0 %v2319
    %2363 = vmatprep.subr.mxu0 0.0
    %2364 = vmatpush1.msra.mxu0 %v2318
    %2365 = vmatprep.subr.mxu0 0.0
    %2366 = vmatpush1.msra.mxu0 %v2317
    %2367 = vmatprep.subr.mxu0 0.0
    %2368 = vmatpush2.msra.mxu0 0.0
    %2369 = vmatprep.subr.mxu0 0.0
    %2370 = vmatpush2.msra.mxu0 0.0
    %2371 = vmatprep.subr.mxu0 0.0
    %2372 = vmatpush2.msra.mxu0 0.0
    %2373 = vmatprep.subr.mxu0 0.0
    %2374 = vmatpush2.msra.mxu0 0.0
    %2375 = vmatprep.subr.mxu0 0.0
    %2376 = vmatpush2.msra.mxu0 0.0
    %2377 = vmatprep.subr.mxu0 0.0
    %2378 = vmatpush2.msra.mxu0 0.0
    %2379 = vmatprep.subr.mxu0 0.0
    %2380 = vmatpush2.msra.mxu0 0.0
    %2381 = vmatprep.subr.mxu0 0.0
    %2382 = vmatpush2.msra.mxu0 0.0
    %2383 = vmatprep.subr.mxu0 0.0
    %2384 = vmatpush2.msra.mxu0 0.0
    %2385 = vmatprep.subr.mxu0 0.0
    %2386 = vmatpush2.msra.mxu0 0.0
    %2387 = vmatprep.subr.mxu0 0.0
    %2388 = vmatpush2.msra.mxu0 0.0
    %2389 = vmatprep.subr.mxu0 0.0
    %2390 = vmatpush2.msra.mxu0 0.0
    %2391 = vmatprep.subr.mxu0 0.0
    %2392 = vmatpush2.msra.mxu0 0.0
    %2393 = vmatprep.subr.mxu0 0.0
    %2394 = vmatpush2.msra.mxu0 0.0
    %2395 = vmatprep.subr.mxu0 0.0
    %2396 = vmatpush2.msra.mxu0 0.0
    %2397 = vmatprep.subr.mxu0 0.0
    %2398 = vmatpush2.msra.mxu0 0.0
    %2399 = vmatprep.mubr.f32.mxu0 0.0
    %2400 = vmatmul.mubr.f32.gmra.mxu0 %v2330
    %v2401 = vpop.f32.mrf.mxu0
    %v2402 = vadd.f32 %v2327, %v2401
    %v2403 = vpop.f32.mrf.mxu0
    %2404 = vmatprep.mubr.f32.mxu0 0.0
    %2405 = vmatmul.mubr.f32.gmra.mxu0 %v2333
    %v2406 = vpop.f32.mrf.mxu0
    %v2407 = vadd.f32 %v2327, %v2406
    %v2408 = vpop.f32.mrf.mxu0
    %2409 = vdwg.mxu0
    %v2410 = vmax.f32 %v2402, 0.0
    %v2411 = vmax.f32 %v2407, 0.0
    %v2412 = vld [vmem:[%s12] sm:$0x1]
    %v2413 = vld [vmem:[#allocation3] sm:$0x1]
    %2415 = vset.pattern.permute.xlu0 0
    %2416 = vperm.xlu0 %2415, %v2413
    %v2417 = vpop.permute.xlu0 %2416
    %v2419 = vlaneseq
    %v2420 = vshrl.u32 %v2419, 7
    %v2421 = vsub.s32 0, %v2420
    %v2422 = vrot.slane %v2417, %v2421
    %v2424 = vsel %vm2040, %v2412, 0
    %v2427 = vsel %vm2040, %v2410, 0
    %v2430 = vsel %vm2040, %v2411, 0
    %2432 = vmatprep.subr.mxu0 0.0
    %2433 = vmatpush1.xpose.msra.mxu0 0.0
    %2434 = vmatprep.subr.mxu0 0.0
    %2435 = vmatpush1.xpose.msra.mxu0 0.0
    %2436 = vmatprep.subr.mxu0 0.0
    %2437 = vmatpush1.xpose.msra.mxu0 0.0
    %2438 = vmatprep.subr.mxu0 0.0
    %2439 = vmatpush1.xpose.msra.mxu0 0.0
    %2440 = vmatprep.subr.mxu0 0.0
    %2441 = vmatpush1.xpose.msra.mxu0 0.0
    %2442 = vmatprep.subr.mxu0 0.0
    %2443 = vmatpush1.xpose.msra.mxu0 0.0
    %2444 = vmatprep.subr.mxu0 0.0
    %2445 = vmatpush1.xpose.msra.mxu0 0.0
    %2446 = vmatprep.subr.mxu0 0.0
    %2447 = vmatpush1.xpose.msra.mxu0 0.0
    %2448 = vmatprep.subr.mxu0 0.0
    %2449 = vmatpush1.xpose.msra.mxu0 0.0
    %2450 = vmatprep.subr.mxu0 0.0
    %2451 = vmatpush1.xpose.msra.mxu0 0.0
    %2452 = vmatprep.subr.mxu0 0.0
    %2453 = vmatpush1.xpose.msra.mxu0 0.0
    %2454 = vmatprep.subr.mxu0 0.0
    %2455 = vmatpush1.xpose.msra.mxu0 0.0
    %2456 = vmatprep.subr.mxu0 0.0
    %2457 = vmatpush1.xpose.msra.mxu0 0.0
    %2458 = vmatprep.subr.mxu0 0.0
    %2459 = vmatpush1.xpose.msra.mxu0 0.0
    %2460 = vmatprep.subr.mxu0 0.0
    %2461 = vmatpush1.xpose.msra.mxu0 %v2430
    %2462 = vmatprep.subr.mxu0 0.0
    %2463 = vmatpush1.xpose.msra.mxu0 %v2427
    %2464 = vmatprep.subr.mxu0 0.0
    %2465 = vmatpush2.xpose.msra.mxu0 0.0
    %2466 = vmatprep.subr.mxu0 0.0
    %2467 = vmatpush2.xpose.msra.mxu0 0.0
    %2468 = vmatprep.subr.mxu0 0.0
    %2469 = vmatpush2.xpose.msra.mxu0 0.0
    %2470 = vmatprep.subr.mxu0 0.0
    %2471 = vmatpush2.xpose.msra.mxu0 0.0
    %2472 = vmatprep.subr.mxu0 0.0
    %2473 = vmatpush2.xpose.msra.mxu0 0.0
    %2474 = vmatprep.subr.mxu0 0.0
    %2475 = vmatpush2.xpose.msra.mxu0 0.0
    %2476 = vmatprep.subr.mxu0 0.0
    %2477 = vmatpush2.xpose.msra.mxu0 0.0
    %2478 = vmatprep.subr.mxu0 0.0
    %2479 = vmatpush2.xpose.msra.mxu0 0.0
    %2480 = vmatprep.subr.mxu0 0.0
    %2481 = vmatpush2.xpose.msra.mxu0 0.0
    %2482 = vmatprep.subr.mxu0 0.0
    %2483 = vmatpush2.xpose.msra.mxu0 0.0
    %2484 = vmatprep.subr.mxu0 0.0
    %2485 = vmatpush2.xpose.msra.mxu0 0.0
    %2486 = vmatprep.subr.mxu0 0.0
    %2487 = vmatpush2.xpose.msra.mxu0 0.0
    %2488 = vmatprep.subr.mxu0 0.0
    %2489 = vmatpush2.xpose.msra.mxu0 0.0
    %2490 = vmatprep.subr.mxu0 0.0
    %2491 = vmatpush2.xpose.msra.mxu0 0.0
    %2492 = vmatprep.subr.mxu0 0.0
    %2493 = vmatpush2.xpose.msra.mxu0 0.0
    %2494 = vmatprep.subr.mxu0 0.0
    %2495 = vmatpush2.xpose.msra.mxu0 0.0
    %2496 = vmatprep.mubr.f32.mxu0 0.0
    %2497 = vmatmul.mubr.f32.gmra.mxu0 %v2424
    %v2498 = vpop.f32.mrf.mxu0
    %v2499 = vadd.f32 %v2422, %v2498
    %v2500 = vpop.f32.mrf.mxu0
    %2501 = vdwg.mxu0
    %v2502 = vxor.u32 %v2499, 2147483648
    %v2503 = vmul.f32 %v2502, 1.442695
    %v2504 = vpow.pop %v2503
    %v2505 = vadd.f32 %v2504, 1.0
    %v2506 = vrcp.pop %v2505
    %v2507 = vmul.f32 1.0, %v2506
    %vm2508 = vcmask 122880
    %2509 = vst.msk [vmem:[#allocation12] sm:$0x1] %vm2508, %v2507
    // Predicated region
    $region74: #{tpu_custom_call.1} parent=1 // pred_check
      _
    $region75: #{tpu_custom_call.1} parent=1 // pred_check_branch
      %2511 = sbr.rel (0) target = $region77
    $region76: #{tpu_custom_call.1} parent=1 // pred_region
      %s2513 = ssub.s32 16, 16
      %2514 = vsyncadd [#allocation6], %s2513
      %s2516 = sshll.u32 [#allocation12], 4
      %s2517 = int_to_ptr.vmem [resolvable:$true] %s2516
      %2519 = dma.vmem_to_hbm [thread:$0]  %s2517, 16, %s14, [#allocation6]
    $region77: #{tpu_custom_call.1} parent=1 // pred_fallthru
      _
    // Predicated region
    $region78: #{tpu_custom_call.1} parent=1 // pred_check
      _
    $region79: #{tpu_custom_call.1} parent=1 // pred_check_branch
      %2521 = sbr.rel (0) target = $region81
    $region80: #{tpu_custom_call.1} parent=1 // pred_region
      %2522 = dma.done [#allocation6], 16
    $region81: #{tpu_custom_call.1} parent=1 // pred_fallthru
      _
    %2523 = vsyncpa [#allocation5], 1
    %2524 = vsyncpa [#allocation8], 1
    %2525 = vsyncpa [#allocation11], 1
    %2526 = vsyncpa [#allocation6], 1

</llo_original>
